<compile_context>
chip_gen: v6e
topology: v6e:2x2x1
jax: 0.10.0
libtpu: 0.0.40
codegen_flags: <defaults>
</compile_context>

<pallas_src>
import functools

import jax
import jax.numpy as jnp
from jax import lax
from jax.experimental import pallas as pl
from jax.experimental.pallas import tpu as pltpu

EPS = 1e-5                    # nn.BatchNorm2d default eps
MXU_DTYPE = jnp.bfloat16      # conv matmul input dtype (f32 accumulation)


def _resblock_kernel(x_ref, scale_ref, bias_ref, mean_ref, inv_ref, col_ref,
                     w1_ref, b1_ref, w2_ref, b2_ref, out_ref, p_ref,
                     *, W, C, mxu_dtype):
    """One batch sample per grid step.

    x_ref:     (1, M, C)  flattened NHWC activations (M = H*W), f32
    scale_ref: (1, 1, C)  per-sample conditional scale  (cond @ Ws + bs)
    bias_ref:  (1, 1, C)  per-sample conditional bias   (cond @ Wb + bb)
    mean_ref:  (1, C)     batch mean over (N, H, W)
    inv_ref:   (1, C)     1 / sqrt(batch var + eps)
    col_ref:   (M, 1)     x-coordinate (m % W) of each flattened row, int32
    w*_ref:    (9*C, C)   conv weights, row = (ky*3+kx)*C + cin  (im2col order)
    b*_ref:    (1, C)     conv biases
    out_ref:   (1, M, C)
    p_ref:     (M, 9*C)   f32 VMEM scratch: im2col patches (reused by both convs)
    """
    M = x_ref.shape[1]

    x = x_ref[0]                                                   # (M, C) f32
    col = col_ref[...]                                             # (M, 1) i32

    # AdaptiveBatchNorm (stats precomputed) + conditional affine + ReLU, in f32.
    h = (x - mean_ref[...]) * inv_ref[...]
    h = jnp.maximum(scale_ref[0] * h + bias_ref[0], 0.0)

    def conv3x3(hin, w_flat, b_row, dil):
        # Gather the 9 dilated taps into the im2col scratch (M, 9C).  Borders are
        # handled with statically clamped row ranges + a column-validity mask
        # (no padded planes), then ONE MXU matmul (M,9C)x(9C,C), f32 accumulate.
        for t, (ky, kx) in enumerate([(ky, kx) for ky in (-1, 0, 1)
                                      for kx in (-1, 0, 1)]):
            oy, ox = dil * ky, dil * kx
            s = oy * W + ox                       # flattened row shift of this tap
            r0, r1 = max(0, -s), min(M, M - s)    # rows with an in-range source
            c0, c1 = t * C, (t + 1) * C
            if r0 > 0:                            # top border rows -> zero
                p_ref[0:r0, c0:c1] = jnp.zeros((r0, C), jnp.float32)
            if r1 < M:                            # bottom border rows -> zero
                p_ref[r1:M, c0:c1] = jnp.zeros((M - r1, C), jnp.float32)
            src = hin[r0 + s:r1 + s, :]           # shifted rows, shape (r1-r0, C)
            if ox != 0:                           # mask columns that wrapped in x
                xv = col[r0:r1, :] + ox
                src = jnp.where((xv >= 0) & (xv < W), src, 0.0)
            p_ref[r0:r1, c0:c1] = src
        patches = p_ref[...].astype(mxu_dtype)
        return jnp.dot(patches, w_flat,
                       preferred_element_type=jnp.float32) + b_row

    h = jnp.maximum(conv3x3(h, w1_ref[...], b1_ref[...], 1), 0.0)  # conv1 + ReLU
    h = conv3x3(h, w2_ref[...], b2_ref[...], 2)                    # conv2 (dil=2)

    out_ref[0] = (h + x).astype(out_ref.dtype)                     # residual add


def resblock_forward(x_nhwc, cond, params, *, mxu_dtype=MXU_DTYPE):
    """x_nhwc: (N,H,W,C) f32, cond: (N,A) f32 -> (N,H,W,C) f32."""
    N, H, W, C = x_nhwc.shape
    M = H * W
    ws, bs, wb, bb, w1, b1, w2, b2 = params   # ws/wb: (A,C); w1/w2 HWIO (3,3,C,C)

    # --- Pre-pass: BatchNorm batch statistics over (N,H,W), hoisted out of the
    # kernel so the batch-gridded kernel stays correct per tile.
    # TODO(synk): running_mean / running_var buffer updates are not reproduced.
    mean = jnp.mean(x_nhwc, axis=(0, 1, 2)).reshape(1, C)
    var = jnp.mean(jnp.square(x_nhwc - mean.reshape(1, 1, 1, C)),
                   axis=(0, 1, 2)).reshape(1, C)
    inv = lax.rsqrt(var + EPS)

    # --- Conditional scale/bias Linears as plain matmuls in the wrapper.
    scale = (cond @ ws + bs).reshape(N, 1, C).astype(jnp.float32)
    bias = (cond @ wb + bb).reshape(N, 1, C).astype(jnp.float32)

    # --- Kernel operands: flattened activations, im2col-ordered bf16 weights.
    x2d = x_nhwc.reshape(N, M, C)
    col = (jnp.arange(M, dtype=jnp.int32) % W).reshape(M, 1)
    w1f = w1.reshape(9 * C, C).astype(mxu_dtype)
    w2f = w2.reshape(9 * C, C).astype(mxu_dtype)
    b1r = b1.reshape(1, C).astype(jnp.float32)
    b2r = b2.reshape(1, C).astype(jnp.float32)

    kernel = functools.partial(_resblock_kernel, W=W, C=C, mxu_dtype=mxu_dtype)

    flops = 2 * (2 * N * M * (9 * C) * C) + 10 * N * M * C
    bytes_accessed = (2 * N * M * C * 4
                      + N * (w1f.size + w2f.size) * w1f.dtype.itemsize
                      + N * (6 * C + M) * 4)
    cost = pl.CostEstimate(flops=int(flops), transcendentals=0,
                           bytes_accessed=int(bytes_accessed))

    grid_spec = pltpu.PrefetchScalarGridSpec(
        num_scalar_prefetch=0,
        grid=(N,),
        in_specs=[
            pl.BlockSpec((1, M, C), lambda i: (i, 0, 0)),      # x (per sample)
            pl.BlockSpec((1, 1, C), lambda i: (i, 0, 0)),      # scale (per sample)
            pl.BlockSpec((1, 1, C), lambda i: (i, 0, 0)),      # bias  (per sample)
            pl.BlockSpec((1, C), lambda i: (0, 0)),            # batch mean
            pl.BlockSpec((1, C), lambda i: (0, 0)),            # batch inv-std
            pl.BlockSpec((M, 1), lambda i: (0, 0)),            # x-coordinate table
            pl.BlockSpec((9 * C, C), lambda i: (0, 0)),        # conv1 weight
            pl.BlockSpec((1, C), lambda i: (0, 0)),            # conv1 bias
            pl.BlockSpec((9 * C, C), lambda i: (0, 0)),        # conv2 weight
            pl.BlockSpec((1, C), lambda i: (0, 0)),            # conv2 bias
        ],
        out_specs=pl.BlockSpec((1, M, C), lambda i: (i, 0, 0)),
        scratch_shapes=[pltpu.VMEM((M, 9 * C), jnp.float32)],  # im2col patches
    )

    out = pl.pallas_call(
        kernel,
        out_shape=jax.ShapeDtypeStruct((N, M, C), x_nhwc.dtype),
        grid_spec=grid_spec,
        compiler_params=pltpu.CompilerParams(
            dimension_semantics=("parallel",)),
        cost_estimate=cost,
    )(x2d, scale, bias, mean, inv, col, w1f, b1r, w2f, b2r)
    return out.reshape(N, H, W, C)


def resblock_reference(x_nhwc, cond, params):
    """Pure-JAX f32 reference (same math, NHWC)."""
    ws, bs, wb, bb, w1, b1, w2, b2 = params
    mean = jnp.mean(x_nhwc, axis=(0, 1, 2), keepdims=True)
    var = jnp.mean(jnp.square(x_nhwc - mean), axis=(0, 1, 2), keepdims=True)
    xn = (x_nhwc - mean) / jnp.sqrt(var + EPS)
    scale = cond @ ws + bs
    bias = cond @ wb + bb
    h = scale[:, None, None, :] * xn + bias[:, None, None, :]
    h = jax.nn.relu(h)
    h = lax.conv_general_dilated(
        h, w1, (1, 1), ((1, 1), (1, 1)), rhs_dilation=(1, 1),
        dimension_numbers=('NHWC', 'HWIO', 'NHWC')) + b1
    h = jax.nn.relu(h)
    h = lax.conv_general_dilated(
        h, w2, (1, 1), ((2, 2), (2, 2)), rhs_dilation=(2, 2),
        dimension_numbers=('NHWC', 'HWIO', 'NHWC')) + b2
    return h + x_nhwc


if __name__ == "__main__":
    N, C, H, W, A = 2, 8, 16, 16, 8          # ResBlock(size=8, ada_size=8)
    ks = jax.random.split(jax.random.PRNGKey(0), 10)

    # PyTorch-convention inputs: x is NCHW, condition is (N, ada_size).
    x_nchw = jax.random.normal(ks[0], (N, C, H, W), jnp.float32)
    cond = jax.random.normal(ks[1], (N, A), jnp.float32)

    # Deterministic synthetic parameters (shapes from the module __init__).
    ws = 0.2 * jax.random.normal(ks[2], (A, C), jnp.float32)      # scale Linear (pre-transposed)
    bs = 1.0 + 0.1 * jax.random.normal(ks[3], (C,), jnp.float32)
    wb = 0.2 * jax.random.normal(ks[4], (A, C), jnp.float32)      # bias Linear
    bb = 0.1 * jax.random.normal(ks[5], (C,), jnp.float32)
    w1 = 0.15 * jax.random.normal(ks[6], (3, 3, C, C), jnp.float32)   # conv1, HWIO
    b1 = 0.05 * jax.random.normal(ks[7], (C,), jnp.float32)
    w2 = 0.15 * jax.random.normal(ks[8], (3, 3, C, C), jnp.float32)   # conv2, HWIO
    b2 = 0.05 * jax.random.normal(ks[9], (C,), jnp.float32)
    params = (ws, bs, wb, bb, w1, b1, w2, b2)

    # Layout glue: NCHW -> NHWC for the kernel, back to NCHW for the caller.
    x_nhwc = jnp.transpose(x_nchw, (0, 2, 3, 1))
    out_nhwc = jax.block_until_ready(jax.jit(resblock_forward)(x_nhwc, cond, params))
    out_nchw = jnp.transpose(out_nhwc, (0, 3, 1, 2))   # PyTorch-layout result

    ref = resblock_reference(x_nhwc, cond, params)
    # Tolerance reflects bf16 MXU inputs (f32 accumulation) vs the all-f32 reference.
    if not jnp.allclose(out_nhwc, ref, rtol=3e-2, atol=3e-2):
        err = float(jnp.max(jnp.abs(out_nhwc - ref)))
        raise AssertionError(f"Pallas ResBlock output mismatch (max abs err {err})")
    print("KERNEL_OK")
</pallas_src>

<mosaic_0001>
module attributes {stable_mosaic.version = 11 : i64} {
  func.func @_resblock_kernel(%arg0: i32, %arg1: memref<1x256x8xf32, #tpu.memory_space<vmem>>, %arg2: memref<1x1x8xf32, #tpu.memory_space<vmem>>, %arg3: memref<1x1x8xf32, #tpu.memory_space<vmem>>, %arg4: memref<1x8xf32, #tpu.memory_space<vmem>>, %arg5: memref<1x8xf32, #tpu.memory_space<vmem>>, %arg6: memref<256x1xi32, #tpu.memory_space<vmem>>, %arg7: memref<72x8xbf16, #tpu.memory_space<vmem>>, %arg8: memref<1x8xf32, #tpu.memory_space<vmem>>, %arg9: memref<72x8xbf16, #tpu.memory_space<vmem>>, %arg10: memref<1x8xf32, #tpu.memory_space<vmem>>, %arg11: memref<1x256x8xf32, #tpu.memory_space<vmem>>, %arg12: memref<256x72xf32, #tpu.memory_space<vmem>>) attributes {dimension_semantics = [#tpu.dimension_semantics<parallel>], iteration_bounds = array<i64: 2>, scalar_prefetch = 0 : i64, scratch_operands = 1 : i64, tpu.core_type = #tpu.core_type<tc>, window_params = [{transform_indices = @transform_0, window_bounds = array<i64: 1, 256, 8>}, {transform_indices = @transform_1, window_bounds = array<i64: 1, 1, 8>}, {transform_indices = @transform_2, window_bounds = array<i64: 1, 1, 8>}, {pipeline_mode = #tpu.pipeline_mode<synchronous>, transform_indices = @transform_3, window_bounds = array<i64: 1, 8>}, {pipeline_mode = #tpu.pipeline_mode<synchronous>, transform_indices = @transform_4, window_bounds = array<i64: 1, 8>}, {pipeline_mode = #tpu.pipeline_mode<synchronous>, transform_indices = @transform_5, window_bounds = array<i64: 256, 1>}, {pipeline_mode = #tpu.pipeline_mode<synchronous>, transform_indices = @transform_6, window_bounds = array<i64: 72, 8>}, {pipeline_mode = #tpu.pipeline_mode<synchronous>, transform_indices = @transform_7, window_bounds = array<i64: 1, 8>}, {pipeline_mode = #tpu.pipeline_mode<synchronous>, transform_indices = @transform_8, window_bounds = array<i64: 72, 8>}, {pipeline_mode = #tpu.pipeline_mode<synchronous>, transform_indices = @transform_9, window_bounds = array<i64: 1, 8>}, {transform_indices = @transform_10, window_bounds = array<i64: 1, 256, 8>}]} {
    %c0 = arith.constant 0 : index
    %c0_0 = arith.constant 0 : index
    %c0_1 = arith.constant 0 : index
    %0 = vector.load %arg1[%c0, %c0_0, %c0_1] : memref<1x256x8xf32, #tpu.memory_space<vmem>>, vector<1x256x8xf32>
    %1 = vector.shape_cast %0 : vector<1x256x8xf32> to vector<256x8xf32>
    %c0_2 = arith.constant 0 : index
    %c0_3 = arith.constant 0 : index
    %2 = vector.load %arg6[%c0_2, %c0_3] : memref<256x1xi32, #tpu.memory_space<vmem>>, vector<256x1xi32>
    %c0_4 = arith.constant 0 : index
    %c0_5 = arith.constant 0 : index
    %3 = vector.load %arg4[%c0_4, %c0_5] : memref<1x8xf32, #tpu.memory_space<vmem>>, vector<1x8xf32>
    %4 = vector.broadcast %3 : vector<1x8xf32> to vector<256x8xf32>
    %5 = arith.subf %1, %4 : vector<256x8xf32>
    %c0_6 = arith.constant 0 : index
    %c0_7 = arith.constant 0 : index
    %6 = vector.load %arg5[%c0_6, %c0_7] : memref<1x8xf32, #tpu.memory_space<vmem>>, vector<1x8xf32>
    %7 = vector.broadcast %6 : vector<1x8xf32> to vector<256x8xf32>
    %8 = arith.mulf %5, %7 : vector<256x8xf32>
    %c0_8 = arith.constant 0 : index
    %c0_9 = arith.constant 0 : index
    %c0_10 = arith.constant 0 : index
    %9 = vector.load %arg2[%c0_8, %c0_9, %c0_10] : memref<1x1x8xf32, #tpu.memory_space<vmem>>, vector<1x1x8xf32>
    %10 = vector.shape_cast %9 : vector<1x1x8xf32> to vector<1x8xf32>
    %11 = vector.broadcast %10 : vector<1x8xf32> to vector<256x8xf32>
    %12 = arith.mulf %11, %8 : vector<256x8xf32>
    %c0_11 = arith.constant 0 : index
    %c0_12 = arith.constant 0 : index
    %c0_13 = arith.constant 0 : index
    %13 = vector.load %arg3[%c0_11, %c0_12, %c0_13] : memref<1x1x8xf32, #tpu.memory_space<vmem>>, vector<1x1x8xf32>
    %14 = vector.shape_cast %13 : vector<1x1x8xf32> to vector<1x8xf32>
    %15 = vector.broadcast %14 : vector<1x8xf32> to vector<256x8xf32>
    %16 = arith.addf %12, %15 : vector<256x8xf32>
    %cst = arith.constant 0.000000e+00 : f32
    %17 = vector.broadcast %cst : f32 to vector<256x8xf32>
    %18 = arith.maximumf %16, %17 : vector<256x8xf32>
    %c0_14 = arith.constant 0 : index
    %c0_15 = arith.constant 0 : index
    %19 = vector.load %arg7[%c0_14, %c0_15] : memref<72x8xbf16, #tpu.memory_space<vmem>>, vector<72x8xbf16>
    %c0_16 = arith.constant 0 : index
    %c0_17 = arith.constant 0 : index
    %20 = vector.load %arg8[%c0_16, %c0_17] : memref<1x8xf32, #tpu.memory_space<vmem>>, vector<1x8xf32>
    %cst_18 = arith.constant 0.000000e+00 : f32
    %21 = vector.broadcast %cst_18 : f32 to vector<17x8xf32>
    %c0_19 = arith.constant 0 : index
    %c0_20 = arith.constant 0 : index
    %22 = vector.load %arg12[%c0_19, %c0_20] : memref<256x72xf32, #tpu.memory_space<vmem>>, vector<17x8xf32>
    tpu.vector_store %arg12[%c0_19, %c0_20], %21 {strides = array<i32>} : memref<256x72xf32, #tpu.memory_space<vmem>>, vector<17x8xf32>,
    %23 = vector.extract_strided_slice %18 {offsets = [0, 0], sizes = [239, 8], strides = [1, 1]} : vector<256x8xf32> to vector<239x8xf32>
    %24 = vector.extract_strided_slice %2 {offsets = [17, 0], sizes = [239, 1], strides = [1, 1]} : vector<256x1xi32> to vector<239x1xi32>
    %c-1_i32 = arith.constant -1 : i32
    %25 = vector.broadcast %c-1_i32 : i32 to vector<239x1xi32>
    %26 = arith.addi %24, %25 : vector<239x1xi32>
    %c0_i32 = arith.constant 0 : i32
    %27 = vector.broadcast %c0_i32 : i32 to vector<239x1xi32>
    %28 = arith.cmpi sge, %26, %27 : vector<239x1xi32>
    %c16_i32 = arith.constant 16 : i32
    %29 = vector.broadcast %c16_i32 : i32 to vector<239x1xi32>
    %30 = arith.cmpi slt, %26, %29 : vector<239x1xi32>
    %31 = arith.andi %28, %30 : vector<239x1xi1>
    %cst_21 = arith.constant 0.000000e+00 : f32
    %32 = vector.shape_cast %31 : vector<239x1xi1> to vector<239x1xi1>
    %33 = vector.broadcast %32 : vector<239x1xi1> to vector<239x8xi1>
    %34 = vector.broadcast %cst_21 : f32 to vector<239x8xf32>
    %35 = arith.select %33, %23, %34 : vector<239x8xi1>, vector<239x8xf32>
    %c17 = arith.constant 17 : index
    %c0_22 = arith.constant 0 : index
    %36 = vector.load %arg12[%c17, %c0_22] : memref<256x72xf32, #tpu.memory_space<vmem>>, vector<239x8xf32>
    tpu.vector_store %arg12[%c17, %c0_22], %35 {strides = array<i32>} : memref<256x72xf32, #tpu.memory_space<vmem>>, vector<239x8xf32>,
    %cst_23 = arith.constant 0.000000e+00 : f32
    %37 = vector.broadcast %cst_23 : f32 to vector<16x8xf32>
    %c0_24 = arith.constant 0 : index
    %c8 = arith.constant 8 : index
    %38 = vector.load %arg12[%c0_24, %c8] : memref<256x72xf32, #tpu.memory_space<vmem>>, vector<16x8xf32>
    tpu.vector_store %arg12[%c0_24, %c8], %37 {strides = array<i32>} : memref<256x72xf32, #tpu.memory_space<vmem>>, vector<16x8xf32>,
    %39 = vector.extract_strided_slice %18 {offsets = [0, 0], sizes = [240, 8], strides = [1, 1]} : vector<256x8xf32> to vector<240x8xf32>
    %c16 = arith.constant 16 : index
    %c8_25 = arith.constant 8 : index
    %40 = vector.load %arg12[%c16, %c8_25] : memref<256x72xf32, #tpu.memory_space<vmem>>, vector<240x8xf32>
    tpu.vector_store %arg12[%c16, %c8_25], %39 {strides = array<i32>} : memref<256x72xf32, #tpu.memory_space<vmem>>, vector<240x8xf32>,
    %cst_26 = arith.constant 0.000000e+00 : f32
    %41 = vector.broadcast %cst_26 : f32 to vector<15x8xf32>
    %c0_27 = arith.constant 0 : index
    %c16_28 = arith.constant 16 : index
    %42 = vector.load %arg12[%c0_27, %c16_28] : memref<256x72xf32, #tpu.memory_space<vmem>>, vector<15x8xf32>
    tpu.vector_store %arg12[%c0_27, %c16_28], %41 {strides = array<i32>} : memref<256x72xf32, #tpu.memory_space<vmem>>, vector<15x8xf32>,
    %43 = vector.extract_strided_slice %18 {offsets = [0, 0], sizes = [241, 8], strides = [1, 1]} : vector<256x8xf32> to vector<241x8xf32>
    %44 = vector.extract_strided_slice %2 {offsets = [15, 0], sizes = [241, 1], strides = [1, 1]} : vector<256x1xi32> to vector<241x1xi32>
    %c1_i32 = arith.constant 1 : i32
    %45 = vector.broadcast %c1_i32 : i32 to vector<241x1xi32>
    %46 = arith.addi %44, %45 : vector<241x1xi32>
    %c0_i32_29 = arith.constant 0 : i32
    %47 = vector.broadcast %c0_i32_29 : i32 to vector<241x1xi32>
    %48 = arith.cmpi sge, %46, %47 : vector<241x1xi32>
    %c16_i32_30 = arith.constant 16 : i32
    %49 = vector.broadcast %c16_i32_30 : i32 to vector<241x1xi32>
    %50 = arith.cmpi slt, %46, %49 : vector<241x1xi32>
    %51 = arith.andi %48, %50 : vector<241x1xi1>
    %cst_31 = arith.constant 0.000000e+00 : f32
    %52 = vector.shape_cast %51 : vector<241x1xi1> to vector<241x1xi1>
    %53 = vector.broadcast %52 : vector<241x1xi1> to vector<241x8xi1>
    %54 = vector.broadcast %cst_31 : f32 to vector<241x8xf32>
    %55 = arith.select %53, %43, %54 : vector<241x8xi1>, vector<241x8xf32>
    %c15 = arith.constant 15 : index
    %c16_32 = arith.constant 16 : index
    %56 = vector.load %arg12[%c15, %c16_32] : memref<256x72xf32, #tpu.memory_space<vmem>>, vector<241x8xf32>
    tpu.vector_store %arg12[%c15, %c16_32], %55 {strides = array<i32>} : memref<256x72xf32, #tpu.memory_space<vmem>>, vector<241x8xf32>,
    %cst_33 = arith.constant 0.000000e+00 : f32
    %57 = vector.broadcast %cst_33 : f32 to vector<1x8xf32>
    %c0_34 = arith.constant 0 : index
    %c24 = arith.constant 24 : index
    %58 = vector.load %arg12[%c0_34, %c24] : memref<256x72xf32, #tpu.memory_space<vmem>>, vector<1x8xf32>
    tpu.vector_store %arg12[%c0_34, %c24], %57 {strides = array<i32>} : memref<256x72xf32, #tpu.memory_space<vmem>>, vector<1x8xf32>,
    %59 = vector.extract_strided_slice %18 {offsets = [0, 0], sizes = [255, 8], strides = [1, 1]} : vector<256x8xf32> to vector<255x8xf32>
    %60 = vector.extract_strided_slice %2 {offsets = [1, 0], sizes = [255, 1], strides = [1, 1]} : vector<256x1xi32> to vector<255x1xi32>
    %c-1_i32_35 = arith.constant -1 : i32
    %61 = vector.broadcast %c-1_i32_35 : i32 to vector<255x1xi32>
    %62 = arith.addi %60, %61 : vector<255x1xi32>
    %c0_i32_36 = arith.constant 0 : i32
    %63 = vector.broadcast %c0_i32_36 : i32 to vector<255x1xi32>
    %64 = arith.cmpi sge, %62, %63 : vector<255x1xi32>
    %c16_i32_37 = arith.constant 16 : i32
    %65 = vector.broadcast %c16_i32_37 : i32 to vector<255x1xi32>
    %66 = arith.cmpi slt, %62, %65 : vector<255x1xi32>
    %67 = arith.andi %64, %66 : vector<255x1xi1>
    %cst_38 = arith.constant 0.000000e+00 : f32
    %68 = vector.shape_cast %67 : vector<255x1xi1> to vector<255x1xi1>
    %69 = vector.broadcast %68 : vector<255x1xi1> to vector<255x8xi1>
    %70 = vector.broadcast %cst_38 : f32 to vector<255x8xf32>
    %71 = arith.select %69, %59, %70 : vector<255x8xi1>, vector<255x8xf32>
    %c1 = arith.constant 1 : index
    %c24_39 = arith.constant 24 : index
    %72 = vector.load %arg12[%c1, %c24_39] : memref<256x72xf32, #tpu.memory_space<vmem>>, vector<255x8xf32>
    tpu.vector_store %arg12[%c1, %c24_39], %71 {strides = array<i32>} : memref<256x72xf32, #tpu.memory_space<vmem>>, vector<255x8xf32>,
    %c0_40 = arith.constant 0 : index
    %c32 = arith.constant 32 : index
    %73 = vector.load %arg12[%c0_40, %c32] : memref<256x72xf32, #tpu.memory_space<vmem>>, vector<256x8xf32>
    tpu.vector_store %arg12[%c0_40, %c32], %18 {strides = array<i32>} : memref<256x72xf32, #tpu.memory_space<vmem>>, vector<256x8xf32>,
    %cst_41 = arith.constant 0.000000e+00 : f32
    %74 = vector.broadcast %cst_41 : f32 to vector<1x8xf32>
    %c255 = arith.constant 255 : index
    %c40 = arith.constant 40 : index
    %75 = vector.load %arg12[%c255, %c40] : memref<256x72xf32, #tpu.memory_space<vmem>>, vector<1x8xf32>
    tpu.vector_store %arg12[%c255, %c40], %74 {strides = array<i32>} : memref<256x72xf32, #tpu.memory_space<vmem>>, vector<1x8xf32>,
    %76 = vector.extract_strided_slice %18 {offsets = [1, 0], sizes = [255, 8], strides = [1, 1]} : vector<256x8xf32> to vector<255x8xf32>
    %77 = vector.extract_strided_slice %2 {offsets = [0, 0], sizes = [255, 1], strides = [1, 1]} : vector<256x1xi32> to vector<255x1xi32>
    %c1_i32_42 = arith.constant 1 : i32
    %78 = vector.broadcast %c1_i32_42 : i32 to vector<255x1xi32>
    %79 = arith.addi %77, %78 : vector<255x1xi32>
    %c0_i32_43 = arith.constant 0 : i32
    %80 = vector.broadcast %c0_i32_43 : i32 to vector<255x1xi32>
    %81 = arith.cmpi sge, %79, %80 : vector<255x1xi32>
    %c16_i32_44 = arith.constant 16 : i32
    %82 = vector.broadcast %c16_i32_44 : i32 to vector<255x1xi32>
    %83 = arith.cmpi slt, %79, %82 : vector<255x1xi32>
    %84 = arith.andi %81, %83 : vector<255x1xi1>
    %cst_45 = arith.constant 0.000000e+00 : f32
    %85 = vector.shape_cast %84 : vector<255x1xi1> to vector<255x1xi1>
    %86 = vector.broadcast %85 : vector<255x1xi1> to vector<255x8xi1>
    %87 = vector.broadcast %cst_45 : f32 to vector<255x8xf32>
    %88 = arith.select %86, %76, %87 : vector<255x8xi1>, vector<255x8xf32>
    %c0_46 = arith.constant 0 : index
    %c40_47 = arith.constant 40 : index
    %89 = vector.load %arg12[%c0_46, %c40_47] : memref<256x72xf32, #tpu.memory_space<vmem>>, vector<255x8xf32>
    tpu.vector_store %arg12[%c0_46, %c40_47], %88 {strides = array<i32>} : memref<256x72xf32, #tpu.memory_space<vmem>>, vector<255x8xf32>,
    %cst_48 = arith.constant 0.000000e+00 : f32
    %90 = vector.broadcast %cst_48 : f32 to vector<15x8xf32>
    %c241 = arith.constant 241 : index
    %c48 = arith.constant 48 : index
    %91 = vector.load %arg12[%c241, %c48] : memref<256x72xf32, #tpu.memory_space<vmem>>, vector<15x8xf32>
    tpu.vector_store %arg12[%c241, %c48], %90 {strides = array<i32>} : memref<256x72xf32, #tpu.memory_space<vmem>>, vector<15x8xf32>,
    %92 = vector.extract_strided_slice %18 {offsets = [15, 0], sizes = [241, 8], strides = [1, 1]} : vector<256x8xf32> to vector<241x8xf32>
    %93 = vector.extract_strided_slice %2 {offsets = [0, 0], sizes = [241, 1], strides = [1, 1]} : vector<256x1xi32> to vector<241x1xi32>
    %c-1_i32_49 = arith.constant -1 : i32
    %94 = vector.broadcast %c-1_i32_49 : i32 to vector<241x1xi32>
    %95 = arith.addi %93, %94 : vector<241x1xi32>
    %c0_i32_50 = arith.constant 0 : i32
    %96 = vector.broadcast %c0_i32_50 : i32 to vector<241x1xi32>
    %97 = arith.cmpi sge, %95, %96 : vector<241x1xi32>
    %c16_i32_51 = arith.constant 16 : i32
    %98 = vector.broadcast %c16_i32_51 : i32 to vector<241x1xi32>
    %99 = arith.cmpi slt, %95, %98 : vector<241x1xi32>
    %100 = arith.andi %97, %99 : vector<241x1xi1>
    %cst_52 = arith.constant 0.000000e+00 : f32
    %101 = vector.shape_cast %100 : vector<241x1xi1> to vector<241x1xi1>
    %102 = vector.broadcast %101 : vector<241x1xi1> to vector<241x8xi1>
    %103 = vector.broadcast %cst_52 : f32 to vector<241x8xf32>
    %104 = arith.select %102, %92, %103 : vector<241x8xi1>, vector<241x8xf32>
    %c0_53 = arith.constant 0 : index
    %c48_54 = arith.constant 48 : index
    %105 = vector.load %arg12[%c0_53, %c48_54] : memref<256x72xf32, #tpu.memory_space<vmem>>, vector<241x8xf32>
    tpu.vector_store %arg12[%c0_53, %c48_54], %104 {strides = array<i32>} : memref<256x72xf32, #tpu.memory_space<vmem>>, vector<241x8xf32>,
    %cst_55 = arith.constant 0.000000e+00 : f32
    %106 = vector.broadcast %cst_55 : f32 to vector<16x8xf32>
    %c240 = arith.constant 240 : index
    %c56 = arith.constant 56 : index
    %107 = vector.load %arg12[%c240, %c56] : memref<256x72xf32, #tpu.memory_space<vmem>>, vector<16x8xf32>
    tpu.vector_store %arg12[%c240, %c56], %106 {strides = array<i32>} : memref<256x72xf32, #tpu.memory_space<vmem>>, vector<16x8xf32>,
    %108 = vector.extract_strided_slice %18 {offsets = [16, 0], sizes = [240, 8], strides = [1, 1]} : vector<256x8xf32> to vector<240x8xf32>
    %c0_56 = arith.constant 0 : index
    %c56_57 = arith.constant 56 : index
    %109 = vector.load %arg12[%c0_56, %c56_57] : memref<256x72xf32, #tpu.memory_space<vmem>>, vector<240x8xf32>
    tpu.vector_store %arg12[%c0_56, %c56_57], %108 {strides = array<i32>} : memref<256x72xf32, #tpu.memory_space<vmem>>, vector<240x8xf32>,
    %cst_58 = arith.constant 0.000000e+00 : f32
    %110 = vector.broadcast %cst_58 : f32 to vector<17x8xf32>
    %c239 = arith.constant 239 : index
    %c64 = arith.constant 64 : index
    %111 = vector.load %arg12[%c239, %c64] : memref<256x72xf32, #tpu.memory_space<vmem>>, vector<17x8xf32>
    tpu.vector_store %arg12[%c239, %c64], %110 {strides = array<i32>} : memref<256x72xf32, #tpu.memory_space<vmem>>, vector<17x8xf32>,
    %112 = vector.extract_strided_slice %18 {offsets = [17, 0], sizes = [239, 8], strides = [1, 1]} : vector<256x8xf32> to vector<239x8xf32>
    %113 = vector.extract_strided_slice %2 {offsets = [0, 0], sizes = [239, 1], strides = [1, 1]} : vector<256x1xi32> to vector<239x1xi32>
    %c1_i32_59 = arith.constant 1 : i32
    %114 = vector.broadcast %c1_i32_59 : i32 to vector<239x1xi32>
    %115 = arith.addi %113, %114 : vector<239x1xi32>
    %c0_i32_60 = arith.constant 0 : i32
    %116 = vector.broadcast %c0_i32_60 : i32 to vector<239x1xi32>
    %117 = arith.cmpi sge, %115, %116 : vector<239x1xi32>
    %c16_i32_61 = arith.constant 16 : i32
    %118 = vector.broadcast %c16_i32_61 : i32 to vector<239x1xi32>
    %119 = arith.cmpi slt, %115, %118 : vector<239x1xi32>
    %120 = arith.andi %117, %119 : vector<239x1xi1>
    %cst_62 = arith.constant 0.000000e+00 : f32
    %121 = vector.shape_cast %120 : vector<239x1xi1> to vector<239x1xi1>
    %122 = vector.broadcast %121 : vector<239x1xi1> to vector<239x8xi1>
    %123 = vector.broadcast %cst_62 : f32 to vector<239x8xf32>
    %124 = arith.select %122, %112, %123 : vector<239x8xi1>, vector<239x8xf32>
    %c0_63 = arith.constant 0 : index
    %c64_64 = arith.constant 64 : index
    %125 = vector.load %arg12[%c0_63, %c64_64] : memref<256x72xf32, #tpu.memory_space<vmem>>, vector<239x8xf32>
    tpu.vector_store %arg12[%c0_63, %c64_64], %124 {strides = array<i32>} : memref<256x72xf32, #tpu.memory_space<vmem>>, vector<239x8xf32>,
    %c0_65 = arith.constant 0 : index
    %c0_66 = arith.constant 0 : index
    %126 = vector.load %arg12[%c0_65, %c0_66] : memref<256x72xf32, #tpu.memory_space<vmem>>, vector<256x72xf32>
    %127 = arith.truncf %126 : vector<256x72xf32> to vector<256x72xbf16>
    %cst_67 = arith.constant dense<0.000000e+00> : vector<256x8xf32>
    %128 = tpu.matmul %127, %19, %cst_67 {dimension_numbers = #tpu.dot_dimension_numbers<[1], [0], [0], [1], [0, 0, 1, 1], [], []>} : vector<256x72xbf16>, vector<72x8xbf16>, vector<256x8xf32> -> vector<256x8xf32>
    %129 = vector.broadcast %20 : vector<1x8xf32> to vector<256x8xf32>
    %130 = arith.addf %128, %129 : vector<256x8xf32>
    %cst_68 = arith.constant 0.000000e+00 : f32
    %131 = vector.broadcast %cst_68 : f32 to vector<256x8xf32>
    %132 = arith.maximumf %130, %131 : vector<256x8xf32>
    %c0_69 = arith.constant 0 : index
    %c0_70 = arith.constant 0 : index
    %133 = vector.load %arg9[%c0_69, %c0_70] : memref<72x8xbf16, #tpu.memory_space<vmem>>, vector<72x8xbf16>
    %c0_71 = arith.constant 0 : index
    %c0_72 = arith.constant 0 : index
    %134 = vector.load %arg10[%c0_71, %c0_72] : memref<1x8xf32, #tpu.memory_space<vmem>>, vector<1x8xf32>
    %cst_73 = arith.constant 0.000000e+00 : f32
    %135 = vector.broadcast %cst_73 : f32 to vector<34x8xf32>
    %c0_74 = arith.constant 0 : index
    %c0_75 = arith.constant 0 : index
    %136 = vector.load %arg12[%c0_74, %c0_75] : memref<256x72xf32, #tpu.memory_space<vmem>>, vector<34x8xf32>
    tpu.vector_store %arg12[%c0_74, %c0_75], %135 {strides = array<i32>} : memref<256x72xf32, #tpu.memory_space<vmem>>, vector<34x8xf32>,
    %137 = vector.extract_strided_slice %132 {offsets = [0, 0], sizes = [222, 8], strides = [1, 1]} : vector<256x8xf32> to vector<222x8xf32>
    %138 = vector.extract_strided_slice %2 {offsets = [34, 0], sizes = [222, 1], strides = [1, 1]} : vector<256x1xi32> to vector<222x1xi32>
    %c-2_i32 = arith.constant -2 : i32
    %139 = vector.broadcast %c-2_i32 : i32 to vector<222x1xi32>
    %140 = arith.addi %138, %139 : vector<222x1xi32>
    %c0_i32_76 = arith.constant 0 : i32
    %141 = vector.broadcast %c0_i32_76 : i32 to vector<222x1xi32>
    %142 = arith.cmpi sge, %140, %141 : vector<222x1xi32>
    %c16_i32_77 = arith.constant 16 : i32
    %143 = vector.broadcast %c16_i32_77 : i32 to vector<222x1xi32>
    %144 = arith.cmpi slt, %140, %143 : vector<222x1xi32>
    %145 = arith.andi %142, %144 : vector<222x1xi1>
    %cst_78 = arith.constant 0.000000e+00 : f32
    %146 = vector.shape_cast %145 : vector<222x1xi1> to vector<222x1xi1>
    %147 = vector.broadcast %146 : vector<222x1xi1> to vector<222x8xi1>
    %148 = vector.broadcast %cst_78 : f32 to vector<222x8xf32>
    %149 = arith.select %147, %137, %148 : vector<222x8xi1>, vector<222x8xf32>
    %c34 = arith.constant 34 : index
    %c0_79 = arith.constant 0 : index
    %150 = vector.load %arg12[%c34, %c0_79] : memref<256x72xf32, #tpu.memory_space<vmem>>, vector<222x8xf32>
    tpu.vector_store %arg12[%c34, %c0_79], %149 {strides = array<i32>} : memref<256x72xf32, #tpu.memory_space<vmem>>, vector<222x8xf32>,
    %cst_80 = arith.constant 0.000000e+00 : f32
    %151 = vector.broadcast %cst_80 : f32 to vector<32x8xf32>
    %c0_81 = arith.constant 0 : index
    %c8_82 = arith.constant 8 : index
    %152 = vector.load %arg12[%c0_81, %c8_82] : memref<256x72xf32, #tpu.memory_space<vmem>>, vector<32x8xf32>
    tpu.vector_store %arg12[%c0_81, %c8_82], %151 {strides = array<i32>} : memref<256x72xf32, #tpu.memory_space<vmem>>, vector<32x8xf32>,
    %153 = vector.extract_strided_slice %132 {offsets = [0, 0], sizes = [224, 8], strides = [1, 1]} : vector<256x8xf32> to vector<224x8xf32>
    %c32_83 = arith.constant 32 : index
    %c8_84 = arith.constant 8 : index
    %154 = vector.load %arg12[%c32_83, %c8_84] : memref<256x72xf32, #tpu.memory_space<vmem>>, vector<224x8xf32>
    tpu.vector_store %arg12[%c32_83, %c8_84], %153 {strides = array<i32>} : memref<256x72xf32, #tpu.memory_space<vmem>>, vector<224x8xf32>,
    %cst_85 = arith.constant 0.000000e+00 : f32
    %155 = vector.broadcast %cst_85 : f32 to vector<30x8xf32>
    %c0_86 = arith.constant 0 : index
    %c16_87 = arith.constant 16 : index
    %156 = vector.load %arg12[%c0_86, %c16_87] : memref<256x72xf32, #tpu.memory_space<vmem>>, vector<30x8xf32>
    tpu.vector_store %arg12[%c0_86, %c16_87], %155 {strides = array<i32>} : memref<256x72xf32, #tpu.memory_space<vmem>>, vector<30x8xf32>,
    %157 = vector.extract_strided_slice %132 {offsets = [0, 0], sizes = [226, 8], strides = [1, 1]} : vector<256x8xf32> to vector<226x8xf32>
    %158 = vector.extract_strided_slice %2 {offsets = [30, 0], sizes = [226, 1], strides = [1, 1]} : vector<256x1xi32> to vector<226x1xi32>
    %c2_i32 = arith.constant 2 : i32
    %159 = vector.broadcast %c2_i32 : i32 to vector<226x1xi32>
    %160 = arith.addi %158, %159 : vector<226x1xi32>
    %c0_i32_88 = arith.constant 0 : i32
    %161 = vector.broadcast %c0_i32_88 : i32 to vector<226x1xi32>
    %162 = arith.cmpi sge, %160, %161 : vector<226x1xi32>
    %c16_i32_89 = arith.constant 16 : i32
    %163 = vector.broadcast %c16_i32_89 : i32 to vector<226x1xi32>
    %164 = arith.cmpi slt, %160, %163 : vector<226x1xi32>
    %165 = arith.andi %162, %164 : vector<226x1xi1>
    %cst_90 = arith.constant 0.000000e+00 : f32
    %166 = vector.shape_cast %165 : vector<226x1xi1> to vector<226x1xi1>
    %167 = vector.broadcast %166 : vector<226x1xi1> to vector<226x8xi1>
    %168 = vector.broadcast %cst_90 : f32 to vector<226x8xf32>
    %169 = arith.select %167, %157, %168 : vector<226x8xi1>, vector<226x8xf32>
    %c30 = arith.constant 30 : index
    %c16_91 = arith.constant 16 : index
    %170 = vector.load %arg12[%c30, %c16_91] : memref<256x72xf32, #tpu.memory_space<vmem>>, vector<226x8xf32>
    tpu.vector_store %arg12[%c30, %c16_91], %169 {strides = array<i32>} : memref<256x72xf32, #tpu.memory_space<vmem>>, vector<226x8xf32>,
    %cst_92 = arith.constant 0.000000e+00 : f32
    %171 = vector.broadcast %cst_92 : f32 to vector<2x8xf32>
    %c0_93 = arith.constant 0 : index
    %c24_94 = arith.constant 24 : index
    %172 = vector.load %arg12[%c0_93, %c24_94] : memref<256x72xf32, #tpu.memory_space<vmem>>, vector<2x8xf32>
    tpu.vector_store %arg12[%c0_93, %c24_94], %171 {strides = array<i32>} : memref<256x72xf32, #tpu.memory_space<vmem>>, vector<2x8xf32>,
    %173 = vector.extract_strided_slice %132 {offsets = [0, 0], sizes = [254, 8], strides = [1, 1]} : vector<256x8xf32> to vector<254x8xf32>
    %174 = vector.extract_strided_slice %2 {offsets = [2, 0], sizes = [254, 1], strides = [1, 1]} : vector<256x1xi32> to vector<254x1xi32>
    %c-2_i32_95 = arith.constant -2 : i32
    %175 = vector.broadcast %c-2_i32_95 : i32 to vector<254x1xi32>
    %176 = arith.addi %174, %175 : vector<254x1xi32>
    %c0_i32_96 = arith.constant 0 : i32
    %177 = vector.broadcast %c0_i32_96 : i32 to vector<254x1xi32>
    %178 = arith.cmpi sge, %176, %177 : vector<254x1xi32>
    %c16_i32_97 = arith.constant 16 : i32
    %179 = vector.broadcast %c16_i32_97 : i32 to vector<254x1xi32>
    %180 = arith.cmpi slt, %176, %179 : vector<254x1xi32>
    %181 = arith.andi %178, %180 : vector<254x1xi1>
    %cst_98 = arith.constant 0.000000e+00 : f32
    %182 = vector.shape_cast %181 : vector<254x1xi1> to vector<254x1xi1>
    %183 = vector.broadcast %182 : vector<254x1xi1> to vector<254x8xi1>
    %184 = vector.broadcast %cst_98 : f32 to vector<254x8xf32>
    %185 = arith.select %183, %173, %184 : vector<254x8xi1>, vector<254x8xf32>
    %c2 = arith.constant 2 : index
    %c24_99 = arith.constant 24 : index
    %186 = vector.load %arg12[%c2, %c24_99] : memref<256x72xf32, #tpu.memory_space<vmem>>, vector<254x8xf32>
    tpu.vector_store %arg12[%c2, %c24_99], %185 {strides = array<i32>} : memref<256x72xf32, #tpu.memory_space<vmem>>, vector<254x8xf32>,
    %c0_100 = arith.constant 0 : index
    %c32_101 = arith.constant 32 : index
    %187 = vector.load %arg12[%c0_100, %c32_101] : memref<256x72xf32, #tpu.memory_space<vmem>>, vector<256x8xf32>
    tpu.vector_store %arg12[%c0_100, %c32_101], %132 {strides = array<i32>} : memref<256x72xf32, #tpu.memory_space<vmem>>, vector<256x8xf32>,
    %cst_102 = arith.constant 0.000000e+00 : f32
    %188 = vector.broadcast %cst_102 : f32 to vector<2x8xf32>
    %c254 = arith.constant 254 : index
    %c40_103 = arith.constant 40 : index
    %189 = vector.load %arg12[%c254, %c40_103] : memref<256x72xf32, #tpu.memory_space<vmem>>, vector<2x8xf32>
    tpu.vector_store %arg12[%c254, %c40_103], %188 {strides = array<i32>} : memref<256x72xf32, #tpu.memory_space<vmem>>, vector<2x8xf32>,
    %190 = vector.extract_strided_slice %132 {offsets = [2, 0], sizes = [254, 8], strides = [1, 1]} : vector<256x8xf32> to vector<254x8xf32>
    %191 = vector.extract_strided_slice %2 {offsets = [0, 0], sizes = [254, 1], strides = [1, 1]} : vector<256x1xi32> to vector<254x1xi32>
    %c2_i32_104 = arith.constant 2 : i32
    %192 = vector.broadcast %c2_i32_104 : i32 to vector<254x1xi32>
    %193 = arith.addi %191, %192 : vector<254x1xi32>
    %c0_i32_105 = arith.constant 0 : i32
    %194 = vector.broadcast %c0_i32_105 : i32 to vector<254x1xi32>
    %195 = arith.cmpi sge, %193, %194 : vector<254x1xi32>
    %c16_i32_106 = arith.constant 16 : i32
    %196 = vector.broadcast %c16_i32_106 : i32 to vector<254x1xi32>
    %197 = arith.cmpi slt, %193, %196 : vector<254x1xi32>
    %198 = arith.andi %195, %197 : vector<254x1xi1>
    %cst_107 = arith.constant 0.000000e+00 : f32
    %199 = vector.shape_cast %198 : vector<254x1xi1> to vector<254x1xi1>
    %200 = vector.broadcast %199 : vector<254x1xi1> to vector<254x8xi1>
    %201 = vector.broadcast %cst_107 : f32 to vector<254x8xf32>
    %202 = arith.select %200, %190, %201 : vector<254x8xi1>, vector<254x8xf32>
    %c0_108 = arith.constant 0 : index
    %c40_109 = arith.constant 40 : index
    %203 = vector.load %arg12[%c0_108, %c40_109] : memref<256x72xf32, #tpu.memory_space<vmem>>, vector<254x8xf32>
    tpu.vector_store %arg12[%c0_108, %c40_109], %202 {strides = array<i32>} : memref<256x72xf32, #tpu.memory_space<vmem>>, vector<254x8xf32>,
    %cst_110 = arith.constant 0.000000e+00 : f32
    %204 = vector.broadcast %cst_110 : f32 to vector<30x8xf32>
    %c226 = arith.constant 226 : index
    %c48_111 = arith.constant 48 : index
    %205 = vector.load %arg12[%c226, %c48_111] : memref<256x72xf32, #tpu.memory_space<vmem>>, vector<30x8xf32>
    tpu.vector_store %arg12[%c226, %c48_111], %204 {strides = array<i32>} : memref<256x72xf32, #tpu.memory_space<vmem>>, vector<30x8xf32>,
    %206 = vector.extract_strided_slice %132 {offsets = [30, 0], sizes = [226, 8], strides = [1, 1]} : vector<256x8xf32> to vector<226x8xf32>
    %207 = vector.extract_strided_slice %2 {offsets = [0, 0], sizes = [226, 1], strides = [1, 1]} : vector<256x1xi32> to vector<226x1xi32>
    %c-2_i32_112 = arith.constant -2 : i32
    %208 = vector.broadcast %c-2_i32_112 : i32 to vector<226x1xi32>
    %209 = arith.addi %207, %208 : vector<226x1xi32>
    %c0_i32_113 = arith.constant 0 : i32
    %210 = vector.broadcast %c0_i32_113 : i32 to vector<226x1xi32>
    %211 = arith.cmpi sge, %209, %210 : vector<226x1xi32>
    %c16_i32_114 = arith.constant 16 : i32
    %212 = vector.broadcast %c16_i32_114 : i32 to vector<226x1xi32>
    %213 = arith.cmpi slt, %209, %212 : vector<226x1xi32>
    %214 = arith.andi %211, %213 : vector<226x1xi1>
    %cst_115 = arith.constant 0.000000e+00 : f32
    %215 = vector.shape_cast %214 : vector<226x1xi1> to vector<226x1xi1>
    %216 = vector.broadcast %215 : vector<226x1xi1> to vector<226x8xi1>
    %217 = vector.broadcast %cst_115 : f32 to vector<226x8xf32>
    %218 = arith.select %216, %206, %217 : vector<226x8xi1>, vector<226x8xf32>
    %c0_116 = arith.constant 0 : index
    %c48_117 = arith.constant 48 : index
    %219 = vector.load %arg12[%c0_116, %c48_117] : memref<256x72xf32, #tpu.memory_space<vmem>>, vector<226x8xf32>
    tpu.vector_store %arg12[%c0_116, %c48_117], %218 {strides = array<i32>} : memref<256x72xf32, #tpu.memory_space<vmem>>, vector<226x8xf32>,
    %cst_118 = arith.constant 0.000000e+00 : f32
    %220 = vector.broadcast %cst_118 : f32 to vector<32x8xf32>
    %c224 = arith.constant 224 : index
    %c56_119 = arith.constant 56 : index
    %221 = vector.load %arg12[%c224, %c56_119] : memref<256x72xf32, #tpu.memory_space<vmem>>, vector<32x8xf32>
    tpu.vector_store %arg12[%c224, %c56_119], %220 {strides = array<i32>} : memref<256x72xf32, #tpu.memory_space<vmem>>, vector<32x8xf32>,
    %222 = vector.extract_strided_slice %132 {offsets = [32, 0], sizes = [224, 8], strides = [1, 1]} : vector<256x8xf32> to vector<224x8xf32>
    %c0_120 = arith.constant 0 : index
    %c56_121 = arith.constant 56 : index
    %223 = vector.load %arg12[%c0_120, %c56_121] : memref<256x72xf32, #tpu.memory_space<vmem>>, vector<224x8xf32>
    tpu.vector_store %arg12[%c0_120, %c56_121], %222 {strides = array<i32>} : memref<256x72xf32, #tpu.memory_space<vmem>>, vector<224x8xf32>,
    %cst_122 = arith.constant 0.000000e+00 : f32
    %224 = vector.broadcast %cst_122 : f32 to vector<34x8xf32>
    %c222 = arith.constant 222 : index
    %c64_123 = arith.constant 64 : index
    %225 = vector.load %arg12[%c222, %c64_123] : memref<256x72xf32, #tpu.memory_space<vmem>>, vector<34x8xf32>
    tpu.vector_store %arg12[%c222, %c64_123], %224 {strides = array<i32>} : memref<256x72xf32, #tpu.memory_space<vmem>>, vector<34x8xf32>,
    %226 = vector.extract_strided_slice %132 {offsets = [34, 0], sizes = [222, 8], strides = [1, 1]} : vector<256x8xf32> to vector<222x8xf32>
    %227 = vector.extract_strided_slice %2 {offsets = [0, 0], sizes = [222, 1], strides = [1, 1]} : vector<256x1xi32> to vector<222x1xi32>
    %c2_i32_124 = arith.constant 2 : i32
    %228 = vector.broadcast %c2_i32_124 : i32 to vector<222x1xi32>
    %229 = arith.addi %227, %228 : vector<222x1xi32>
    %c0_i32_125 = arith.constant 0 : i32
    %230 = vector.broadcast %c0_i32_125 : i32 to vector<222x1xi32>
    %231 = arith.cmpi sge, %229, %230 : vector<222x1xi32>
    %c16_i32_126 = arith.constant 16 : i32
    %232 = vector.broadcast %c16_i32_126 : i32 to vector<222x1xi32>
    %233 = arith.cmpi slt, %229, %232 : vector<222x1xi32>
    %234 = arith.andi %231, %233 : vector<222x1xi1>
    %cst_127 = arith.constant 0.000000e+00 : f32
    %235 = vector.shape_cast %234 : vector<222x1xi1> to vector<222x1xi1>
    %236 = vector.broadcast %235 : vector<222x1xi1> to vector<222x8xi1>
    %237 = vector.broadcast %cst_127 : f32 to vector<222x8xf32>
    %238 = arith.select %236, %226, %237 : vector<222x8xi1>, vector<222x8xf32>
    %c0_128 = arith.constant 0 : index
    %c64_129 = arith.constant 64 : index
    %239 = vector.load %arg12[%c0_128, %c64_129] : memref<256x72xf32, #tpu.memory_space<vmem>>, vector<222x8xf32>
    tpu.vector_store %arg12[%c0_128, %c64_129], %238 {strides = array<i32>} : memref<256x72xf32, #tpu.memory_space<vmem>>, vector<222x8xf32>,
    %c0_130 = arith.constant 0 : index
    %c0_131 = arith.constant 0 : index
    %240 = vector.load %arg12[%c0_130, %c0_131] : memref<256x72xf32, #tpu.memory_space<vmem>>, vector<256x72xf32>
    %241 = arith.truncf %240 : vector<256x72xf32> to vector<256x72xbf16>
    %cst_132 = arith.constant dense<0.000000e+00> : vector<256x8xf32>
    %242 = tpu.matmul %241, %133, %cst_132 {dimension_numbers = #tpu.dot_dimension_numbers<[1], [0], [0], [1], [0, 0, 1, 1], [], []>} : vector<256x72xbf16>, vector<72x8xbf16>, vector<256x8xf32> -> vector<256x8xf32>
    %243 = vector.broadcast %134 : vector<1x8xf32> to vector<256x8xf32>
    %244 = arith.addf %242, %243 : vector<256x8xf32>
    %245 = arith.addf %244, %1 : vector<256x8xf32>
    %c0_133 = arith.constant 0 : index
    %c0_134 = arith.constant 0 : index
    %c0_135 = arith.constant 0 : index
    %246 = vector.load %arg11[%c0_133, %c0_134, %c0_135] : memref<1x256x8xf32, #tpu.memory_space<vmem>>, vector<1x256x8xf32>
    %247 = vector.shape_cast %246 : vector<1x256x8xf32> to vector<256x8xf32>
    %248 = vector.shape_cast %245 : vector<256x8xf32> to vector<1x256x8xf32>
    tpu.vector_store %arg11[%c0_133, %c0_134, %c0_135], %248 {strides = array<i32>} : memref<1x256x8xf32, #tpu.memory_space<vmem>>, vector<1x256x8xf32>,
    return
  }
  func.func @transform_0(%arg0: i32) -> (i32, i32, i32) {
    %c0_i32 = arith.constant 0 : i32
    %c0_i32_0 = arith.constant 0 : i32
    %c0_i32_1 = arith.constant 0 : i32
    return %arg0, %c0_i32, %c0_i32_0 : i32, i32, i32
  }
  func.func @transform_1(%arg0: i32) -> (i32, i32, i32) {
    %c0_i32 = arith.constant 0 : i32
    %c0_i32_0 = arith.constant 0 : i32
    %c0_i32_1 = arith.constant 0 : i32
    return %arg0, %c0_i32, %c0_i32_0 : i32, i32, i32
  }
  func.func @transform_2(%arg0: i32) -> (i32, i32, i32) {
    %c0_i32 = arith.constant 0 : i32
    %c0_i32_0 = arith.constant 0 : i32
    %c0_i32_1 = arith.constant 0 : i32
    return %arg0, %c0_i32, %c0_i32_0 : i32, i32, i32
  }
  func.func @transform_3(%arg0: i32) -> (i32, i32) {
    %c0_i32 = arith.constant 0 : i32
    %c0_i32_0 = arith.constant 0 : i32
    %c0_i32_1 = arith.constant 0 : i32
    return %c0_i32, %c0_i32_0 : i32, i32
  }
  func.func @transform_4(%arg0: i32) -> (i32, i32) {
    %c0_i32 = arith.constant 0 : i32
    %c0_i32_0 = arith.constant 0 : i32
    %c0_i32_1 = arith.constant 0 : i32
    return %c0_i32, %c0_i32_0 : i32, i32
  }
  func.func @transform_5(%arg0: i32) -> (i32, i32) {
    %c0_i32 = arith.constant 0 : i32
    %c0_i32_0 = arith.constant 0 : i32
    %c0_i32_1 = arith.constant 0 : i32
    return %c0_i32, %c0_i32_0 : i32, i32
  }
  func.func @transform_6(%arg0: i32) -> (i32, i32) {
    %c0_i32 = arith.constant 0 : i32
    %c0_i32_0 = arith.constant 0 : i32
    %c0_i32_1 = arith.constant 0 : i32
    return %c0_i32, %c0_i32_0 : i32, i32
  }
  func.func @transform_7(%arg0: i32) -> (i32, i32) {
    %c0_i32 = arith.constant 0 : i32
    %c0_i32_0 = arith.constant 0 : i32
    %c0_i32_1 = arith.constant 0 : i32
    return %c0_i32, %c0_i32_0 : i32, i32
  }
  func.func @transform_8(%arg0: i32) -> (i32, i32) {
    %c0_i32 = arith.constant 0 : i32
    %c0_i32_0 = arith.constant 0 : i32
    %c0_i32_1 = arith.constant 0 : i32
    return %c0_i32, %c0_i32_0 : i32, i32
  }
  func.func @transform_9(%arg0: i32) -> (i32, i32) {
    %c0_i32 = arith.constant 0 : i32
    %c0_i32_0 = arith.constant 0 : i32
    %c0_i32_1 = arith.constant 0 : i32
    return %c0_i32, %c0_i32_0 : i32, i32
  }
  func.func @transform_10(%arg0: i32) -> (i32, i32, i32) {
    %c0_i32 = arith.constant 0 : i32
    %c0_i32_0 = arith.constant 0 : i32
    %c0_i32_1 = arith.constant 0 : i32
    return %arg0, %c0_i32, %c0_i32_0 : i32, i32, i32
  }
}

</mosaic_0001>

<llo_original>
// kernel: resblock_forward.1
$region0: #{resblock_forward.1}
  #allocation0 [shape = 'u32[]', space=smem, size = 0x4, offset = 0x4, fixed_abs, tag = 'smem constant byte address 0x4 - core index']
  #allocation1 [shape = 'u32[144,128]{1,0:T(1,128)}', space=vmem, size = 0x12000, scoped, tag = 'internal scratch']
  #allocation2 [shape = 'f32[256,72]{1,0:T(8,128)}', space=vmem, size = 0x20000, scoped, tag = 'scratch operand']
  %s0 = inlined_call_operand.vmem [shape: f32[2,256,8], index: 0, kind: input, shape index: {}]
  %s1 = inlined_call_operand.vmem [shape: f32[2,1,8], index: 1, kind: input, shape index: {}]
  %s2 = inlined_call_operand.vmem [shape: f32[2,1,8], index: 2, kind: input, shape index: {}]
  %s3 = inlined_call_operand.vmem [shape: f32[1,8], index: 3, kind: input, shape index: {}]
  %s4 = inlined_call_operand.vmem [shape: f32[1,8], index: 4, kind: input, shape index: {}]
  %s5 = inlined_call_operand.vmem [shape: s32[256,1], index: 5, kind: input, shape index: {}]
  %s6 = inlined_call_operand.vmem [shape: bf16[72,8], index: 6, kind: input, shape index: {}]
  %s7 = inlined_call_operand.vmem [shape: f32[1,8], index: 7, kind: input, shape index: {}]
  %s8 = inlined_call_operand.vmem [shape: bf16[72,8], index: 8, kind: input, shape index: {}]
  %s9 = inlined_call_operand.vmem [shape: f32[1,8], index: 9, kind: input, shape index: {}]
  %s10 = inlined_call_operand.vmem [shape: f32[2,256,8], index: 10, kind: output, shape index: {}]
  %s11 = sld [smem:[#allocation0]]
  $region73: #{resblock_forward.1} parent=0
    _
  %s13 = ssub.s32 1, %s11
  %s14 = scalar_select 0, %s13, %s11
  loop: start=0, step=1, limit=4
  $region2: #{resblock_forward.1} parent=0 // loop_pre_header
    _
  $region3: #{resblock_forward.1} parent=0 // loop_header
    %s16 = sphi 0, %s20
    %p17 = scmp.ge.s32.totalorder %s16, 4
    %s26 = sphi 0, %s28
    %s29 = sphi 0, %s26
    %s30 = sphi 0, %s29
    %s46 = sphi 0, %s30
    %s52 = sphi 0, %s54
    %s55 = sphi 0, %s52
    %s56 = sphi 0, %s55
    %s72 = sphi 0, %s56
    %s78 = sphi 0, %s80
    %s81 = sphi 0, %s78
    %s82 = sphi 0, %s81
    %s98 = sphi 0, %s82
    %s102 = sphi 0, %s102
    %s104 = sphi 0, %s102
    %s105 = sphi 0, %s104
    %s119 = sphi 0, %s105
    %s123 = sphi 0, %s123
    %s125 = sphi 0, %s123
    %s126 = sphi 0, %s125
    %s140 = sphi 0, %s126
    %s144 = sphi 0, %s144
    %s146 = sphi 0, %s144
    %s147 = sphi 0, %s146
    %s161 = sphi 0, %s147
    %s165 = sphi 0, %s165
    %s167 = sphi 0, %s165
    %s168 = sphi 0, %s167
    %s182 = sphi 0, %s168
    %s186 = sphi 0, %s186
    %s188 = sphi 0, %s186
    %s189 = sphi 0, %s188
    %s203 = sphi 0, %s189
    %s207 = sphi 0, %s207
    %s209 = sphi 0, %s207
    %s210 = sphi 0, %s209
    %s224 = sphi 0, %s210
    %s228 = sphi 0, %s228
    %s230 = sphi 0, %s228
    %s231 = sphi 0, %s230
    %s245 = sphi 0, %s231
    %s251 = sphi 0, %s253
    %s254 = sphi 0, %s251
    %s255 = sphi 0, %s254
    %s271 = sphi 0, %s255
  $region4: #{resblock_forward.1} parent=0 // loop_header_branch
    %19 = sbr.rel (%p17) target = $region8
  $region5: #{resblock_forward.1} parent=0 // loop_body
    %s21 = ssub.s32 %s16, 1
    %s22 = ssub.s32 %s16, 2
    %s23 = sadd.s32 %s16, 1
    %s24 = ssub.s32 %s16, %s23
    %p25 = scmp.eq.s32.totalorder %s24, 0
    %s27 = sadd.s32 %s26, 1
    %s28 = scalar_select %p25, %s26, %s27
    %p31 = pneg %p25
    %p32 = scmp.eq.s32.totalorder %s16, 1
    %p33 = por %p31, %p32
    %p34 = scmp.ne.s32.totalorder %s26, %s29
    %p35 = scmp.eq.s32.totalorder %s16, 0
    %p36 = por %p34, %p35
    %p37 = scmp.ne.s32.totalorder %s26, %s29
    %p38 = scmp.eq.s32.totalorder %s21, 1
    %p39 = por %p37, %p38
    %p40 = scmp.ne.s32.totalorder %s29, %s30
    %p41 = scmp.eq.s32.totalorder %s21, 0
    %p42 = por %p40, %p41
    %p43 = scmp.ne.s32.totalorder %s29, %s30
    %p44 = scmp.eq.s32.totalorder %s22, 1
    %p45 = por %p43, %p44
    %p47 = scmp.ne.s32.totalorder %s30, %s46
    %p48 = scmp.eq.s32.totalorder %s22, 0
    %p49 = por %p47, %p48
    %s50 = ssub.s32 %s16, %s23
    %p51 = scmp.eq.s32.totalorder %s50, 0
    %s53 = sadd.s32 %s52, 1
    %s54 = scalar_select %p51, %s52, %s53
    %p57 = pneg %p51
    %p58 = scmp.eq.s32.totalorder %s16, 1
    %p59 = por %p57, %p58
    %p60 = scmp.ne.s32.totalorder %s52, %s55
    %p61 = scmp.eq.s32.totalorder %s16, 0
    %p62 = por %p60, %p61
    %p63 = scmp.ne.s32.totalorder %s52, %s55
    %p64 = scmp.eq.s32.totalorder %s21, 1
    %p65 = por %p63, %p64
    %p66 = scmp.ne.s32.totalorder %s55, %s56
    %p67 = scmp.eq.s32.totalorder %s21, 0
    %p68 = por %p66, %p67
    %p69 = scmp.ne.s32.totalorder %s55, %s56
    %p70 = scmp.eq.s32.totalorder %s22, 1
    %p71 = por %p69, %p70
    %p73 = scmp.ne.s32.totalorder %s56, %s72
    %p74 = scmp.eq.s32.totalorder %s22, 0
    %p75 = por %p73, %p74
    %s76 = ssub.s32 %s16, %s23
    %p77 = scmp.eq.s32.totalorder %s76, 0
    %s79 = sadd.s32 %s78, 1
    %s80 = scalar_select %p77, %s78, %s79
    %p83 = pneg %p77
    %p84 = scmp.eq.s32.totalorder %s16, 1
    %p85 = por %p83, %p84
    %p86 = scmp.ne.s32.totalorder %s78, %s81
    %p87 = scmp.eq.s32.totalorder %s16, 0
    %p88 = por %p86, %p87
    %p89 = scmp.ne.s32.totalorder %s78, %s81
    %p90 = scmp.eq.s32.totalorder %s21, 1
    %p91 = por %p89, %p90
    %p92 = scmp.ne.s32.totalorder %s81, %s82
    %p93 = scmp.eq.s32.totalorder %s21, 0
    %p94 = por %p92, %p93
    %p95 = scmp.ne.s32.totalorder %s81, %s82
    %p96 = scmp.eq.s32.totalorder %s22, 1
    %p97 = por %p95, %p96
    %p99 = scmp.ne.s32.totalorder %s82, %s98
    %p100 = scmp.eq.s32.totalorder %s22, 0
    %p101 = por %p99, %p100
    %s103 = sadd.s32 %s102, 1
    %p106 = scmp.eq.s32.totalorder %s16, 1
    %p107 = scmp.ne.s32.totalorder %s102, %s104
    %p108 = scmp.eq.s32.totalorder %s16, 0
    %p109 = por %p107, %p108
    %p110 = scmp.ne.s32.totalorder %s102, %s104
    %p111 = scmp.eq.s32.totalorder %s21, 1
    %p112 = por %p110, %p111
    %p113 = scmp.ne.s32.totalorder %s104, %s105
    %p114 = scmp.eq.s32.totalorder %s21, 0
    %p115 = por %p113, %p114
    %p116 = scmp.ne.s32.totalorder %s104, %s105
    %p117 = scmp.eq.s32.totalorder %s22, 1
    %p118 = por %p116, %p117
    %p120 = scmp.ne.s32.totalorder %s105, %s119
    %p121 = scmp.eq.s32.totalorder %s22, 0
    %p122 = por %p120, %p121
    %s124 = sadd.s32 %s123, 1
    %p127 = scmp.eq.s32.totalorder %s16, 1
    %p128 = scmp.ne.s32.totalorder %s123, %s125
    %p129 = scmp.eq.s32.totalorder %s16, 0
    %p130 = por %p128, %p129
    %p131 = scmp.ne.s32.totalorder %s123, %s125
    %p132 = scmp.eq.s32.totalorder %s21, 1
    %p133 = por %p131, %p132
    %p134 = scmp.ne.s32.totalorder %s125, %s126
    %p135 = scmp.eq.s32.totalorder %s21, 0
    %p136 = por %p134, %p135
    %p137 = scmp.ne.s32.totalorder %s125, %s126
    %p138 = scmp.eq.s32.totalorder %s22, 1
    %p139 = por %p137, %p138
    %p141 = scmp.ne.s32.totalorder %s126, %s140
    %p142 = scmp.eq.s32.totalorder %s22, 0
    %p143 = por %p141, %p142
    %s145 = sadd.s32 %s144, 1
    %p148 = scmp.eq.s32.totalorder %s16, 1
    %p149 = scmp.ne.s32.totalorder %s144, %s146
    %p150 = scmp.eq.s32.totalorder %s16, 0
    %p151 = por %p149, %p150
    %p152 = scmp.ne.s32.totalorder %s144, %s146
    %p153 = scmp.eq.s32.totalorder %s21, 1
    %p154 = por %p152, %p153
    %p155 = scmp.ne.s32.totalorder %s146, %s147
    %p156 = scmp.eq.s32.totalorder %s21, 0
    %p157 = por %p155, %p156
    %p158 = scmp.ne.s32.totalorder %s146, %s147
    %p159 = scmp.eq.s32.totalorder %s22, 1
    %p160 = por %p158, %p159
    %p162 = scmp.ne.s32.totalorder %s147, %s161
    %p163 = scmp.eq.s32.totalorder %s22, 0
    %p164 = por %p162, %p163
    %s166 = sadd.s32 %s165, 1
    %p169 = scmp.eq.s32.totalorder %s16, 1
    %p170 = scmp.ne.s32.totalorder %s165, %s167
    %p171 = scmp.eq.s32.totalorder %s16, 0
    %p172 = por %p170, %p171
    %p173 = scmp.ne.s32.totalorder %s165, %s167
    %p174 = scmp.eq.s32.totalorder %s21, 1
    %p175 = por %p173, %p174
    %p176 = scmp.ne.s32.totalorder %s167, %s168
    %p177 = scmp.eq.s32.totalorder %s21, 0
    %p178 = por %p176, %p177
    %p179 = scmp.ne.s32.totalorder %s167, %s168
    %p180 = scmp.eq.s32.totalorder %s22, 1
    %p181 = por %p179, %p180
    %p183 = scmp.ne.s32.totalorder %s168, %s182
    %p184 = scmp.eq.s32.totalorder %s22, 0
    %p185 = por %p183, %p184
    %s187 = sadd.s32 %s186, 1
    %p190 = scmp.eq.s32.totalorder %s16, 1
    %p191 = scmp.ne.s32.totalorder %s186, %s188
    %p192 = scmp.eq.s32.totalorder %s16, 0
    %p193 = por %p191, %p192
    %p194 = scmp.ne.s32.totalorder %s186, %s188
    %p195 = scmp.eq.s32.totalorder %s21, 1
    %p196 = por %p194, %p195
    %p197 = scmp.ne.s32.totalorder %s188, %s189
    %p198 = scmp.eq.s32.totalorder %s21, 0
    %p199 = por %p197, %p198
    %p200 = scmp.ne.s32.totalorder %s188, %s189
    %p201 = scmp.eq.s32.totalorder %s22, 1
    %p202 = por %p200, %p201
    %p204 = scmp.ne.s32.totalorder %s189, %s203
    %p205 = scmp.eq.s32.totalorder %s22, 0
    %p206 = por %p204, %p205
    %s208 = sadd.s32 %s207, 1
    %p211 = scmp.eq.s32.totalorder %s16, 1
    %p212 = scmp.ne.s32.totalorder %s207, %s209
    %p213 = scmp.eq.s32.totalorder %s16, 0
    %p214 = por %p212, %p213
    %p215 = scmp.ne.s32.totalorder %s207, %s209
    %p216 = scmp.eq.s32.totalorder %s21, 1
    %p217 = por %p215, %p216
    %p218 = scmp.ne.s32.totalorder %s209, %s210
    %p219 = scmp.eq.s32.totalorder %s21, 0
    %p220 = por %p218, %p219
    %p221 = scmp.ne.s32.totalorder %s209, %s210
    %p222 = scmp.eq.s32.totalorder %s22, 1
    %p223 = por %p221, %p222
    %p225 = scmp.ne.s32.totalorder %s210, %s224
    %p226 = scmp.eq.s32.totalorder %s22, 0
    %p227 = por %p225, %p226
    %s229 = sadd.s32 %s228, 1
    %p232 = scmp.eq.s32.totalorder %s16, 1
    %p233 = scmp.ne.s32.totalorder %s228, %s230
    %p234 = scmp.eq.s32.totalorder %s16, 0
    %p235 = por %p233, %p234
    %p236 = scmp.ne.s32.totalorder %s228, %s230
    %p237 = scmp.eq.s32.totalorder %s21, 1
    %p238 = por %p236, %p237
    %p239 = scmp.ne.s32.totalorder %s230, %s231
    %p240 = scmp.eq.s32.totalorder %s21, 0
    %p241 = por %p239, %p240
    %p242 = scmp.ne.s32.totalorder %s230, %s231
    %p243 = scmp.eq.s32.totalorder %s22, 1
    %p244 = por %p242, %p243
    %p246 = scmp.ne.s32.totalorder %s231, %s245
    %p247 = scmp.eq.s32.totalorder %s22, 0
    %p248 = por %p246, %p247
    %s249 = ssub.s32 %s16, %s23
    %p250 = scmp.eq.s32.totalorder %s249, 0
    %s252 = sadd.s32 %s251, 1
    %s253 = scalar_select %p250, %s251, %s252
    %p256 = pneg %p250
    %p257 = scmp.eq.s32.totalorder %s16, 1
    %p258 = por %p256, %p257
    %p259 = scmp.ne.s32.totalorder %s251, %s254
    %p260 = scmp.eq.s32.totalorder %s16, 0
    %p261 = por %p259, %p260
    %p262 = scmp.ne.s32.totalorder %s251, %s254
    %p263 = scmp.eq.s32.totalorder %s21, 1
    %p264 = por %p262, %p263
    %p265 = scmp.ne.s32.totalorder %s254, %s255
    %p266 = scmp.eq.s32.totalorder %s21, 0
    %p267 = por %p265, %p266
    %p268 = scmp.ne.s32.totalorder %s254, %s255
    %p269 = scmp.eq.s32.totalorder %s22, 1
    %p270 = por %p268, %p269
    %p272 = scmp.ne.s32.totalorder %s255, %s271
    %p273 = scmp.eq.s32.totalorder %s22, 0
    %p274 = por %p272, %p273
    %p275 = scmp.le.s32.totalorder 1, %s16
    %p276 = scmp.lt.s32.totalorder %s16, 3
    %p277 = pnand %p275, %p276
    %p278 = pneg %p277
    // Predicated region
    $region9: #{resblock_forward.1} parent=5 // pred_check
      _
    $region10: #{resblock_forward.1} parent=5 // pred_check_branch
      %280 = sbr.rel (%p277) target = $region12
    $region11: #{resblock_forward.1} parent=5 // pred_region
      %s281 = ssub.s32 %s16, 1
      // Predicated region
      $region13: #{resblock_forward.1} parent=11 // pred_check
        %p282 = pneg %p115
      $region14: #{resblock_forward.1} parent=11 // pred_check_branch
        %284 = sbr.rel (%p282) target = $region16
      $region15: #{resblock_forward.1} parent=11 // pred_region
        _
      $region16: #{resblock_forward.1} parent=11 // pred_fallthru
        _
      // Predicated region
      $region17: #{resblock_forward.1} parent=11 // pred_check
        %p285 = pneg %p136
      $region18: #{resblock_forward.1} parent=11 // pred_check_branch
        %287 = sbr.rel (%p285) target = $region20
      $region19: #{resblock_forward.1} parent=11 // pred_region
        _
      $region20: #{resblock_forward.1} parent=11 // pred_fallthru
        _
      // Predicated region
      $region21: #{resblock_forward.1} parent=11 // pred_check
        %p288 = pneg %p157
      $region22: #{resblock_forward.1} parent=11 // pred_check_branch
        %290 = sbr.rel (%p288) target = $region24
      $region23: #{resblock_forward.1} parent=11 // pred_region
        _
      $region24: #{resblock_forward.1} parent=11 // pred_fallthru
        _
      // Predicated region
      $region25: #{resblock_forward.1} parent=11 // pred_check
        %p291 = pneg %p178
      $region26: #{resblock_forward.1} parent=11 // pred_check_branch
        %293 = sbr.rel (%p291) target = $region28
      $region27: #{resblock_forward.1} parent=11 // pred_region
        _
      $region28: #{resblock_forward.1} parent=11 // pred_fallthru
        _
      // Predicated region
      $region29: #{resblock_forward.1} parent=11 // pred_check
        %p294 = pneg %p199
      $region30: #{resblock_forward.1} parent=11 // pred_check_branch
        %296 = sbr.rel (%p294) target = $region32
      $region31: #{resblock_forward.1} parent=11 // pred_region
        _
      $region32: #{resblock_forward.1} parent=11 // pred_fallthru
        _
      // Predicated region
      $region33: #{resblock_forward.1} parent=11 // pred_check
        %p297 = pneg %p220
      $region34: #{resblock_forward.1} parent=11 // pred_check_branch
        %299 = sbr.rel (%p297) target = $region36
      $region35: #{resblock_forward.1} parent=11 // pred_region
        _
      $region36: #{resblock_forward.1} parent=11 // pred_fallthru
        _
      // Predicated region
      $region37: #{resblock_forward.1} parent=11 // pred_check
        %p300 = pneg %p241
      $region38: #{resblock_forward.1} parent=11 // pred_check_branch
        %302 = sbr.rel (%p300) target = $region40
      $region39: #{resblock_forward.1} parent=11 // pred_region
        _
      $region40: #{resblock_forward.1} parent=11 // pred_fallthru
        _
    $region12: #{resblock_forward.1} parent=5 // pred_fallthru
      _
    %p303 = scmp.lt.s32.totalorder %s16, 2
    // Predicated region
    $region41: #{resblock_forward.1} parent=5 // pred_check
      %p304 = pneg %p303
    $region42: #{resblock_forward.1} parent=5 // pred_check_branch
      %306 = sbr.rel (%p304) target = $region44
    $region43: #{resblock_forward.1} parent=5 // pred_region
      // Predicated region
      $region45: #{resblock_forward.1} parent=43 // pred_check
        %p307 = pneg %p36
      $region46: #{resblock_forward.1} parent=43 // pred_check_branch
        %309 = sbr.rel (%p307) target = $region48
      $region47: #{resblock_forward.1} parent=43 // pred_region
        %p310 = scmp.lt.s32.totalorder %s16, 1
        %s311 = scalar_select %p310, %s16, 1
        %s312 = smul.addr %s311, 32
        %s313 = smul.addr %s312, 8
        %s314 = scalar_lea.vmem %s0, %s313
      $region48: #{resblock_forward.1} parent=43 // pred_fallthru
        _
      // Predicated region
      $region49: #{resblock_forward.1} parent=43 // pred_check
        %p315 = pneg %p62
      $region50: #{resblock_forward.1} parent=43 // pred_check_branch
        %317 = sbr.rel (%p315) target = $region52
      $region51: #{resblock_forward.1} parent=43 // pred_region
        %p318 = scmp.lt.s32.totalorder %s16, 1
        %s319 = scalar_select %p318, %s16, 1
        %s320 = scalar_lea.vmem %s1, %s319
      $region52: #{resblock_forward.1} parent=43 // pred_fallthru
        _
      // Predicated region
      $region53: #{resblock_forward.1} parent=43 // pred_check
        %p321 = pneg %p88
      $region54: #{resblock_forward.1} parent=43 // pred_check_branch
        %323 = sbr.rel (%p321) target = $region56
      $region55: #{resblock_forward.1} parent=43 // pred_region
        %p324 = scmp.lt.s32.totalorder %s16, 1
        %s325 = scalar_select %p324, %s16, 1
        %s326 = scalar_lea.vmem %s2, %s325
      $region56: #{resblock_forward.1} parent=43 // pred_fallthru
        _
    $region44: #{resblock_forward.1} parent=5 // pred_fallthru
      _
    %p327 = scmp.le.s32.totalorder 1, %s16
    %p328 = scmp.lt.s32.totalorder %s16, 3
    %p329 = pnand %p327, %p328
    %p330 = pneg %p329
    // Predicated region
    $region57: #{resblock_forward.1} parent=5 // pred_check
      _
    $region58: #{resblock_forward.1} parent=5 // pred_check_branch
      %332 = sbr.rel (%p329) target = $region60
    $region59: #{resblock_forward.1} parent=5 // pred_region
      %s333 = ssub.s32 %s16, 1
      %p334 = scmp.lt.s32.totalorder %s21, 1
      %s335 = scalar_select %p334, %s21, 1
      %s336 = smul.addr %s335, 32
      %s337 = smul.addr %s336, 8
      %s338 = scalar_lea.vmem %s0, %s337
      %p339 = pneg %p42
      %p340 = pneg %p39
      %p341 = scmp.lt.s32.totalorder %s21, 1
      %s342 = scalar_select %p341, %s21, 1
      %s343 = scalar_lea.vmem %s1, %s342
      %p344 = pneg %p68
      %p345 = pneg %p65
      %p346 = scmp.lt.s32.totalorder %s21, 1
      %s347 = scalar_select %p346, %s21, 1
      %s348 = scalar_lea.vmem %s2, %s347
      %p349 = pneg %p94
      %p350 = pneg %p91
      %p351 = pneg %p115
      %p352 = pneg %p112
      %p353 = pneg %p136
      %p354 = pneg %p133
      %p355 = pneg %p157
      %p356 = pneg %p154
      %p357 = pneg %p178
      %p358 = pneg %p175
      %p359 = pneg %p199
      %p360 = pneg %p196
      %p361 = pneg %p220
      %p362 = pneg %p217
      %p363 = pneg %p241
      %p364 = pneg %p238
      %p365 = pneg %p267
      %p366 = pneg %p264
      %p367 = scmp.lt.s32.totalorder %s21, 1
      %s368 = scalar_select %p367, %s21, 1
      %s369 = smul.addr %s368, 32
      %s370 = smul.addr %s369, 8
      %s371 = scalar_lea.vmem %s10, %s370
      %p372 = scmp.lt.s32.totalorder %s21, 1
      %s373 = scalar_select %p372, %s21, 1
      %s374 = smul.addr %s373, 32
      %s375 = smul.addr %s374, 8
      %s376 = scalar_lea.vmem %s0, %s375
      %p377 = scmp.lt.s32.totalorder %s21, 1
      %s378 = scalar_select %p377, %s21, 1
      %s379 = scalar_lea.vmem %s1, %s378
      %p380 = scmp.lt.s32.totalorder %s21, 1
      %s381 = scalar_select %p380, %s21, 1
      %s382 = scalar_lea.vmem %s2, %s381
      %p383 = scmp.lt.s32.totalorder %s21, 1
      %s384 = scalar_select %p383, %s21, 1
      %s385 = smul.addr %s384, 32
      %s386 = smul.addr %s385, 8
      %s387 = scalar_lea.vmem %s10, %s386
      %v389 = vld [vmem:[%s376] sm:$0xff]
      %v390 = vld [vmem:[%s376 + $0x8] sm:$0xff]
      %v391 = vld [vmem:[%s376 + $0x10] sm:$0xff]
      %v392 = vld [vmem:[%s376 + $0x18] sm:$0xff]
      %v393 = vld [vmem:[%s376 + $0x20] sm:$0xff]
      %v394 = vld [vmem:[%s376 + $0x28] sm:$0xff]
      %v395 = vld [vmem:[%s376 + $0x30] sm:$0xff]
      %v396 = vld [vmem:[%s376 + $0x38] sm:$0xff]
      %v397 = vld [vmem:[%s376 + $0x40] sm:$0xff]
      %v398 = vld [vmem:[%s376 + $0x48] sm:$0xff]
      %v399 = vld [vmem:[%s376 + $0x50] sm:$0xff]
      %v400 = vld [vmem:[%s376 + $0x58] sm:$0xff]
      %v401 = vld [vmem:[%s376 + $0x60] sm:$0xff]
      %v402 = vld [vmem:[%s376 + $0x68] sm:$0xff]
      %v403 = vld [vmem:[%s376 + $0x70] sm:$0xff]
      %v404 = vld [vmem:[%s376 + $0x78] sm:$0xff]
      %v405 = vld [vmem:[%s376 + $0x80] sm:$0xff]
      %v406 = vld [vmem:[%s376 + $0x88] sm:$0xff]
      %v407 = vld [vmem:[%s376 + $0x90] sm:$0xff]
      %v408 = vld [vmem:[%s376 + $0x98] sm:$0xff]
      %v409 = vld [vmem:[%s376 + $0xa0] sm:$0xff]
      %v410 = vld [vmem:[%s376 + $0xa8] sm:$0xff]
      %v411 = vld [vmem:[%s376 + $0xb0] sm:$0xff]
      %v412 = vld [vmem:[%s376 + $0xb8] sm:$0xff]
      %v413 = vld [vmem:[%s376 + $0xc0] sm:$0xff]
      %v414 = vld [vmem:[%s376 + $0xc8] sm:$0xff]
      %v415 = vld [vmem:[%s376 + $0xd0] sm:$0xff]
      %v416 = vld [vmem:[%s376 + $0xd8] sm:$0xff]
      %v417 = vld [vmem:[%s376 + $0xe0] sm:$0xff]
      %v418 = vld [vmem:[%s376 + $0xe8] sm:$0xff]
      %v419 = vld [vmem:[%s376 + $0xf0] sm:$0xff]
      %v420 = vld [vmem:[%s376 + $0xf8] sm:$0xff]
      %v421 = vld [vmem:[%s5] sm:$0xff]
      %v422 = vld [vmem:[%s5 + $0x8] sm:$0xff]
      %v423 = vld [vmem:[%s5 + $0x10] sm:$0xff]
      %v424 = vld [vmem:[%s5 + $0x18] sm:$0xff]
      %v425 = vld [vmem:[%s5 + $0x20] sm:$0xff]
      %v426 = vld [vmem:[%s5 + $0x28] sm:$0xff]
      %v427 = vld [vmem:[%s5 + $0x30] sm:$0xff]
      %v428 = vld [vmem:[%s5 + $0x38] sm:$0xff]
      %v429 = vld [vmem:[%s5 + $0x40] sm:$0xff]
      %v430 = vld [vmem:[%s5 + $0x48] sm:$0xff]
      %v431 = vld [vmem:[%s5 + $0x50] sm:$0xff]
      %v432 = vld [vmem:[%s5 + $0x58] sm:$0xff]
      %v433 = vld [vmem:[%s5 + $0x60] sm:$0xff]
      %v434 = vld [vmem:[%s5 + $0x68] sm:$0xff]
      %v435 = vld [vmem:[%s5 + $0x70] sm:$0xff]
      %v436 = vld [vmem:[%s5 + $0x78] sm:$0xff]
      %v437 = vld [vmem:[%s5 + $0x80] sm:$0xff]
      %v438 = vld [vmem:[%s5 + $0x88] sm:$0xff]
      %v439 = vld [vmem:[%s5 + $0x90] sm:$0xff]
      %v440 = vld [vmem:[%s5 + $0x98] sm:$0xff]
      %v441 = vld [vmem:[%s5 + $0xa0] sm:$0xff]
      %v442 = vld [vmem:[%s5 + $0xa8] sm:$0xff]
      %v443 = vld [vmem:[%s5 + $0xb0] sm:$0xff]
      %v444 = vld [vmem:[%s5 + $0xb8] sm:$0xff]
      %v445 = vld [vmem:[%s5 + $0xc0] sm:$0xff]
      %v446 = vld [vmem:[%s5 + $0xc8] sm:$0xff]
      %v447 = vld [vmem:[%s5 + $0xd0] sm:$0xff]
      %v448 = vld [vmem:[%s5 + $0xd8] sm:$0xff]
      %v449 = vld [vmem:[%s5 + $0xe0] sm:$0xff]
      %v450 = vld [vmem:[%s5 + $0xe8] sm:$0xff]
      %v451 = vld [vmem:[%s5 + $0xf0] sm:$0xff]
      %v452 = vld [vmem:[%s5 + $0xf8] sm:$0xff]
      %v453 = vld [vmem:[%s3] sm:$0x1]
      %v455 = vlaneseq
      %v456 = vshrl.u32 %v455, 7
      %v457 = vsub.s32 0, %v456
      %v458 = vrot.slane %v453, %v457
      %v460 = vsub.f32 %v389, %v458
      %v461 = vsub.f32 %v390, %v458
      %v462 = vsub.f32 %v391, %v458
      %v463 = vsub.f32 %v392, %v458
      %v464 = vsub.f32 %v393, %v458
      %v465 = vsub.f32 %v394, %v458
      %v466 = vsub.f32 %v395, %v458
      %v467 = vsub.f32 %v396, %v458
      %v468 = vsub.f32 %v397, %v458
      %v469 = vsub.f32 %v398, %v458
      %v470 = vsub.f32 %v399, %v458
      %v471 = vsub.f32 %v400, %v458
      %v472 = vsub.f32 %v401, %v458
      %v473 = vsub.f32 %v402, %v458
      %v474 = vsub.f32 %v403, %v458
      %v475 = vsub.f32 %v404, %v458
      %v476 = vsub.f32 %v405, %v458
      %v477 = vsub.f32 %v406, %v458
      %v478 = vsub.f32 %v407, %v458
      %v479 = vsub.f32 %v408, %v458
      %v480 = vsub.f32 %v409, %v458
      %v481 = vsub.f32 %v410, %v458
      %v482 = vsub.f32 %v411, %v458
      %v483 = vsub.f32 %v412, %v458
      %v484 = vsub.f32 %v413, %v458
      %v485 = vsub.f32 %v414, %v458
      %v486 = vsub.f32 %v415, %v458
      %v487 = vsub.f32 %v416, %v458
      %v488 = vsub.f32 %v417, %v458
      %v489 = vsub.f32 %v418, %v458
      %v490 = vsub.f32 %v419, %v458
      %v491 = vsub.f32 %v420, %v458
      %v492 = vld [vmem:[%s4] sm:$0x1]
      %v494 = vlaneseq
      %v495 = vshrl.u32 %v494, 7
      %v496 = vsub.s32 0, %v495
      %v497 = vrot.slane %v492, %v496
      %v499 = vmul.f32 %v460, %v497
      %v500 = vmul.f32 %v461, %v497
      %v501 = vmul.f32 %v462, %v497
      %v502 = vmul.f32 %v463, %v497
      %v503 = vmul.f32 %v464, %v497
      %v504 = vmul.f32 %v465, %v497
      %v505 = vmul.f32 %v466, %v497
      %v506 = vmul.f32 %v467, %v497
      %v507 = vmul.f32 %v468, %v497
      %v508 = vmul.f32 %v469, %v497
      %v509 = vmul.f32 %v470, %v497
      %v510 = vmul.f32 %v471, %v497
      %v511 = vmul.f32 %v472, %v497
      %v512 = vmul.f32 %v473, %v497
      %v513 = vmul.f32 %v474, %v497
      %v514 = vmul.f32 %v475, %v497
      %v515 = vmul.f32 %v476, %v497
      %v516 = vmul.f32 %v477, %v497
      %v517 = vmul.f32 %v478, %v497
      %v518 = vmul.f32 %v479, %v497
      %v519 = vmul.f32 %v480, %v497
      %v520 = vmul.f32 %v481, %v497
      %v521 = vmul.f32 %v482, %v497
      %v522 = vmul.f32 %v483, %v497
      %v523 = vmul.f32 %v484, %v497
      %v524 = vmul.f32 %v485, %v497
      %v525 = vmul.f32 %v486, %v497
      %v526 = vmul.f32 %v487, %v497
      %v527 = vmul.f32 %v488, %v497
      %v528 = vmul.f32 %v489, %v497
      %v529 = vmul.f32 %v490, %v497
      %v530 = vmul.f32 %v491, %v497
      %v531 = vld [vmem:[%s379] sm:$0x1]
      %v533 = vlaneseq
      %v534 = vshrl.u32 %v533, 7
      %v535 = vsub.s32 0, %v534
      %v536 = vrot.slane %v531, %v535
      %v538 = vmul.f32 %v536, %v499
      %v539 = vmul.f32 %v536, %v500
      %v540 = vmul.f32 %v536, %v501
      %v541 = vmul.f32 %v536, %v502
      %v542 = vmul.f32 %v536, %v503
      %v543 = vmul.f32 %v536, %v504
      %v544 = vmul.f32 %v536, %v505
      %v545 = vmul.f32 %v536, %v506
      %v546 = vmul.f32 %v536, %v507
      %v547 = vmul.f32 %v536, %v508
      %v548 = vmul.f32 %v536, %v509
      %v549 = vmul.f32 %v536, %v510
      %v550 = vmul.f32 %v536, %v511
      %v551 = vmul.f32 %v536, %v512
      %v552 = vmul.f32 %v536, %v513
      %v553 = vmul.f32 %v536, %v514
      %v554 = vmul.f32 %v536, %v515
      %v555 = vmul.f32 %v536, %v516
      %v556 = vmul.f32 %v536, %v517
      %v557 = vmul.f32 %v536, %v518
      %v558 = vmul.f32 %v536, %v519
      %v559 = vmul.f32 %v536, %v520
      %v560 = vmul.f32 %v536, %v521
      %v561 = vmul.f32 %v536, %v522
      %v562 = vmul.f32 %v536, %v523
      %v563 = vmul.f32 %v536, %v524
      %v564 = vmul.f32 %v536, %v525
      %v565 = vmul.f32 %v536, %v526
      %v566 = vmul.f32 %v536, %v527
      %v567 = vmul.f32 %v536, %v528
      %v568 = vmul.f32 %v536, %v529
      %v569 = vmul.f32 %v536, %v530
      %v570 = vld [vmem:[%s382] sm:$0x1]
      %v572 = vlaneseq
      %v573 = vshrl.u32 %v572, 7
      %v574 = vsub.s32 0, %v573
      %v575 = vrot.slane %v570, %v574
      %v577 = vadd.f32 %v538, %v575
      %v578 = vadd.f32 %v539, %v575
      %v579 = vadd.f32 %v540, %v575
      %v580 = vadd.f32 %v541, %v575
      %v581 = vadd.f32 %v542, %v575
      %v582 = vadd.f32 %v543, %v575
      %v583 = vadd.f32 %v544, %v575
      %v584 = vadd.f32 %v545, %v575
      %v585 = vadd.f32 %v546, %v575
      %v586 = vadd.f32 %v547, %v575
      %v587 = vadd.f32 %v548, %v575
      %v588 = vadd.f32 %v549, %v575
      %v589 = vadd.f32 %v550, %v575
      %v590 = vadd.f32 %v551, %v575
      %v591 = vadd.f32 %v552, %v575
      %v592 = vadd.f32 %v553, %v575
      %v593 = vadd.f32 %v554, %v575
      %v594 = vadd.f32 %v555, %v575
      %v595 = vadd.f32 %v556, %v575
      %v596 = vadd.f32 %v557, %v575
      %v597 = vadd.f32 %v558, %v575
      %v598 = vadd.f32 %v559, %v575
      %v599 = vadd.f32 %v560, %v575
      %v600 = vadd.f32 %v561, %v575
      %v601 = vadd.f32 %v562, %v575
      %v602 = vadd.f32 %v563, %v575
      %v603 = vadd.f32 %v564, %v575
      %v604 = vadd.f32 %v565, %v575
      %v605 = vadd.f32 %v566, %v575
      %v606 = vadd.f32 %v567, %v575
      %v607 = vadd.f32 %v568, %v575
      %v608 = vadd.f32 %v569, %v575
      %v609 = vmax.f32 %v577, 0.0
      %v610 = vmax.f32 %v578, 0.0
      %v611 = vmax.f32 %v579, 0.0
      %v612 = vmax.f32 %v580, 0.0
      %v613 = vmax.f32 %v581, 0.0
      %v614 = vmax.f32 %v582, 0.0
      %v615 = vmax.f32 %v583, 0.0
      %v616 = vmax.f32 %v584, 0.0
      %v617 = vmax.f32 %v585, 0.0
      %v618 = vmax.f32 %v586, 0.0
      %v619 = vmax.f32 %v587, 0.0
      %v620 = vmax.f32 %v588, 0.0
      %v621 = vmax.f32 %v589, 0.0
      %v622 = vmax.f32 %v590, 0.0
      %v623 = vmax.f32 %v591, 0.0
      %v624 = vmax.f32 %v592, 0.0
      %v625 = vmax.f32 %v593, 0.0
      %v626 = vmax.f32 %v594, 0.0
      %v627 = vmax.f32 %v595, 0.0
      %v628 = vmax.f32 %v596, 0.0
      %v629 = vmax.f32 %v597, 0.0
      %v630 = vmax.f32 %v598, 0.0
      %v631 = vmax.f32 %v599, 0.0
      %v632 = vmax.f32 %v600, 0.0
      %v633 = vmax.f32 %v601, 0.0
      %v634 = vmax.f32 %v602, 0.0
      %v635 = vmax.f32 %v603, 0.0
      %v636 = vmax.f32 %v604, 0.0
      %v637 = vmax.f32 %v605, 0.0
      %v638 = vmax.f32 %v606, 0.0
      %v639 = vmax.f32 %v607, 0.0
      %v640 = vmax.f32 %v608, 0.0
      %v641 = vld [vmem:[%s6] sm:$0xf]
      %v642 = vld [vmem:[%s6 + $0x4] sm:$0xf]
      %v643 = vld [vmem:[%s6 + $0x8] sm:$0xf]
      %v644 = vld [vmem:[%s6 + $0xc] sm:$0xf]
      %v645 = vld [vmem:[%s6 + $0x10] sm:$0xf]
      %v646 = vld [vmem:[%s6 + $0x14] sm:$0xf]
      %v647 = vld [vmem:[%s6 + $0x18] sm:$0xf]
      %v648 = vld [vmem:[%s6 + $0x1c] sm:$0xf]
      %v649 = vld [vmem:[%s6 + $0x20] sm:$0xf]
      %v650 = vld [vmem:[%s7] sm:$0x1]
      %vm651 = vcmask 64512
      %652 = vst.msk [vmem:[#allocation2] sm:$0xff] %vm651, 0.0
      %653 = vst.msk [vmem:[#allocation2 + $0x8] sm:$0xff] %vm651, 0.0
      %vm654 = vcmask 57344
      %655 = vst.msk [vmem:[#allocation2 + $0x10] sm:$0x1] %vm654, 0.0
      %v656 = vadd.s32 %v423, 4294967295
      %v657 = vadd.s32 %v424, 4294967295
      %v658 = vadd.s32 %v425, 4294967295
      %v659 = vadd.s32 %v426, 4294967295
      %v660 = vadd.s32 %v427, 4294967295
      %v661 = vadd.s32 %v428, 4294967295
      %v662 = vadd.s32 %v429, 4294967295
      %v663 = vadd.s32 %v430, 4294967295
      %v664 = vadd.s32 %v431, 4294967295
      %v665 = vadd.s32 %v432, 4294967295
      %v666 = vadd.s32 %v433, 4294967295
      %v667 = vadd.s32 %v434, 4294967295
      %v668 = vadd.s32 %v435, 4294967295
      %v669 = vadd.s32 %v436, 4294967295
      %v670 = vadd.s32 %v437, 4294967295
      %v671 = vadd.s32 %v438, 4294967295
      %v672 = vadd.s32 %v439, 4294967295
      %v673 = vadd.s32 %v440, 4294967295
      %v674 = vadd.s32 %v441, 4294967295
      %v675 = vadd.s32 %v442, 4294967295
      %v676 = vadd.s32 %v443, 4294967295
      %v677 = vadd.s32 %v444, 4294967295
      %v678 = vadd.s32 %v445, 4294967295
      %v679 = vadd.s32 %v446, 4294967295
      %v680 = vadd.s32 %v447, 4294967295
      %v681 = vadd.s32 %v448, 4294967295
      %v682 = vadd.s32 %v449, 4294967295
      %v683 = vadd.s32 %v450, 4294967295
      %v684 = vadd.s32 %v451, 4294967295
      %v685 = vadd.s32 %v452, 4294967295
      %vm686 = vcmp.ge.s32.totalorder %v656, 0
      %vm687 = vcmp.ge.s32.totalorder %v657, 0
      %vm688 = vcmp.ge.s32.totalorder %v658, 0
      %vm689 = vcmp.ge.s32.totalorder %v659, 0
      %vm690 = vcmp.ge.s32.totalorder %v660, 0
      %vm691 = vcmp.ge.s32.totalorder %v661, 0
      %vm692 = vcmp.ge.s32.totalorder %v662, 0
      %vm693 = vcmp.ge.s32.totalorder %v663, 0
      %vm694 = vcmp.ge.s32.totalorder %v664, 0
      %vm695 = vcmp.ge.s32.totalorder %v665, 0
      %vm696 = vcmp.ge.s32.totalorder %v666, 0
      %vm697 = vcmp.ge.s32.totalorder %v667, 0
      %vm698 = vcmp.ge.s32.totalorder %v668, 0
      %vm699 = vcmp.ge.s32.totalorder %v669, 0
      %vm700 = vcmp.ge.s32.totalorder %v670, 0
      %vm701 = vcmp.ge.s32.totalorder %v671, 0
      %vm702 = vcmp.ge.s32.totalorder %v672, 0
      %vm703 = vcmp.ge.s32.totalorder %v673, 0
      %vm704 = vcmp.ge.s32.totalorder %v674, 0
      %vm705 = vcmp.ge.s32.totalorder %v675, 0
      %vm706 = vcmp.ge.s32.totalorder %v676, 0
      %vm707 = vcmp.ge.s32.totalorder %v677, 0
      %vm708 = vcmp.ge.s32.totalorder %v678, 0
      %vm709 = vcmp.ge.s32.totalorder %v679, 0
      %vm710 = vcmp.ge.s32.totalorder %v680, 0
      %vm711 = vcmp.ge.s32.totalorder %v681, 0
      %vm712 = vcmp.ge.s32.totalorder %v682, 0
      %vm713 = vcmp.ge.s32.totalorder %v683, 0
      %vm714 = vcmp.ge.s32.totalorder %v684, 0
      %vm715 = vcmp.ge.s32.totalorder %v685, 0
      %vm716 = vcmp.lt.s32.totalorder %v656, 16
      %vm717 = vcmp.lt.s32.totalorder %v657, 16
      %vm718 = vcmp.lt.s32.totalorder %v658, 16
      %vm719 = vcmp.lt.s32.totalorder %v659, 16
      %vm720 = vcmp.lt.s32.totalorder %v660, 16
      %vm721 = vcmp.lt.s32.totalorder %v661, 16
      %vm722 = vcmp.lt.s32.totalorder %v662, 16
      %vm723 = vcmp.lt.s32.totalorder %v663, 16
      %vm724 = vcmp.lt.s32.totalorder %v664, 16
      %vm725 = vcmp.lt.s32.totalorder %v665, 16
      %vm726 = vcmp.lt.s32.totalorder %v666, 16
      %vm727 = vcmp.lt.s32.totalorder %v667, 16
      %vm728 = vcmp.lt.s32.totalorder %v668, 16
      %vm729 = vcmp.lt.s32.totalorder %v669, 16
      %vm730 = vcmp.lt.s32.totalorder %v670, 16
      %vm731 = vcmp.lt.s32.totalorder %v671, 16
      %vm732 = vcmp.lt.s32.totalorder %v672, 16
      %vm733 = vcmp.lt.s32.totalorder %v673, 16
      %vm734 = vcmp.lt.s32.totalorder %v674, 16
      %vm735 = vcmp.lt.s32.totalorder %v675, 16
      %vm736 = vcmp.lt.s32.totalorder %v676, 16
      %vm737 = vcmp.lt.s32.totalorder %v677, 16
      %vm738 = vcmp.lt.s32.totalorder %v678, 16
      %vm739 = vcmp.lt.s32.totalorder %v679, 16
      %vm740 = vcmp.lt.s32.totalorder %v680, 16
      %vm741 = vcmp.lt.s32.totalorder %v681, 16
      %vm742 = vcmp.lt.s32.totalorder %v682, 16
      %vm743 = vcmp.lt.s32.totalorder %v683, 16
      %vm744 = vcmp.lt.s32.totalorder %v684, 16
      %vm745 = vcmp.lt.s32.totalorder %v685, 16
      %vm746 = vmand %vm686, %vm716
      %vm747 = vmand %vm687, %vm717
      %vm748 = vmand %vm688, %vm718
      %vm749 = vmand %vm689, %vm719
      %vm750 = vmand %vm690, %vm720
      %vm751 = vmand %vm691, %vm721
      %vm752 = vmand %vm692, %vm722
      %vm753 = vmand %vm693, %vm723
      %vm754 = vmand %vm694, %vm724
      %vm755 = vmand %vm695, %vm725
      %vm756 = vmand %vm696, %vm726
      %vm757 = vmand %vm697, %vm727
      %vm758 = vmand %vm698, %vm728
      %vm759 = vmand %vm699, %vm729
      %vm760 = vmand %vm700, %vm730
      %vm761 = vmand %vm701, %vm731
      %vm762 = vmand %vm702, %vm732
      %vm763 = vmand %vm703, %vm733
      %vm764 = vmand %vm704, %vm734
      %vm765 = vmand %vm705, %vm735
      %vm766 = vmand %vm706, %vm736
      %vm767 = vmand %vm707, %vm737
      %vm768 = vmand %vm708, %vm738
      %vm769 = vmand %vm709, %vm739
      %vm770 = vmand %vm710, %vm740
      %vm771 = vmand %vm711, %vm741
      %vm772 = vmand %vm712, %vm742
      %vm773 = vmand %vm713, %vm743
      %vm774 = vmand %vm714, %vm744
      %vm775 = vmand %vm715, %vm745
      %v776 = vsel %vm746, 1, 0
      %v777 = vsel %vm747, 1, 0
      %v778 = vsel %vm748, 1, 0
      %v779 = vsel %vm749, 1, 0
      %v780 = vsel %vm750, 1, 0
      %v781 = vsel %vm751, 1, 0
      %v782 = vsel %vm752, 1, 0
      %v783 = vsel %vm753, 1, 0
      %v784 = vsel %vm754, 1, 0
      %v785 = vsel %vm755, 1, 0
      %v786 = vsel %vm756, 1, 0
      %v787 = vsel %vm757, 1, 0
      %v788 = vsel %vm758, 1, 0
      %v789 = vsel %vm759, 1, 0
      %v790 = vsel %vm760, 1, 0
      %v791 = vsel %vm761, 1, 0
      %v792 = vsel %vm762, 1, 0
      %v793 = vsel %vm763, 1, 0
      %v794 = vsel %vm764, 1, 0
      %v795 = vsel %vm765, 1, 0
      %v796 = vsel %vm766, 1, 0
      %v797 = vsel %vm767, 1, 0
      %v798 = vsel %vm768, 1, 0
      %v799 = vsel %vm769, 1, 0
      %v800 = vsel %vm770, 1, 0
      %v801 = vsel %vm771, 1, 0
      %v802 = vsel %vm772, 1, 0
      %v803 = vsel %vm773, 1, 0
      %v804 = vsel %vm774, 1, 0
      %v805 = vsel %vm775, 1, 0
      %806 = vset.pattern.permute.xlu0 0
      %807 = vperm.xlu0 %806, %v776
      %v808 = vpop.permute.xlu0 %807
      %809 = vset.pattern.permute.xlu0 0
      %810 = vperm.xlu0 %809, %v777
      %v811 = vpop.permute.xlu0 %810
      %812 = vset.pattern.permute.xlu0 0
      %813 = vperm.xlu0 %812, %v778
      %v814 = vpop.permute.xlu0 %813
      %815 = vset.pattern.permute.xlu0 0
      %816 = vperm.xlu0 %815, %v779
      %v817 = vpop.permute.xlu0 %816
      %818 = vset.pattern.permute.xlu0 0
      %819 = vperm.xlu0 %818, %v780
      %v820 = vpop.permute.xlu0 %819
      %821 = vset.pattern.permute.xlu0 0
      %822 = vperm.xlu0 %821, %v781
      %v823 = vpop.permute.xlu0 %822
      %824 = vset.pattern.permute.xlu0 0
      %825 = vperm.xlu0 %824, %v782
      %v826 = vpop.permute.xlu0 %825
      %827 = vset.pattern.permute.xlu0 0
      %828 = vperm.xlu0 %827, %v783
      %v829 = vpop.permute.xlu0 %828
      %830 = vset.pattern.permute.xlu0 0
      %831 = vperm.xlu0 %830, %v784
      %v832 = vpop.permute.xlu0 %831
      %833 = vset.pattern.permute.xlu0 0
      %834 = vperm.xlu0 %833, %v785
      %v835 = vpop.permute.xlu0 %834
      %836 = vset.pattern.permute.xlu0 0
      %837 = vperm.xlu0 %836, %v786
      %v838 = vpop.permute.xlu0 %837
      %839 = vset.pattern.permute.xlu0 0
      %840 = vperm.xlu0 %839, %v787
      %v841 = vpop.permute.xlu0 %840
      %842 = vset.pattern.permute.xlu0 0
      %843 = vperm.xlu0 %842, %v788
      %v844 = vpop.permute.xlu0 %843
      %845 = vset.pattern.permute.xlu0 0
      %846 = vperm.xlu0 %845, %v789
      %v847 = vpop.permute.xlu0 %846
      %848 = vset.pattern.permute.xlu0 0
      %849 = vperm.xlu0 %848, %v790
      %v850 = vpop.permute.xlu0 %849
      %851 = vset.pattern.permute.xlu0 0
      %852 = vperm.xlu0 %851, %v791
      %v853 = vpop.permute.xlu0 %852
      %854 = vset.pattern.permute.xlu0 0
      %855 = vperm.xlu0 %854, %v792
      %v856 = vpop.permute.xlu0 %855
      %857 = vset.pattern.permute.xlu0 0
      %858 = vperm.xlu0 %857, %v793
      %v859 = vpop.permute.xlu0 %858
      %860 = vset.pattern.permute.xlu0 0
      %861 = vperm.xlu0 %860, %v794
      %v862 = vpop.permute.xlu0 %861
      %863 = vset.pattern.permute.xlu0 0
      %864 = vperm.xlu0 %863, %v795
      %v865 = vpop.permute.xlu0 %864
      %866 = vset.pattern.permute.xlu0 0
      %867 = vperm.xlu0 %866, %v796
      %v868 = vpop.permute.xlu0 %867
      %869 = vset.pattern.permute.xlu0 0
      %870 = vperm.xlu0 %869, %v797
      %v871 = vpop.permute.xlu0 %870
      %872 = vset.pattern.permute.xlu0 0
      %873 = vperm.xlu0 %872, %v798
      %v874 = vpop.permute.xlu0 %873
      %875 = vset.pattern.permute.xlu0 0
      %876 = vperm.xlu0 %875, %v799
      %v877 = vpop.permute.xlu0 %876
      %878 = vset.pattern.permute.xlu0 0
      %879 = vperm.xlu0 %878, %v800
      %v880 = vpop.permute.xlu0 %879
      %881 = vset.pattern.permute.xlu0 0
      %882 = vperm.xlu0 %881, %v801
      %v883 = vpop.permute.xlu0 %882
      %884 = vset.pattern.permute.xlu0 0
      %885 = vperm.xlu0 %884, %v802
      %v886 = vpop.permute.xlu0 %885
      %887 = vset.pattern.permute.xlu0 0
      %888 = vperm.xlu0 %887, %v803
      %v889 = vpop.permute.xlu0 %888
      %890 = vset.pattern.permute.xlu0 0
      %891 = vperm.xlu0 %890, %v804
      %v892 = vpop.permute.xlu0 %891
      %893 = vset.pattern.permute.xlu0 0
      %894 = vperm.xlu0 %893, %v805
      %v895 = vpop.permute.xlu0 %894
      %vm896 = vcmp.eq.s32.totalorder %v808, 1
      %vm897 = vcmp.eq.s32.totalorder %v811, 1
      %vm898 = vcmp.eq.s32.totalorder %v814, 1
      %vm899 = vcmp.eq.s32.totalorder %v817, 1
      %vm900 = vcmp.eq.s32.totalorder %v820, 1
      %vm901 = vcmp.eq.s32.totalorder %v823, 1
      %vm902 = vcmp.eq.s32.totalorder %v826, 1
      %vm903 = vcmp.eq.s32.totalorder %v829, 1
      %vm904 = vcmp.eq.s32.totalorder %v832, 1
      %vm905 = vcmp.eq.s32.totalorder %v835, 1
      %vm906 = vcmp.eq.s32.totalorder %v838, 1
      %vm907 = vcmp.eq.s32.totalorder %v841, 1
      %vm908 = vcmp.eq.s32.totalorder %v844, 1
      %vm909 = vcmp.eq.s32.totalorder %v847, 1
      %vm910 = vcmp.eq.s32.totalorder %v850, 1
      %vm911 = vcmp.eq.s32.totalorder %v853, 1
      %vm912 = vcmp.eq.s32.totalorder %v856, 1
      %vm913 = vcmp.eq.s32.totalorder %v859, 1
      %vm914 = vcmp.eq.s32.totalorder %v862, 1
      %vm915 = vcmp.eq.s32.totalorder %v865, 1
      %vm916 = vcmp.eq.s32.totalorder %v868, 1
      %vm917 = vcmp.eq.s32.totalorder %v871, 1
      %vm918 = vcmp.eq.s32.totalorder %v874, 1
      %vm919 = vcmp.eq.s32.totalorder %v877, 1
      %vm920 = vcmp.eq.s32.totalorder %v880, 1
      %vm921 = vcmp.eq.s32.totalorder %v883, 1
      %vm922 = vcmp.eq.s32.totalorder %v886, 1
      %vm923 = vcmp.eq.s32.totalorder %v889, 1
      %vm924 = vcmp.eq.s32.totalorder %v892, 1
      %vm925 = vcmp.eq.s32.totalorder %v895, 1
      %vm956 = vcmask 1040384
      %v957 = vrot.slane %v609, 7
      %v958 = vrot.slane %v610, 7
      %v959 = vsel %vm956, %v957, %v958
      %v960 = vrot.slane %v611, 7
      %v961 = vsel %vm956, %v958, %v960
      %v962 = vrot.slane %v612, 7
      %v963 = vsel %vm956, %v960, %v962
      %v964 = vrot.slane %v613, 7
      %v965 = vsel %vm956, %v962, %v964
      %v966 = vrot.slane %v614, 7
      %v967 = vsel %vm956, %v964, %v966
      %v968 = vrot.slane %v615, 7
      %v969 = vsel %vm956, %v966, %v968
      %v970 = vrot.slane %v616, 7
      %v971 = vsel %vm956, %v968, %v970
      %v972 = vrot.slane %v617, 7
      %v973 = vsel %vm956, %v970, %v972
      %v974 = vrot.slane %v618, 7
      %v975 = vsel %vm956, %v972, %v974
      %v976 = vrot.slane %v619, 7
      %v977 = vsel %vm956, %v974, %v976
      %v978 = vrot.slane %v620, 7
      %v979 = vsel %vm956, %v976, %v978
      %v980 = vrot.slane %v621, 7
      %v981 = vsel %vm956, %v978, %v980
      %v982 = vrot.slane %v622, 7
      %v983 = vsel %vm956, %v980, %v982
      %v984 = vrot.slane %v623, 7
      %v985 = vsel %vm956, %v982, %v984
      %v986 = vrot.slane %v624, 7
      %v987 = vsel %vm956, %v984, %v986
      %v988 = vrot.slane %v625, 7
      %v989 = vsel %vm956, %v986, %v988
      %v990 = vrot.slane %v626, 7
      %v991 = vsel %vm956, %v988, %v990
      %v992 = vrot.slane %v627, 7
      %v993 = vsel %vm956, %v990, %v992
      %v994 = vrot.slane %v628, 7
      %v995 = vsel %vm956, %v992, %v994
      %v996 = vrot.slane %v629, 7
      %v997 = vsel %vm956, %v994, %v996
      %v998 = vrot.slane %v630, 7
      %v999 = vsel %vm956, %v996, %v998
      %v1000 = vrot.slane %v631, 7
      %v1001 = vsel %vm956, %v998, %v1000
      %v1002 = vrot.slane %v632, 7
      %v1003 = vsel %vm956, %v1000, %v1002
      %v1004 = vrot.slane %v633, 7
      %v1005 = vsel %vm956, %v1002, %v1004
      %v1006 = vrot.slane %v634, 7
      %v1007 = vsel %vm956, %v1004, %v1006
      %v1008 = vrot.slane %v635, 7
      %v1009 = vsel %vm956, %v1006, %v1008
      %v1010 = vrot.slane %v636, 7
      %v1011 = vsel %vm956, %v1008, %v1010
      %v1012 = vrot.slane %v637, 7
      %v1013 = vsel %vm956, %v1010, %v1012
      %v1014 = vrot.slane %v638, 7
      %v1015 = vsel %vm956, %v1012, %v1014
      %v1046 = vsel %vm896, %v957, 0.0
      %v1047 = vsel %vm897, %v959, 0.0
      %v1048 = vsel %vm898, %v961, 0.0
      %v1049 = vsel %vm899, %v963, 0.0
      %v1050 = vsel %vm900, %v965, 0.0
      %v1051 = vsel %vm901, %v967, 0.0
      %v1052 = vsel %vm902, %v969, 0.0
      %v1053 = vsel %vm903, %v971, 0.0
      %v1054 = vsel %vm904, %v973, 0.0
      %v1055 = vsel %vm905, %v975, 0.0
      %v1056 = vsel %vm906, %v977, 0.0
      %v1057 = vsel %vm907, %v979, 0.0
      %v1058 = vsel %vm908, %v981, 0.0
      %v1059 = vsel %vm909, %v983, 0.0
      %v1060 = vsel %vm910, %v985, 0.0
      %v1061 = vsel %vm911, %v987, 0.0
      %v1062 = vsel %vm912, %v989, 0.0
      %v1063 = vsel %vm913, %v991, 0.0
      %v1064 = vsel %vm914, %v993, 0.0
      %v1065 = vsel %vm915, %v995, 0.0
      %v1066 = vsel %vm916, %v997, 0.0
      %v1067 = vsel %vm917, %v999, 0.0
      %v1068 = vsel %vm918, %v1001, 0.0
      %v1069 = vsel %vm919, %v1003, 0.0
      %v1070 = vsel %vm920, %v1005, 0.0
      %v1071 = vsel %vm921, %v1007, 0.0
      %v1072 = vsel %vm922, %v1009, 0.0
      %v1073 = vsel %vm923, %v1011, 0.0
      %v1074 = vsel %vm924, %v1013, 0.0
      %v1075 = vsel %vm925, %v1015, 0.0
      %vm1076 = vcmask 64513
      %1077 = vst.msk [vmem:[#allocation2 + $0x10] sm:$0xfe] %vm1076, %v1046
      %1078 = vst.msk [vmem:[#allocation2 + $0x18] sm:$0xff] %vm651, %v1047
      %1079 = vst.msk [vmem:[#allocation2 + $0x20] sm:$0xff] %vm651, %v1048
      %1080 = vst.msk [vmem:[#allocation2 + $0x28] sm:$0xff] %vm651, %v1049
      %1081 = vst.msk [vmem:[#allocation2 + $0x30] sm:$0xff] %vm651, %v1050
      %1082 = vst.msk [vmem:[#allocation2 + $0x38] sm:$0xff] %vm651, %v1051
      %1083 = vst.msk [vmem:[#allocation2 + $0x40] sm:$0xff] %vm651, %v1052
      %1084 = vst.msk [vmem:[#allocation2 + $0x48] sm:$0xff] %vm651, %v1053
      %1085 = vst.msk [vmem:[#allocation2 + $0x50] sm:$0xff] %vm651, %v1054
      %1086 = vst.msk [vmem:[#allocation2 + $0x58] sm:$0xff] %vm651, %v1055
      %1087 = vst.msk [vmem:[#allocation2 + $0x60] sm:$0xff] %vm651, %v1056
      %1088 = vst.msk [vmem:[#allocation2 + $0x68] sm:$0xff] %vm651, %v1057
      %1089 = vst.msk [vmem:[#allocation2 + $0x70] sm:$0xff] %vm651, %v1058
      %1090 = vst.msk [vmem:[#allocation2 + $0x78] sm:$0xff] %vm651, %v1059
      %1091 = vst.msk [vmem:[#allocation2 + $0x80] sm:$0xff] %vm651, %v1060
      %1092 = vst.msk [vmem:[#allocation2 + $0x88] sm:$0xff] %vm651, %v1061
      %1093 = vst.msk [vmem:[#allocation2 + $0x90] sm:$0xff] %vm651, %v1062
      %1094 = vst.msk [vmem:[#allocation2 + $0x98] sm:$0xff] %vm651, %v1063
      %1095 = vst.msk [vmem:[#allocation2 + $0xa0] sm:$0xff] %vm651, %v1064
      %1096 = vst.msk [vmem:[#allocation2 + $0xa8] sm:$0xff] %vm651, %v1065
      %1097 = vst.msk [vmem:[#allocation2 + $0xb0] sm:$0xff] %vm651, %v1066
      %1098 = vst.msk [vmem:[#allocation2 + $0xb8] sm:$0xff] %vm651, %v1067
      %1099 = vst.msk [vmem:[#allocation2 + $0xc0] sm:$0xff] %vm651, %v1068
      %1100 = vst.msk [vmem:[#allocation2 + $0xc8] sm:$0xff] %vm651, %v1069
      %1101 = vst.msk [vmem:[#allocation2 + $0xd0] sm:$0xff] %vm651, %v1070
      %1102 = vst.msk [vmem:[#allocation2 + $0xd8] sm:$0xff] %vm651, %v1071
      %1103 = vst.msk [vmem:[#allocation2 + $0xe0] sm:$0xff] %vm651, %v1072
      %1104 = vst.msk [vmem:[#allocation2 + $0xe8] sm:$0xff] %vm651, %v1073
      %1105 = vst.msk [vmem:[#allocation2 + $0xf0] sm:$0xff] %vm651, %v1074
      %1106 = vst.msk [vmem:[#allocation2 + $0xf8] sm:$0xff] %vm651, %v1075
      %vm1107 = vcmask 130112
      %1108 = vst.msk [vmem:[#allocation2] sm:$0xff] %vm1107, 0.0
      %1109 = vst.msk [vmem:[#allocation2 + $0x8] sm:$0xff] %vm1107, 0.0
      %1110 = vrot.lane.b32.xlu0 %v609, 8
      %v1111 = vpop.permute.xlu0 %1110
      %1112 = vrot.lane.b32.xlu0 %v610, 8
      %v1113 = vpop.permute.xlu0 %1112
      %1114 = vrot.lane.b32.xlu0 %v611, 8
      %v1115 = vpop.permute.xlu0 %1114
      %1116 = vrot.lane.b32.xlu0 %v612, 8
      %v1117 = vpop.permute.xlu0 %1116
      %1118 = vrot.lane.b32.xlu0 %v613, 8
      %v1119 = vpop.permute.xlu0 %1118
      %1120 = vrot.lane.b32.xlu0 %v614, 8
      %v1121 = vpop.permute.xlu0 %1120
      %1122 = vrot.lane.b32.xlu0 %v615, 8
      %v1123 = vpop.permute.xlu0 %1122
      %1124 = vrot.lane.b32.xlu0 %v616, 8
      %v1125 = vpop.permute.xlu0 %1124
      %1126 = vrot.lane.b32.xlu0 %v617, 8
      %v1127 = vpop.permute.xlu0 %1126
      %1128 = vrot.lane.b32.xlu0 %v618, 8
      %v1129 = vpop.permute.xlu0 %1128
      %1130 = vrot.lane.b32.xlu0 %v619, 8
      %v1131 = vpop.permute.xlu0 %1130
      %1132 = vrot.lane.b32.xlu0 %v620, 8
      %v1133 = vpop.permute.xlu0 %1132
      %1134 = vrot.lane.b32.xlu0 %v621, 8
      %v1135 = vpop.permute.xlu0 %1134
      %1136 = vrot.lane.b32.xlu0 %v622, 8
      %v1137 = vpop.permute.xlu0 %1136
      %1138 = vrot.lane.b32.xlu0 %v623, 8
      %v1139 = vpop.permute.xlu0 %1138
      %1140 = vrot.lane.b32.xlu0 %v624, 8
      %v1141 = vpop.permute.xlu0 %1140
      %1142 = vrot.lane.b32.xlu0 %v625, 8
      %v1143 = vpop.permute.xlu0 %1142
      %1144 = vrot.lane.b32.xlu0 %v626, 8
      %v1145 = vpop.permute.xlu0 %1144
      %1146 = vrot.lane.b32.xlu0 %v627, 8
      %v1147 = vpop.permute.xlu0 %1146
      %1148 = vrot.lane.b32.xlu0 %v628, 8
      %v1149 = vpop.permute.xlu0 %1148
      %1150 = vrot.lane.b32.xlu0 %v629, 8
      %v1151 = vpop.permute.xlu0 %1150
      %1152 = vrot.lane.b32.xlu0 %v630, 8
      %v1153 = vpop.permute.xlu0 %1152
      %1154 = vrot.lane.b32.xlu0 %v631, 8
      %v1155 = vpop.permute.xlu0 %1154
      %1156 = vrot.lane.b32.xlu0 %v632, 8
      %v1157 = vpop.permute.xlu0 %1156
      %1158 = vrot.lane.b32.xlu0 %v633, 8
      %v1159 = vpop.permute.xlu0 %1158
      %1160 = vrot.lane.b32.xlu0 %v634, 8
      %v1161 = vpop.permute.xlu0 %1160
      %1162 = vrot.lane.b32.xlu0 %v635, 8
      %v1163 = vpop.permute.xlu0 %1162
      %1164 = vrot.lane.b32.xlu0 %v636, 8
      %v1165 = vpop.permute.xlu0 %1164
      %1166 = vrot.lane.b32.xlu0 %v637, 8
      %v1167 = vpop.permute.xlu0 %1166
      %1168 = vrot.lane.b32.xlu0 %v638, 8
      %v1169 = vpop.permute.xlu0 %1168
      %1200 = vst.msk [vmem:[#allocation2 + $0x10] sm:$0xff] %vm1107, %v1111
      %1201 = vst.msk [vmem:[#allocation2 + $0x18] sm:$0xff] %vm1107, %v1113
      %1202 = vst.msk [vmem:[#allocation2 + $0x20] sm:$0xff] %vm1107, %v1115
      %1203 = vst.msk [vmem:[#allocation2 + $0x28] sm:$0xff] %vm1107, %v1117
      %1204 = vst.msk [vmem:[#allocation2 + $0x30] sm:$0xff] %vm1107, %v1119
      %1205 = vst.msk [vmem:[#allocation2 + $0x38] sm:$0xff] %vm1107, %v1121
      %1206 = vst.msk [vmem:[#allocation2 + $0x40] sm:$0xff] %vm1107, %v1123
      %1207 = vst.msk [vmem:[#allocation2 + $0x48] sm:$0xff] %vm1107, %v1125
      %1208 = vst.msk [vmem:[#allocation2 + $0x50] sm:$0xff] %vm1107, %v1127
      %1209 = vst.msk [vmem:[#allocation2 + $0x58] sm:$0xff] %vm1107, %v1129
      %1210 = vst.msk [vmem:[#allocation2 + $0x60] sm:$0xff] %vm1107, %v1131
      %1211 = vst.msk [vmem:[#allocation2 + $0x68] sm:$0xff] %vm1107, %v1133
      %1212 = vst.msk [vmem:[#allocation2 + $0x70] sm:$0xff] %vm1107, %v1135
      %1213 = vst.msk [vmem:[#allocation2 + $0x78] sm:$0xff] %vm1107, %v1137
      %1214 = vst.msk [vmem:[#allocation2 + $0x80] sm:$0xff] %vm1107, %v1139
      %1215 = vst.msk [vmem:[#allocation2 + $0x88] sm:$0xff] %vm1107, %v1141
      %1216 = vst.msk [vmem:[#allocation2 + $0x90] sm:$0xff] %vm1107, %v1143
      %1217 = vst.msk [vmem:[#allocation2 + $0x98] sm:$0xff] %vm1107, %v1145
      %1218 = vst.msk [vmem:[#allocation2 + $0xa0] sm:$0xff] %vm1107, %v1147
      %1219 = vst.msk [vmem:[#allocation2 + $0xa8] sm:$0xff] %vm1107, %v1149
      %1220 = vst.msk [vmem:[#allocation2 + $0xb0] sm:$0xff] %vm1107, %v1151
      %1221 = vst.msk [vmem:[#allocation2 + $0xb8] sm:$0xff] %vm1107, %v1153
      %1222 = vst.msk [vmem:[#allocation2 + $0xc0] sm:$0xff] %vm1107, %v1155
      %1223 = vst.msk [vmem:[#allocation2 + $0xc8] sm:$0xff] %vm1107, %v1157
      %1224 = vst.msk [vmem:[#allocation2 + $0xd0] sm:$0xff] %vm1107, %v1159
      %1225 = vst.msk [vmem:[#allocation2 + $0xd8] sm:$0xff] %vm1107, %v1161
      %1226 = vst.msk [vmem:[#allocation2 + $0xe0] sm:$0xff] %vm1107, %v1163
      %1227 = vst.msk [vmem:[#allocation2 + $0xe8] sm:$0xff] %vm1107, %v1165
      %1228 = vst.msk [vmem:[#allocation2 + $0xf0] sm:$0xff] %vm1107, %v1167
      %1229 = vst.msk [vmem:[#allocation2 + $0xf8] sm:$0xff] %vm1107, %v1169
      %vm1230 = vcmask 195712
      %1231 = vst.msk [vmem:[#allocation2] sm:$0xff] %vm1230, 0.0
      %vm1232 = vcmask 194688
      %1233 = vst.msk [vmem:[#allocation2 + $0x8] sm:$0x7f] %vm1232, 0.0
      %v1234 = vadd.s32 %v422, 1
      %v1235 = vadd.s32 %v423, 1
      %v1236 = vadd.s32 %v424, 1
      %v1237 = vadd.s32 %v425, 1
      %v1238 = vadd.s32 %v426, 1
      %v1239 = vadd.s32 %v427, 1
      %v1240 = vadd.s32 %v428, 1
      %v1241 = vadd.s32 %v429, 1
      %v1242 = vadd.s32 %v430, 1
      %v1243 = vadd.s32 %v431, 1
      %v1244 = vadd.s32 %v432, 1
      %v1245 = vadd.s32 %v433, 1
      %v1246 = vadd.s32 %v434, 1
      %v1247 = vadd.s32 %v435, 1
      %v1248 = vadd.s32 %v436, 1
      %v1249 = vadd.s32 %v437, 1
      %v1250 = vadd.s32 %v438, 1
      %v1251 = vadd.s32 %v439, 1
      %v1252 = vadd.s32 %v440, 1
      %v1253 = vadd.s32 %v441, 1
      %v1254 = vadd.s32 %v442, 1
      %v1255 = vadd.s32 %v443, 1
      %v1256 = vadd.s32 %v444, 1
      %v1257 = vadd.s32 %v445, 1
      %v1258 = vadd.s32 %v446, 1
      %v1259 = vadd.s32 %v447, 1
      %v1260 = vadd.s32 %v448, 1
      %v1261 = vadd.s32 %v449, 1
      %v1262 = vadd.s32 %v450, 1
      %v1263 = vadd.s32 %v451, 1
      %v1264 = vadd.s32 %v452, 1
      %vm1265 = vcmp.ge.s32.totalorder %v1234, 0
      %vm1266 = vcmp.ge.s32.totalorder %v1235, 0
      %vm1267 = vcmp.ge.s32.totalorder %v1236, 0
      %vm1268 = vcmp.ge.s32.totalorder %v1237, 0
      %vm1269 = vcmp.ge.s32.totalorder %v1238, 0
      %vm1270 = vcmp.ge.s32.totalorder %v1239, 0
      %vm1271 = vcmp.ge.s32.totalorder %v1240, 0
      %vm1272 = vcmp.ge.s32.totalorder %v1241, 0
      %vm1273 = vcmp.ge.s32.totalorder %v1242, 0
      %vm1274 = vcmp.ge.s32.totalorder %v1243, 0
      %vm1275 = vcmp.ge.s32.totalorder %v1244, 0
      %vm1276 = vcmp.ge.s32.totalorder %v1245, 0
      %vm1277 = vcmp.ge.s32.totalorder %v1246, 0
      %vm1278 = vcmp.ge.s32.totalorder %v1247, 0
      %vm1279 = vcmp.ge.s32.totalorder %v1248, 0
      %vm1280 = vcmp.ge.s32.totalorder %v1249, 0
      %vm1281 = vcmp.ge.s32.totalorder %v1250, 0
      %vm1282 = vcmp.ge.s32.totalorder %v1251, 0
      %vm1283 = vcmp.ge.s32.totalorder %v1252, 0
      %vm1284 = vcmp.ge.s32.totalorder %v1253, 0
      %vm1285 = vcmp.ge.s32.totalorder %v1254, 0
      %vm1286 = vcmp.ge.s32.totalorder %v1255, 0
      %vm1287 = vcmp.ge.s32.totalorder %v1256, 0
      %vm1288 = vcmp.ge.s32.totalorder %v1257, 0
      %vm1289 = vcmp.ge.s32.totalorder %v1258, 0
      %vm1290 = vcmp.ge.s32.totalorder %v1259, 0
      %vm1291 = vcmp.ge.s32.totalorder %v1260, 0
      %vm1292 = vcmp.ge.s32.totalorder %v1261, 0
      %vm1293 = vcmp.ge.s32.totalorder %v1262, 0
      %vm1294 = vcmp.ge.s32.totalorder %v1263, 0
      %vm1295 = vcmp.ge.s32.totalorder %v1264, 0
      %vm1296 = vcmp.lt.s32.totalorder %v1234, 16
      %vm1297 = vcmp.lt.s32.totalorder %v1235, 16
      %vm1298 = vcmp.lt.s32.totalorder %v1236, 16
      %vm1299 = vcmp.lt.s32.totalorder %v1237, 16
      %vm1300 = vcmp.lt.s32.totalorder %v1238, 16
      %vm1301 = vcmp.lt.s32.totalorder %v1239, 16
      %vm1302 = vcmp.lt.s32.totalorder %v1240, 16
      %vm1303 = vcmp.lt.s32.totalorder %v1241, 16
      %vm1304 = vcmp.lt.s32.totalorder %v1242, 16
      %vm1305 = vcmp.lt.s32.totalorder %v1243, 16
      %vm1306 = vcmp.lt.s32.totalorder %v1244, 16
      %vm1307 = vcmp.lt.s32.totalorder %v1245, 16
      %vm1308 = vcmp.lt.s32.totalorder %v1246, 16
      %vm1309 = vcmp.lt.s32.totalorder %v1247, 16
      %vm1310 = vcmp.lt.s32.totalorder %v1248, 16
      %vm1311 = vcmp.lt.s32.totalorder %v1249, 16
      %vm1312 = vcmp.lt.s32.totalorder %v1250, 16
      %vm1313 = vcmp.lt.s32.totalorder %v1251, 16
      %vm1314 = vcmp.lt.s32.totalorder %v1252, 16
      %vm1315 = vcmp.lt.s32.totalorder %v1253, 16
      %vm1316 = vcmp.lt.s32.totalorder %v1254, 16
      %vm1317 = vcmp.lt.s32.totalorder %v1255, 16
      %vm1318 = vcmp.lt.s32.totalorder %v1256, 16
      %vm1319 = vcmp.lt.s32.totalorder %v1257, 16
      %vm1320 = vcmp.lt.s32.totalorder %v1258, 16
      %vm1321 = vcmp.lt.s32.totalorder %v1259, 16
      %vm1322 = vcmp.lt.s32.totalorder %v1260, 16
      %vm1323 = vcmp.lt.s32.totalorder %v1261, 16
      %vm1324 = vcmp.lt.s32.totalorder %v1262, 16
      %vm1325 = vcmp.lt.s32.totalorder %v1263, 16
      %vm1326 = vcmp.lt.s32.totalorder %v1264, 16
      %vm1327 = vmand %vm1265, %vm1296
      %vm1328 = vmand %vm1266, %vm1297
      %vm1329 = vmand %vm1267, %vm1298
      %vm1330 = vmand %vm1268, %vm1299
      %vm1331 = vmand %vm1269, %vm1300
      %vm1332 = vmand %vm1270, %vm1301
      %vm1333 = vmand %vm1271, %vm1302
      %vm1334 = vmand %vm1272, %vm1303
      %vm1335 = vmand %vm1273, %vm1304
      %vm1336 = vmand %vm1274, %vm1305
      %vm1337 = vmand %vm1275, %vm1306
      %vm1338 = vmand %vm1276, %vm1307
      %vm1339 = vmand %vm1277, %vm1308
      %vm1340 = vmand %vm1278, %vm1309
      %vm1341 = vmand %vm1279, %vm1310
      %vm1342 = vmand %vm1280, %vm1311
      %vm1343 = vmand %vm1281, %vm1312
      %vm1344 = vmand %vm1282, %vm1313
      %vm1345 = vmand %vm1283, %vm1314
      %vm1346 = vmand %vm1284, %vm1315
      %vm1347 = vmand %vm1285, %vm1316
      %vm1348 = vmand %vm1286, %vm1317
      %vm1349 = vmand %vm1287, %vm1318
      %vm1350 = vmand %vm1288, %vm1319
      %vm1351 = vmand %vm1289, %vm1320
      %vm1352 = vmand %vm1290, %vm1321
      %vm1353 = vmand %vm1291, %vm1322
      %vm1354 = vmand %vm1292, %vm1323
      %vm1355 = vmand %vm1293, %vm1324
      %vm1356 = vmand %vm1294, %vm1325
      %vm1357 = vmand %vm1295, %vm1326
      %v1358 = vsel %vm1327, 1, 0
      %v1359 = vsel %vm1328, 1, 0
      %v1360 = vsel %vm1329, 1, 0
      %v1361 = vsel %vm1330, 1, 0
      %v1362 = vsel %vm1331, 1, 0
      %v1363 = vsel %vm1332, 1, 0
      %v1364 = vsel %vm1333, 1, 0
      %v1365 = vsel %vm1334, 1, 0
      %v1366 = vsel %vm1335, 1, 0
      %v1367 = vsel %vm1336, 1, 0
      %v1368 = vsel %vm1337, 1, 0
      %v1369 = vsel %vm1338, 1, 0
      %v1370 = vsel %vm1339, 1, 0
      %v1371 = vsel %vm1340, 1, 0
      %v1372 = vsel %vm1341, 1, 0
      %v1373 = vsel %vm1342, 1, 0
      %v1374 = vsel %vm1343, 1, 0
      %v1375 = vsel %vm1344, 1, 0
      %v1376 = vsel %vm1345, 1, 0
      %v1377 = vsel %vm1346, 1, 0
      %v1378 = vsel %vm1347, 1, 0
      %v1379 = vsel %vm1348, 1, 0
      %v1380 = vsel %vm1349, 1, 0
      %v1381 = vsel %vm1350, 1, 0
      %v1382 = vsel %vm1351, 1, 0
      %v1383 = vsel %vm1352, 1, 0
      %v1384 = vsel %vm1353, 1, 0
      %v1385 = vsel %vm1354, 1, 0
      %v1386 = vsel %vm1355, 1, 0
      %v1387 = vsel %vm1356, 1, 0
      %v1388 = vsel %vm1357, 1, 0
      %1389 = vset.pattern.permute.xlu0 0
      %1390 = vperm.xlu0 %1389, %v1358
      %v1391 = vpop.permute.xlu0 %1390
      %1392 = vset.pattern.permute.xlu0 0
      %1393 = vperm.xlu0 %1392, %v1359
      %v1394 = vpop.permute.xlu0 %1393
      %1395 = vset.pattern.permute.xlu0 0
      %1396 = vperm.xlu0 %1395, %v1360
      %v1397 = vpop.permute.xlu0 %1396
      %1398 = vset.pattern.permute.xlu0 0
      %1399 = vperm.xlu0 %1398, %v1361
      %v1400 = vpop.permute.xlu0 %1399
      %1401 = vset.pattern.permute.xlu0 0
      %1402 = vperm.xlu0 %1401, %v1362
      %v1403 = vpop.permute.xlu0 %1402
      %1404 = vset.pattern.permute.xlu0 0
      %1405 = vperm.xlu0 %1404, %v1363
      %v1406 = vpop.permute.xlu0 %1405
      %1407 = vset.pattern.permute.xlu0 0
      %1408 = vperm.xlu0 %1407, %v1364
      %v1409 = vpop.permute.xlu0 %1408
      %1410 = vset.pattern.permute.xlu0 0
      %1411 = vperm.xlu0 %1410, %v1365
      %v1412 = vpop.permute.xlu0 %1411
      %1413 = vset.pattern.permute.xlu0 0
      %1414 = vperm.xlu0 %1413, %v1366
      %v1415 = vpop.permute.xlu0 %1414
      %1416 = vset.pattern.permute.xlu0 0
      %1417 = vperm.xlu0 %1416, %v1367
      %v1418 = vpop.permute.xlu0 %1417
      %1419 = vset.pattern.permute.xlu0 0
      %1420 = vperm.xlu0 %1419, %v1368
      %v1421 = vpop.permute.xlu0 %1420
      %1422 = vset.pattern.permute.xlu0 0
      %1423 = vperm.xlu0 %1422, %v1369
      %v1424 = vpop.permute.xlu0 %1423
      %1425 = vset.pattern.permute.xlu0 0
      %1426 = vperm.xlu0 %1425, %v1370
      %v1427 = vpop.permute.xlu0 %1426
      %1428 = vset.pattern.permute.xlu0 0
      %1429 = vperm.xlu0 %1428, %v1371
      %v1430 = vpop.permute.xlu0 %1429
      %1431 = vset.pattern.permute.xlu0 0
      %1432 = vperm.xlu0 %1431, %v1372
      %v1433 = vpop.permute.xlu0 %1432
      %1434 = vset.pattern.permute.xlu0 0
      %1435 = vperm.xlu0 %1434, %v1373
      %v1436 = vpop.permute.xlu0 %1435
      %1437 = vset.pattern.permute.xlu0 0
      %1438 = vperm.xlu0 %1437, %v1374
      %v1439 = vpop.permute.xlu0 %1438
      %1440 = vset.pattern.permute.xlu0 0
      %1441 = vperm.xlu0 %1440, %v1375
      %v1442 = vpop.permute.xlu0 %1441
      %1443 = vset.pattern.permute.xlu0 0
      %1444 = vperm.xlu0 %1443, %v1376
      %v1445 = vpop.permute.xlu0 %1444
      %1446 = vset.pattern.permute.xlu0 0
      %1447 = vperm.xlu0 %1446, %v1377
      %v1448 = vpop.permute.xlu0 %1447
      %1449 = vset.pattern.permute.xlu0 0
      %1450 = vperm.xlu0 %1449, %v1378
      %v1451 = vpop.permute.xlu0 %1450
      %1452 = vset.pattern.permute.xlu0 0
      %1453 = vperm.xlu0 %1452, %v1379
      %v1454 = vpop.permute.xlu0 %1453
      %1455 = vset.pattern.permute.xlu0 0
      %1456 = vperm.xlu0 %1455, %v1380
      %v1457 = vpop.permute.xlu0 %1456
      %1458 = vset.pattern.permute.xlu0 0
      %1459 = vperm.xlu0 %1458, %v1381
      %v1460 = vpop.permute.xlu0 %1459
      %1461 = vset.pattern.permute.xlu0 0
      %1462 = vperm.xlu0 %1461, %v1382
      %v1463 = vpop.permute.xlu0 %1462
      %1464 = vset.pattern.permute.xlu0 0
      %1465 = vperm.xlu0 %1464, %v1383
      %v1466 = vpop.permute.xlu0 %1465
      %1467 = vset.pattern.permute.xlu0 0
      %1468 = vperm.xlu0 %1467, %v1384
      %v1469 = vpop.permute.xlu0 %1468
      %1470 = vset.pattern.permute.xlu0 0
      %1471 = vperm.xlu0 %1470, %v1385
      %v1472 = vpop.permute.xlu0 %1471
      %1473 = vset.pattern.permute.xlu0 0
      %1474 = vperm.xlu0 %1473, %v1386
      %v1475 = vpop.permute.xlu0 %1474
      %1476 = vset.pattern.permute.xlu0 0
      %1477 = vperm.xlu0 %1476, %v1387
      %v1478 = vpop.permute.xlu0 %1477
      %1479 = vset.pattern.permute.xlu0 0
      %1480 = vperm.xlu0 %1479, %v1388
      %v1481 = vpop.permute.xlu0 %1480
      %vm1482 = vcmp.eq.s32.totalorder %v1391, 1
      %vm1483 = vcmp.eq.s32.totalorder %v1394, 1
      %vm1484 = vcmp.eq.s32.totalorder %v1397, 1
      %vm1485 = vcmp.eq.s32.totalorder %v1400, 1
      %vm1486 = vcmp.eq.s32.totalorder %v1403, 1
      %vm1487 = vcmp.eq.s32.totalorder %v1406, 1
      %vm1488 = vcmp.eq.s32.totalorder %v1409, 1
      %vm1489 = vcmp.eq.s32.totalorder %v1412, 1
      %vm1490 = vcmp.eq.s32.totalorder %v1415, 1
      %vm1491 = vcmp.eq.s32.totalorder %v1418, 1
      %vm1492 = vcmp.eq.s32.totalorder %v1421, 1
      %vm1493 = vcmp.eq.s32.totalorder %v1424, 1
      %vm1494 = vcmp.eq.s32.totalorder %v1427, 1
      %vm1495 = vcmp.eq.s32.totalorder %v1430, 1
      %vm1496 = vcmp.eq.s32.totalorder %v1433, 1
      %vm1497 = vcmp.eq.s32.totalorder %v1436, 1
      %vm1498 = vcmp.eq.s32.totalorder %v1439, 1
      %vm1499 = vcmp.eq.s32.totalorder %v1442, 1
      %vm1500 = vcmp.eq.s32.totalorder %v1445, 1
      %vm1501 = vcmp.eq.s32.totalorder %v1448, 1
      %vm1502 = vcmp.eq.s32.totalorder %v1451, 1
      %vm1503 = vcmp.eq.s32.totalorder %v1454, 1
      %vm1504 = vcmp.eq.s32.totalorder %v1457, 1
      %vm1505 = vcmp.eq.s32.totalorder %v1460, 1
      %vm1506 = vcmp.eq.s32.totalorder %v1463, 1
      %vm1507 = vcmp.eq.s32.totalorder %v1466, 1
      %vm1508 = vcmp.eq.s32.totalorder %v1469, 1
      %vm1509 = vcmp.eq.s32.totalorder %v1472, 1
      %vm1510 = vcmp.eq.s32.totalorder %v1475, 1
      %vm1511 = vcmp.eq.s32.totalorder %v1478, 1
      %vm1512 = vcmp.eq.s32.totalorder %v1481, 1
      %vm1514 = vcmask 1046528
      %v1515 = vrot.slane %v609, 1
      %v1516 = vrot.slane %v610, 1
      %v1517 = vsel %vm1514, %v1515, %v1516
      %v1518 = vrot.slane %v611, 1
      %v1519 = vsel %vm1514, %v1516, %v1518
      %v1520 = vrot.slane %v612, 1
      %v1521 = vsel %vm1514, %v1518, %v1520
      %v1522 = vrot.slane %v613, 1
      %v1523 = vsel %vm1514, %v1520, %v1522
      %v1524 = vrot.slane %v614, 1
      %v1525 = vsel %vm1514, %v1522, %v1524
      %v1526 = vrot.slane %v615, 1
      %v1527 = vsel %vm1514, %v1524, %v1526
      %v1528 = vrot.slane %v616, 1
      %v1529 = vsel %vm1514, %v1526, %v1528
      %v1530 = vrot.slane %v617, 1
      %v1531 = vsel %vm1514, %v1528, %v1530
      %v1532 = vrot.slane %v618, 1
      %v1533 = vsel %vm1514, %v1530, %v1532
      %v1534 = vrot.slane %v619, 1
      %v1535 = vsel %vm1514, %v1532, %v1534
      %v1536 = vrot.slane %v620, 1
      %v1537 = vsel %vm1514, %v1534, %v1536
      %v1538 = vrot.slane %v621, 1
      %v1539 = vsel %vm1514, %v1536, %v1538
      %v1540 = vrot.slane %v622, 1
      %v1541 = vsel %vm1514, %v1538, %v1540
      %v1542 = vrot.slane %v623, 1
      %v1543 = vsel %vm1514, %v1540, %v1542
      %v1544 = vrot.slane %v624, 1
      %v1545 = vsel %vm1514, %v1542, %v1544
      %v1546 = vrot.slane %v625, 1
      %v1547 = vsel %vm1514, %v1544, %v1546
      %v1548 = vrot.slane %v626, 1
      %v1549 = vsel %vm1514, %v1546, %v1548
      %v1550 = vrot.slane %v627, 1
      %v1551 = vsel %vm1514, %v1548, %v1550
      %v1552 = vrot.slane %v628, 1
      %v1553 = vsel %vm1514, %v1550, %v1552
      %v1554 = vrot.slane %v629, 1
      %v1555 = vsel %vm1514, %v1552, %v1554
      %v1556 = vrot.slane %v630, 1
      %v1557 = vsel %vm1514, %v1554, %v1556
      %v1558 = vrot.slane %v631, 1
      %v1559 = vsel %vm1514, %v1556, %v1558
      %v1560 = vrot.slane %v632, 1
      %v1561 = vsel %vm1514, %v1558, %v1560
      %v1562 = vrot.slane %v633, 1
      %v1563 = vsel %vm1514, %v1560, %v1562
      %v1564 = vrot.slane %v634, 1
      %v1565 = vsel %vm1514, %v1562, %v1564
      %v1566 = vrot.slane %v635, 1
      %v1567 = vsel %vm1514, %v1564, %v1566
      %v1568 = vrot.slane %v636, 1
      %v1569 = vsel %vm1514, %v1566, %v1568
      %v1570 = vrot.slane %v637, 1
      %v1571 = vsel %vm1514, %v1568, %v1570
      %v1572 = vrot.slane %v638, 1
      %v1573 = vsel %vm1514, %v1570, %v1572
      %v1574 = vrot.slane %v639, 1
      %v1575 = vsel %vm1514, %v1572, %v1574
      %v1607 = vsel %vm1482, %v1515, 0.0
      %v1608 = vsel %vm1483, %v1517, 0.0
      %v1609 = vsel %vm1484, %v1519, 0.0
      %v1610 = vsel %vm1485, %v1521, 0.0
      %v1611 = vsel %vm1486, %v1523, 0.0
      %v1612 = vsel %vm1487, %v1525, 0.0
      %v1613 = vsel %vm1488, %v1527, 0.0
      %v1614 = vsel %vm1489, %v1529, 0.0
      %v1615 = vsel %vm1490, %v1531, 0.0
      %v1616 = vsel %vm1491, %v1533, 0.0
      %v1617 = vsel %vm1492, %v1535, 0.0
      %v1618 = vsel %vm1493, %v1537, 0.0
      %v1619 = vsel %vm1494, %v1539, 0.0
      %v1620 = vsel %vm1495, %v1541, 0.0
      %v1621 = vsel %vm1496, %v1543, 0.0
      %v1622 = vsel %vm1497, %v1545, 0.0
      %v1623 = vsel %vm1498, %v1547, 0.0
      %v1624 = vsel %vm1499, %v1549, 0.0
      %v1625 = vsel %vm1500, %v1551, 0.0
      %v1626 = vsel %vm1501, %v1553, 0.0
      %v1627 = vsel %vm1502, %v1555, 0.0
      %v1628 = vsel %vm1503, %v1557, 0.0
      %v1629 = vsel %vm1504, %v1559, 0.0
      %v1630 = vsel %vm1505, %v1561, 0.0
      %v1631 = vsel %vm1506, %v1563, 0.0
      %v1632 = vsel %vm1507, %v1565, 0.0
      %v1633 = vsel %vm1508, %v1567, 0.0
      %v1634 = vsel %vm1509, %v1569, 0.0
      %v1635 = vsel %vm1510, %v1571, 0.0
      %v1636 = vsel %vm1511, %v1573, 0.0
      %v1637 = vsel %vm1512, %v1575, 0.0
      %1669 = vrot.lane.b32.xlu0 %v1607, 16
      %v1670 = vpop.permute.xlu0 %1669
      %1671 = vrot.lane.b32.xlu0 %v1608, 16
      %v1672 = vpop.permute.xlu0 %1671
      %1673 = vrot.lane.b32.xlu0 %v1609, 16
      %v1674 = vpop.permute.xlu0 %1673
      %1675 = vrot.lane.b32.xlu0 %v1610, 16
      %v1676 = vpop.permute.xlu0 %1675
      %1677 = vrot.lane.b32.xlu0 %v1611, 16
      %v1678 = vpop.permute.xlu0 %1677
      %1679 = vrot.lane.b32.xlu0 %v1612, 16
      %v1680 = vpop.permute.xlu0 %1679
      %1681 = vrot.lane.b32.xlu0 %v1613, 16
      %v1682 = vpop.permute.xlu0 %1681
      %1683 = vrot.lane.b32.xlu0 %v1614, 16
      %v1684 = vpop.permute.xlu0 %1683
      %1685 = vrot.lane.b32.xlu0 %v1615, 16
      %v1686 = vpop.permute.xlu0 %1685
      %1687 = vrot.lane.b32.xlu0 %v1616, 16
      %v1688 = vpop.permute.xlu0 %1687
      %1689 = vrot.lane.b32.xlu0 %v1617, 16
      %v1690 = vpop.permute.xlu0 %1689
      %1691 = vrot.lane.b32.xlu0 %v1618, 16
      %v1692 = vpop.permute.xlu0 %1691
      %1693 = vrot.lane.b32.xlu0 %v1619, 16
      %v1694 = vpop.permute.xlu0 %1693
      %1695 = vrot.lane.b32.xlu0 %v1620, 16
      %v1696 = vpop.permute.xlu0 %1695
      %1697 = vrot.lane.b32.xlu0 %v1621, 16
      %v1698 = vpop.permute.xlu0 %1697
      %1699 = vrot.lane.b32.xlu0 %v1622, 16
      %v1700 = vpop.permute.xlu0 %1699
      %1701 = vrot.lane.b32.xlu0 %v1623, 16
      %v1702 = vpop.permute.xlu0 %1701
      %1703 = vrot.lane.b32.xlu0 %v1624, 16
      %v1704 = vpop.permute.xlu0 %1703
      %1705 = vrot.lane.b32.xlu0 %v1625, 16
      %v1706 = vpop.permute.xlu0 %1705
      %1707 = vrot.lane.b32.xlu0 %v1626, 16
      %v1708 = vpop.permute.xlu0 %1707
      %1709 = vrot.lane.b32.xlu0 %v1627, 16
      %v1710 = vpop.permute.xlu0 %1709
      %1711 = vrot.lane.b32.xlu0 %v1628, 16
      %v1712 = vpop.permute.xlu0 %1711
      %1713 = vrot.lane.b32.xlu0 %v1629, 16
      %v1714 = vpop.permute.xlu0 %1713
      %1715 = vrot.lane.b32.xlu0 %v1630, 16
      %v1716 = vpop.permute.xlu0 %1715
      %1717 = vrot.lane.b32.xlu0 %v1631, 16
      %v1718 = vpop.permute.xlu0 %1717
      %1719 = vrot.lane.b32.xlu0 %v1632, 16
      %v1720 = vpop.permute.xlu0 %1719
      %1721 = vrot.lane.b32.xlu0 %v1633, 16
      %v1722 = vpop.permute.xlu0 %1721
      %1723 = vrot.lane.b32.xlu0 %v1634, 16
      %v1724 = vpop.permute.xlu0 %1723
      %1725 = vrot.lane.b32.xlu0 %v1635, 16
      %v1726 = vpop.permute.xlu0 %1725
      %1727 = vrot.lane.b32.xlu0 %v1636, 16
      %v1728 = vpop.permute.xlu0 %1727
      %1729 = vrot.lane.b32.xlu0 %v1637, 16
      %v1730 = vpop.permute.xlu0 %1729
      %vm1762 = vcmask 195719
      %1763 = vst.msk [vmem:[#allocation2 + $0x8] sm:$0x80] %vm1762, %v1670
      %1764 = vst.msk [vmem:[#allocation2 + $0x10] sm:$0xff] %vm1230, %v1672
      %1765 = vst.msk [vmem:[#allocation2 + $0x18] sm:$0xff] %vm1230, %v1674
      %1766 = vst.msk [vmem:[#allocation2 + $0x20] sm:$0xff] %vm1230, %v1676
      %1767 = vst.msk [vmem:[#allocation2 + $0x28] sm:$0xff] %vm1230, %v1678
      %1768 = vst.msk [vmem:[#allocation2 + $0x30] sm:$0xff] %vm1230, %v1680
      %1769 = vst.msk [vmem:[#allocation2 + $0x38] sm:$0xff] %vm1230, %v1682
      %1770 = vst.msk [vmem:[#allocation2 + $0x40] sm:$0xff] %vm1230, %v1684
      %1771 = vst.msk [vmem:[#allocation2 + $0x48] sm:$0xff] %vm1230, %v1686
      %1772 = vst.msk [vmem:[#allocation2 + $0x50] sm:$0xff] %vm1230, %v1688
      %1773 = vst.msk [vmem:[#allocation2 + $0x58] sm:$0xff] %vm1230, %v1690
      %1774 = vst.msk [vmem:[#allocation2 + $0x60] sm:$0xff] %vm1230, %v1692
      %1775 = vst.msk [vmem:[#allocation2 + $0x68] sm:$0xff] %vm1230, %v1694
      %1776 = vst.msk [vmem:[#allocation2 + $0x70] sm:$0xff] %vm1230, %v1696
      %1777 = vst.msk [vmem:[#allocation2 + $0x78] sm:$0xff] %vm1230, %v1698
      %1778 = vst.msk [vmem:[#allocation2 + $0x80] sm:$0xff] %vm1230, %v1700
      %1779 = vst.msk [vmem:[#allocation2 + $0x88] sm:$0xff] %vm1230, %v1702
      %1780 = vst.msk [vmem:[#allocation2 + $0x90] sm:$0xff] %vm1230, %v1704
      %1781 = vst.msk [vmem:[#allocation2 + $0x98] sm:$0xff] %vm1230, %v1706
      %1782 = vst.msk [vmem:[#allocation2 + $0xa0] sm:$0xff] %vm1230, %v1708
      %1783 = vst.msk [vmem:[#allocation2 + $0xa8] sm:$0xff] %vm1230, %v1710
      %1784 = vst.msk [vmem:[#allocation2 + $0xb0] sm:$0xff] %vm1230, %v1712
      %1785 = vst.msk [vmem:[#allocation2 + $0xb8] sm:$0xff] %vm1230, %v1714
      %1786 = vst.msk [vmem:[#allocation2 + $0xc0] sm:$0xff] %vm1230, %v1716
      %1787 = vst.msk [vmem:[#allocation2 + $0xc8] sm:$0xff] %vm1230, %v1718
      %1788 = vst.msk [vmem:[#allocation2 + $0xd0] sm:$0xff] %vm1230, %v1720
      %1789 = vst.msk [vmem:[#allocation2 + $0xd8] sm:$0xff] %vm1230, %v1722
      %1790 = vst.msk [vmem:[#allocation2 + $0xe0] sm:$0xff] %vm1230, %v1724
      %1791 = vst.msk [vmem:[#allocation2 + $0xe8] sm:$0xff] %vm1230, %v1726
      %1792 = vst.msk [vmem:[#allocation2 + $0xf0] sm:$0xff] %vm1230, %v1728
      %1793 = vst.msk [vmem:[#allocation2 + $0xf8] sm:$0xff] %vm1230, %v1730
      %vm1794 = vcmask 254144
      %1795 = vst.msk [vmem:[#allocation2] sm:$0x1] %vm1794, 0.0
      %v1796 = vadd.s32 %v421, 4294967295
      %v1797 = vadd.s32 %v422, 4294967295
      %vm1798 = vcmp.ge.s32.totalorder %v1796, 0
      %vm1799 = vcmp.ge.s32.totalorder %v1797, 0
      %vm1800 = vcmp.lt.s32.totalorder %v1796, 16
      %vm1801 = vcmp.lt.s32.totalorder %v1797, 16
      %vm1802 = vmand %vm1798, %vm1800
      %vm1803 = vmand %vm1799, %vm1801
      %v1804 = vsel %vm1802, 1, 0
      %v1805 = vsel %vm1803, 1, 0
      %1806 = vset.pattern.permute.xlu0 0
      %1807 = vperm.xlu0 %1806, %v1804
      %v1808 = vpop.permute.xlu0 %1807
      %1809 = vset.pattern.permute.xlu0 0
      %1810 = vperm.xlu0 %1809, %v1805
      %v1811 = vpop.permute.xlu0 %1810
      %vm1812 = vcmp.eq.s32.totalorder %v1808, 1
      %vm1813 = vcmp.eq.s32.totalorder %v1811, 1
      %v1815 = vrot.slane %v639, 7
      %v1816 = vsel %vm956, %v1014, %v1815
      %v1817 = vrot.slane %v640, 7
      %v1818 = vsel %vm956, %v1815, %v1817
      %v1821 = vsel %vm1812, %v957, 0.0
      %v1822 = vsel %vm1813, %v959, 0.0
      %v1823 = vsel %vm896, %v961, 0.0
      %v1824 = vsel %vm897, %v963, 0.0
      %v1825 = vsel %vm898, %v965, 0.0
      %v1826 = vsel %vm899, %v967, 0.0
      %v1827 = vsel %vm900, %v969, 0.0
      %v1828 = vsel %vm901, %v971, 0.0
      %v1829 = vsel %vm902, %v973, 0.0
      %v1830 = vsel %vm903, %v975, 0.0
      %v1831 = vsel %vm904, %v977, 0.0
      %v1832 = vsel %vm905, %v979, 0.0
      %v1833 = vsel %vm906, %v981, 0.0
      %v1834 = vsel %vm907, %v983, 0.0
      %v1835 = vsel %vm908, %v985, 0.0
      %v1836 = vsel %vm909, %v987, 0.0
      %v1837 = vsel %vm910, %v989, 0.0
      %v1838 = vsel %vm911, %v991, 0.0
      %v1839 = vsel %vm912, %v993, 0.0
      %v1840 = vsel %vm913, %v995, 0.0
      %v1841 = vsel %vm914, %v997, 0.0
      %v1842 = vsel %vm915, %v999, 0.0
      %v1843 = vsel %vm916, %v1001, 0.0
      %v1844 = vsel %vm917, %v1003, 0.0
      %v1845 = vsel %vm918, %v1005, 0.0
      %v1846 = vsel %vm919, %v1007, 0.0
      %v1847 = vsel %vm920, %v1009, 0.0
      %v1848 = vsel %vm921, %v1011, 0.0
      %v1849 = vsel %vm922, %v1013, 0.0
      %v1850 = vsel %vm923, %v1015, 0.0
      %v1851 = vsel %vm924, %v1816, 0.0
      %v1852 = vsel %vm925, %v1818, 0.0
      %1885 = vrot.lane.b32.xlu0 %v1821, 24
      %v1886 = vpop.permute.xlu0 %1885
      %1887 = vrot.lane.b32.xlu0 %v1822, 24
      %v1888 = vpop.permute.xlu0 %1887
      %1889 = vrot.lane.b32.xlu0 %v1823, 24
      %v1890 = vpop.permute.xlu0 %1889
      %1891 = vrot.lane.b32.xlu0 %v1824, 24
      %v1892 = vpop.permute.xlu0 %1891
      %1893 = vrot.lane.b32.xlu0 %v1825, 24
      %v1894 = vpop.permute.xlu0 %1893
      %1895 = vrot.lane.b32.xlu0 %v1826, 24
      %v1896 = vpop.permute.xlu0 %1895
      %1897 = vrot.lane.b32.xlu0 %v1827, 24
      %v1898 = vpop.permute.xlu0 %1897
      %1899 = vrot.lane.b32.xlu0 %v1828, 24
      %v1900 = vpop.permute.xlu0 %1899
      %1901 = vrot.lane.b32.xlu0 %v1829, 24
      %v1902 = vpop.permute.xlu0 %1901
      %1903 = vrot.lane.b32.xlu0 %v1830, 24
      %v1904 = vpop.permute.xlu0 %1903
      %1905 = vrot.lane.b32.xlu0 %v1831, 24
      %v1906 = vpop.permute.xlu0 %1905
      %1907 = vrot.lane.b32.xlu0 %v1832, 24
      %v1908 = vpop.permute.xlu0 %1907
      %1909 = vrot.lane.b32.xlu0 %v1833, 24
      %v1910 = vpop.permute.xlu0 %1909
      %1911 = vrot.lane.b32.xlu0 %v1834, 24
      %v1912 = vpop.permute.xlu0 %1911
      %1913 = vrot.lane.b32.xlu0 %v1835, 24
      %v1914 = vpop.permute.xlu0 %1913
      %1915 = vrot.lane.b32.xlu0 %v1836, 24
      %v1916 = vpop.permute.xlu0 %1915
      %1917 = vrot.lane.b32.xlu0 %v1837, 24
      %v1918 = vpop.permute.xlu0 %1917
      %1919 = vrot.lane.b32.xlu0 %v1838, 24
      %v1920 = vpop.permute.xlu0 %1919
      %1921 = vrot.lane.b32.xlu0 %v1839, 24
      %v1922 = vpop.permute.xlu0 %1921
      %1923 = vrot.lane.b32.xlu0 %v1840, 24
      %v1924 = vpop.permute.xlu0 %1923
      %1925 = vrot.lane.b32.xlu0 %v1841, 24
      %v1926 = vpop.permute.xlu0 %1925
      %1927 = vrot.lane.b32.xlu0 %v1842, 24
      %v1928 = vpop.permute.xlu0 %1927
      %1929 = vrot.lane.b32.xlu0 %v1843, 24
      %v1930 = vpop.permute.xlu0 %1929
      %1931 = vrot.lane.b32.xlu0 %v1844, 24
      %v1932 = vpop.permute.xlu0 %1931
      %1933 = vrot.lane.b32.xlu0 %v1845, 24
      %v1934 = vpop.permute.xlu0 %1933
      %1935 = vrot.lane.b32.xlu0 %v1846, 24
      %v1936 = vpop.permute.xlu0 %1935
      %1937 = vrot.lane.b32.xlu0 %v1847, 24
      %v1938 = vpop.permute.xlu0 %1937
      %1939 = vrot.lane.b32.xlu0 %v1848, 24
      %v1940 = vpop.permute.xlu0 %1939
      %1941 = vrot.lane.b32.xlu0 %v1849, 24
      %v1942 = vpop.permute.xlu0 %1941
      %1943 = vrot.lane.b32.xlu0 %v1850, 24
      %v1944 = vpop.permute.xlu0 %1943
      %1945 = vrot.lane.b32.xlu0 %v1851, 24
      %v1946 = vpop.permute.xlu0 %1945
      %1947 = vrot.lane.b32.xlu0 %v1852, 24
      %v1948 = vpop.permute.xlu0 %1947
      %vm1981 = vcmask 261313
      %1982 = vst.msk [vmem:[#allocation2] sm:$0xfe] %vm1981, %v1886
      %vm1983 = vcmask 261312
      %1984 = vst.msk [vmem:[#allocation2 + $0x8] sm:$0xff] %vm1983, %v1888
      %1985 = vst.msk [vmem:[#allocation2 + $0x10] sm:$0xff] %vm1983, %v1890
      %1986 = vst.msk [vmem:[#allocation2 + $0x18] sm:$0xff] %vm1983, %v1892
      %1987 = vst.msk [vmem:[#allocation2 + $0x20] sm:$0xff] %vm1983, %v1894
      %1988 = vst.msk [vmem:[#allocation2 + $0x28] sm:$0xff] %vm1983, %v1896
      %1989 = vst.msk [vmem:[#allocation2 + $0x30] sm:$0xff] %vm1983, %v1898
      %1990 = vst.msk [vmem:[#allocation2 + $0x38] sm:$0xff] %vm1983, %v1900
      %1991 = vst.msk [vmem:[#allocation2 + $0x40] sm:$0xff] %vm1983, %v1902
      %1992 = vst.msk [vmem:[#allocation2 + $0x48] sm:$0xff] %vm1983, %v1904
      %1993 = vst.msk [vmem:[#allocation2 + $0x50] sm:$0xff] %vm1983, %v1906
      %1994 = vst.msk [vmem:[#allocation2 + $0x58] sm:$0xff] %vm1983, %v1908
      %1995 = vst.msk [vmem:[#allocation2 + $0x60] sm:$0xff] %vm1983, %v1910
      %1996 = vst.msk [vmem:[#allocation2 + $0x68] sm:$0xff] %vm1983, %v1912
      %1997 = vst.msk [vmem:[#allocation2 + $0x70] sm:$0xff] %vm1983, %v1914
      %1998 = vst.msk [vmem:[#allocation2 + $0x78] sm:$0xff] %vm1983, %v1916
      %1999 = vst.msk [vmem:[#allocation2 + $0x80] sm:$0xff] %vm1983, %v1918
      %2000 = vst.msk [vmem:[#allocation2 + $0x88] sm:$0xff] %vm1983, %v1920
      %2001 = vst.msk [vmem:[#allocation2 + $0x90] sm:$0xff] %vm1983, %v1922
      %2002 = vst.msk [vmem:[#allocation2 + $0x98] sm:$0xff] %vm1983, %v1924
      %2003 = vst.msk [vmem:[#allocation2 + $0xa0] sm:$0xff] %vm1983, %v1926
      %2004 = vst.msk [vmem:[#allocation2 + $0xa8] sm:$0xff] %vm1983, %v1928
      %2005 = vst.msk [vmem:[#allocation2 + $0xb0] sm:$0xff] %vm1983, %v1930
      %2006 = vst.msk [vmem:[#allocation2 + $0xb8] sm:$0xff] %vm1983, %v1932
      %2007 = vst.msk [vmem:[#allocation2 + $0xc0] sm:$0xff] %vm1983, %v1934
      %2008 = vst.msk [vmem:[#allocation2 + $0xc8] sm:$0xff] %vm1983, %v1936
      %2009 = vst.msk [vmem:[#allocation2 + $0xd0] sm:$0xff] %vm1983, %v1938
      %2010 = vst.msk [vmem:[#allocation2 + $0xd8] sm:$0xff] %vm1983, %v1940
      %2011 = vst.msk [vmem:[#allocation2 + $0xe0] sm:$0xff] %vm1983, %v1942
      %2012 = vst.msk [vmem:[#allocation2 + $0xe8] sm:$0xff] %vm1983, %v1944
      %2013 = vst.msk [vmem:[#allocation2 + $0xf0] sm:$0xff] %vm1983, %v1946
      %2014 = vst.msk [vmem:[#allocation2 + $0xf8] sm:$0xff] %vm1983, %v1948
      %2015 = vrot.lane.b32.xlu0 %v609, 32
      %v2016 = vpop.permute.xlu0 %2015
      %2017 = vrot.lane.b32.xlu0 %v610, 32
      %v2018 = vpop.permute.xlu0 %2017
      %2019 = vrot.lane.b32.xlu0 %v611, 32
      %v2020 = vpop.permute.xlu0 %2019
      %2021 = vrot.lane.b32.xlu0 %v612, 32
      %v2022 = vpop.permute.xlu0 %2021
      %2023 = vrot.lane.b32.xlu0 %v613, 32
      %v2024 = vpop.permute.xlu0 %2023
      %2025 = vrot.lane.b32.xlu0 %v614, 32
      %v2026 = vpop.permute.xlu0 %2025
      %2027 = vrot.lane.b32.xlu0 %v615, 32
      %v2028 = vpop.permute.xlu0 %2027
      %2029 = vrot.lane.b32.xlu0 %v616, 32
      %v2030 = vpop.permute.xlu0 %2029
      %2031 = vrot.lane.b32.xlu0 %v617, 32
      %v2032 = vpop.permute.xlu0 %2031
      %2033 = vrot.lane.b32.xlu0 %v618, 32
      %v2034 = vpop.permute.xlu0 %2033
      %2035 = vrot.lane.b32.xlu0 %v619, 32
      %v2036 = vpop.permute.xlu0 %2035
      %2037 = vrot.lane.b32.xlu0 %v620, 32
      %v2038 = vpop.permute.xlu0 %2037
      %2039 = vrot.lane.b32.xlu0 %v621, 32
      %v2040 = vpop.permute.xlu0 %2039
      %2041 = vrot.lane.b32.xlu0 %v622, 32
      %v2042 = vpop.permute.xlu0 %2041
      %2043 = vrot.lane.b32.xlu0 %v623, 32
      %v2044 = vpop.permute.xlu0 %2043
      %2045 = vrot.lane.b32.xlu0 %v624, 32
      %v2046 = vpop.permute.xlu0 %2045
      %2047 = vrot.lane.b32.xlu0 %v625, 32
      %v2048 = vpop.permute.xlu0 %2047
      %2049 = vrot.lane.b32.xlu0 %v626, 32
      %v2050 = vpop.permute.xlu0 %2049
      %2051 = vrot.lane.b32.xlu0 %v627, 32
      %v2052 = vpop.permute.xlu0 %2051
      %2053 = vrot.lane.b32.xlu0 %v628, 32
      %v2054 = vpop.permute.xlu0 %2053
      %2055 = vrot.lane.b32.xlu0 %v629, 32
      %v2056 = vpop.permute.xlu0 %2055
      %2057 = vrot.lane.b32.xlu0 %v630, 32
      %v2058 = vpop.permute.xlu0 %2057
      %2059 = vrot.lane.b32.xlu0 %v631, 32
      %v2060 = vpop.permute.xlu0 %2059
      %2061 = vrot.lane.b32.xlu0 %v632, 32
      %v2062 = vpop.permute.xlu0 %2061
      %2063 = vrot.lane.b32.xlu0 %v633, 32
      %v2064 = vpop.permute.xlu0 %2063
      %2065 = vrot.lane.b32.xlu0 %v634, 32
      %v2066 = vpop.permute.xlu0 %2065
      %2067 = vrot.lane.b32.xlu0 %v635, 32
      %v2068 = vpop.permute.xlu0 %2067
      %2069 = vrot.lane.b32.xlu0 %v636, 32
      %v2070 = vpop.permute.xlu0 %2069
      %2071 = vrot.lane.b32.xlu0 %v637, 32
      %v2072 = vpop.permute.xlu0 %2071
      %2073 = vrot.lane.b32.xlu0 %v638, 32
      %v2074 = vpop.permute.xlu0 %2073
      %2075 = vrot.lane.b32.xlu0 %v639, 32
      %v2076 = vpop.permute.xlu0 %2075
      %2077 = vrot.lane.b32.xlu0 %v640, 32
      %v2078 = vpop.permute.xlu0 %2077
      %vm2111 = vcmask 326912
      %2112 = vst.msk [vmem:[#allocation2] sm:$0xff] %vm2111, %v2016
      %2113 = vst.msk [vmem:[#allocation2 + $0x8] sm:$0xff] %vm2111, %v2018
      %2114 = vst.msk [vmem:[#allocation2 + $0x10] sm:$0xff] %vm2111, %v2020
      %2115 = vst.msk [vmem:[#allocation2 + $0x18] sm:$0xff] %vm2111, %v2022
      %2116 = vst.msk [vmem:[#allocation2 + $0x20] sm:$0xff] %vm2111, %v2024
      %2117 = vst.msk [vmem:[#allocation2 + $0x28] sm:$0xff] %vm2111, %v2026
      %2118 = vst.msk [vmem:[#allocation2 + $0x30] sm:$0xff] %vm2111, %v2028
      %2119 = vst.msk [vmem:[#allocation2 + $0x38] sm:$0xff] %vm2111, %v2030
      %2120 = vst.msk [vmem:[#allocation2 + $0x40] sm:$0xff] %vm2111, %v2032
      %2121 = vst.msk [vmem:[#allocation2 + $0x48] sm:$0xff] %vm2111, %v2034
      %2122 = vst.msk [vmem:[#allocation2 + $0x50] sm:$0xff] %vm2111, %v2036
      %2123 = vst.msk [vmem:[#allocation2 + $0x58] sm:$0xff] %vm2111, %v2038
      %2124 = vst.msk [vmem:[#allocation2 + $0x60] sm:$0xff] %vm2111, %v2040
      %2125 = vst.msk [vmem:[#allocation2 + $0x68] sm:$0xff] %vm2111, %v2042
      %2126 = vst.msk [vmem:[#allocation2 + $0x70] sm:$0xff] %vm2111, %v2044
      %2127 = vst.msk [vmem:[#allocation2 + $0x78] sm:$0xff] %vm2111, %v2046
      %2128 = vst.msk [vmem:[#allocation2 + $0x80] sm:$0xff] %vm2111, %v2048
      %2129 = vst.msk [vmem:[#allocation2 + $0x88] sm:$0xff] %vm2111, %v2050
      %2130 = vst.msk [vmem:[#allocation2 + $0x90] sm:$0xff] %vm2111, %v2052
      %2131 = vst.msk [vmem:[#allocation2 + $0x98] sm:$0xff] %vm2111, %v2054
      %2132 = vst.msk [vmem:[#allocation2 + $0xa0] sm:$0xff] %vm2111, %v2056
      %2133 = vst.msk [vmem:[#allocation2 + $0xa8] sm:$0xff] %vm2111, %v2058
      %2134 = vst.msk [vmem:[#allocation2 + $0xb0] sm:$0xff] %vm2111, %v2060
      %2135 = vst.msk [vmem:[#allocation2 + $0xb8] sm:$0xff] %vm2111, %v2062
      %2136 = vst.msk [vmem:[#allocation2 + $0xc0] sm:$0xff] %vm2111, %v2064
      %2137 = vst.msk [vmem:[#allocation2 + $0xc8] sm:$0xff] %vm2111, %v2066
      %2138 = vst.msk [vmem:[#allocation2 + $0xd0] sm:$0xff] %vm2111, %v2068
      %2139 = vst.msk [vmem:[#allocation2 + $0xd8] sm:$0xff] %vm2111, %v2070
      %2140 = vst.msk [vmem:[#allocation2 + $0xe0] sm:$0xff] %vm2111, %v2072
      %2141 = vst.msk [vmem:[#allocation2 + $0xe8] sm:$0xff] %vm2111, %v2074
      %2142 = vst.msk [vmem:[#allocation2 + $0xf0] sm:$0xff] %vm2111, %v2076
      %2143 = vst.msk [vmem:[#allocation2 + $0xf8] sm:$0xff] %vm2111, %v2078
      %vm2144 = vcmask 385344
      %2145 = vst.msk [vmem:[#allocation2 + $0xff] sm:$0x1] %vm2144, 0.0
      %v2146 = vadd.s32 %v421, 1
      %vm2147 = vcmp.ge.s32.totalorder %v2146, 0
      %vm2148 = vcmp.lt.s32.totalorder %v2146, 16
      %vm2149 = vmand %vm2147, %vm2148
      %v2150 = vsel %vm2149, 1, 0
      %2151 = vset.pattern.permute.xlu0 0
      %2152 = vperm.xlu0 %2151, %v2150
      %v2153 = vpop.permute.xlu0 %2152
      %vm2154 = vcmp.eq.s32.totalorder %v2153, 1
      %v2155 = vrot.slane %v640, 1
      %v2156 = vsel %vm1514, %v1574, %v2155
      %v2159 = vsel %vm2154, %v1517, 0.0
      %v2160 = vsel %vm1482, %v1519, 0.0
      %v2161 = vsel %vm1483, %v1521, 0.0
      %v2162 = vsel %vm1484, %v1523, 0.0
      %v2163 = vsel %vm1485, %v1525, 0.0
      %v2164 = vsel %vm1486, %v1527, 0.0
      %v2165 = vsel %vm1487, %v1529, 0.0
      %v2166 = vsel %vm1488, %v1531, 0.0
      %v2167 = vsel %vm1489, %v1533, 0.0
      %v2168 = vsel %vm1490, %v1535, 0.0
      %v2169 = vsel %vm1491, %v1537, 0.0
      %v2170 = vsel %vm1492, %v1539, 0.0
      %v2171 = vsel %vm1493, %v1541, 0.0
      %v2172 = vsel %vm1494, %v1543, 0.0
      %v2173 = vsel %vm1495, %v1545, 0.0
      %v2174 = vsel %vm1496, %v1547, 0.0
      %v2175 = vsel %vm1497, %v1549, 0.0
      %v2176 = vsel %vm1498, %v1551, 0.0
      %v2177 = vsel %vm1499, %v1553, 0.0
      %v2178 = vsel %vm1500, %v1555, 0.0
      %v2179 = vsel %vm1501, %v1557, 0.0
      %v2180 = vsel %vm1502, %v1559, 0.0
      %v2181 = vsel %vm1503, %v1561, 0.0
      %v2182 = vsel %vm1504, %v1563, 0.0
      %v2183 = vsel %vm1505, %v1565, 0.0
      %v2184 = vsel %vm1506, %v1567, 0.0
      %v2185 = vsel %vm1507, %v1569, 0.0
      %v2186 = vsel %vm1508, %v1571, 0.0
      %v2187 = vsel %vm1509, %v1573, 0.0
      %v2188 = vsel %vm1510, %v1575, 0.0
      %v2189 = vsel %vm1511, %v2156, 0.0
      %v2190 = vsel %vm1512, %v2155, 0.0
      %2223 = vrot.lane.b32.xlu0 %v2159, 40
      %v2224 = vpop.permute.xlu0 %2223
      %2225 = vrot.lane.b32.xlu0 %v2160, 40
      %v2226 = vpop.permute.xlu0 %2225
      %2227 = vrot.lane.b32.xlu0 %v2161, 40
      %v2228 = vpop.permute.xlu0 %2227
      %2229 = vrot.lane.b32.xlu0 %v2162, 40
      %v2230 = vpop.permute.xlu0 %2229
      %2231 = vrot.lane.b32.xlu0 %v2163, 40
      %v2232 = vpop.permute.xlu0 %2231
      %2233 = vrot.lane.b32.xlu0 %v2164, 40
      %v2234 = vpop.permute.xlu0 %2233
      %2235 = vrot.lane.b32.xlu0 %v2165, 40
      %v2236 = vpop.permute.xlu0 %2235
      %2237 = vrot.lane.b32.xlu0 %v2166, 40
      %v2238 = vpop.permute.xlu0 %2237
      %2239 = vrot.lane.b32.xlu0 %v2167, 40
      %v2240 = vpop.permute.xlu0 %2239
      %2241 = vrot.lane.b32.xlu0 %v2168, 40
      %v2242 = vpop.permute.xlu0 %2241
      %2243 = vrot.lane.b32.xlu0 %v2169, 40
      %v2244 = vpop.permute.xlu0 %2243
      %2245 = vrot.lane.b32.xlu0 %v2170, 40
      %v2246 = vpop.permute.xlu0 %2245
      %2247 = vrot.lane.b32.xlu0 %v2171, 40
      %v2248 = vpop.permute.xlu0 %2247
      %2249 = vrot.lane.b32.xlu0 %v2172, 40
      %v2250 = vpop.permute.xlu0 %2249
      %2251 = vrot.lane.b32.xlu0 %v2173, 40
      %v2252 = vpop.permute.xlu0 %2251
      %2253 = vrot.lane.b32.xlu0 %v2174, 40
      %v2254 = vpop.permute.xlu0 %2253
      %2255 = vrot.lane.b32.xlu0 %v2175, 40
      %v2256 = vpop.permute.xlu0 %2255
      %2257 = vrot.lane.b32.xlu0 %v2176, 40
      %v2258 = vpop.permute.xlu0 %2257
      %2259 = vrot.lane.b32.xlu0 %v2177, 40
      %v2260 = vpop.permute.xlu0 %2259
      %2261 = vrot.lane.b32.xlu0 %v2178, 40
      %v2262 = vpop.permute.xlu0 %2261
      %2263 = vrot.lane.b32.xlu0 %v2179, 40
      %v2264 = vpop.permute.xlu0 %2263
      %2265 = vrot.lane.b32.xlu0 %v2180, 40
      %v2266 = vpop.permute.xlu0 %2265
      %2267 = vrot.lane.b32.xlu0 %v2181, 40
      %v2268 = vpop.permute.xlu0 %2267
      %2269 = vrot.lane.b32.xlu0 %v2182, 40
      %v2270 = vpop.permute.xlu0 %2269
      %2271 = vrot.lane.b32.xlu0 %v2183, 40
      %v2272 = vpop.permute.xlu0 %2271
      %2273 = vrot.lane.b32.xlu0 %v2184, 40
      %v2274 = vpop.permute.xlu0 %2273
      %2275 = vrot.lane.b32.xlu0 %v2185, 40
      %v2276 = vpop.permute.xlu0 %2275
      %2277 = vrot.lane.b32.xlu0 %v2186, 40
      %v2278 = vpop.permute.xlu0 %2277
      %2279 = vrot.lane.b32.xlu0 %v2187, 40
      %v2280 = vpop.permute.xlu0 %2279
      %2281 = vrot.lane.b32.xlu0 %v2188, 40
      %v2282 = vpop.permute.xlu0 %2281
      %2283 = vrot.lane.b32.xlu0 %v2189, 40
      %v2284 = vpop.permute.xlu0 %2283
      %2285 = vrot.lane.b32.xlu0 %v2190, 40
      %v2286 = vpop.permute.xlu0 %2285
      %vm2319 = vcmask 392512
      %2320 = vst.msk [vmem:[#allocation2] sm:$0xff] %vm2319, %v2224
      %2321 = vst.msk [vmem:[#allocation2 + $0x8] sm:$0xff] %vm2319, %v2226
      %2322 = vst.msk [vmem:[#allocation2 + $0x10] sm:$0xff] %vm2319, %v2228
      %2323 = vst.msk [vmem:[#allocation2 + $0x18] sm:$0xff] %vm2319, %v2230
      %2324 = vst.msk [vmem:[#allocation2 + $0x20] sm:$0xff] %vm2319, %v2232
      %2325 = vst.msk [vmem:[#allocation2 + $0x28] sm:$0xff] %vm2319, %v2234
      %2326 = vst.msk [vmem:[#allocation2 + $0x30] sm:$0xff] %vm2319, %v2236
      %2327 = vst.msk [vmem:[#allocation2 + $0x38] sm:$0xff] %vm2319, %v2238
      %2328 = vst.msk [vmem:[#allocation2 + $0x40] sm:$0xff] %vm2319, %v2240
      %2329 = vst.msk [vmem:[#allocation2 + $0x48] sm:$0xff] %vm2319, %v2242
      %2330 = vst.msk [vmem:[#allocation2 + $0x50] sm:$0xff] %vm2319, %v2244
      %2331 = vst.msk [vmem:[#allocation2 + $0x58] sm:$0xff] %vm2319, %v2246
      %2332 = vst.msk [vmem:[#allocation2 + $0x60] sm:$0xff] %vm2319, %v2248
      %2333 = vst.msk [vmem:[#allocation2 + $0x68] sm:$0xff] %vm2319, %v2250
      %2334 = vst.msk [vmem:[#allocation2 + $0x70] sm:$0xff] %vm2319, %v2252
      %2335 = vst.msk [vmem:[#allocation2 + $0x78] sm:$0xff] %vm2319, %v2254
      %2336 = vst.msk [vmem:[#allocation2 + $0x80] sm:$0xff] %vm2319, %v2256
      %2337 = vst.msk [vmem:[#allocation2 + $0x88] sm:$0xff] %vm2319, %v2258
      %2338 = vst.msk [vmem:[#allocation2 + $0x90] sm:$0xff] %vm2319, %v2260
      %2339 = vst.msk [vmem:[#allocation2 + $0x98] sm:$0xff] %vm2319, %v2262
      %2340 = vst.msk [vmem:[#allocation2 + $0xa0] sm:$0xff] %vm2319, %v2264
      %2341 = vst.msk [vmem:[#allocation2 + $0xa8] sm:$0xff] %vm2319, %v2266
      %2342 = vst.msk [vmem:[#allocation2 + $0xb0] sm:$0xff] %vm2319, %v2268
      %2343 = vst.msk [vmem:[#allocation2 + $0xb8] sm:$0xff] %vm2319, %v2270
      %2344 = vst.msk [vmem:[#allocation2 + $0xc0] sm:$0xff] %vm2319, %v2272
      %2345 = vst.msk [vmem:[#allocation2 + $0xc8] sm:$0xff] %vm2319, %v2274
      %2346 = vst.msk [vmem:[#allocation2 + $0xd0] sm:$0xff] %vm2319, %v2276
      %2347 = vst.msk [vmem:[#allocation2 + $0xd8] sm:$0xff] %vm2319, %v2278
      %2348 = vst.msk [vmem:[#allocation2 + $0xe0] sm:$0xff] %vm2319, %v2280
      %2349 = vst.msk [vmem:[#allocation2 + $0xe8] sm:$0xff] %vm2319, %v2282
      %2350 = vst.msk [vmem:[#allocation2 + $0xf0] sm:$0xff] %vm2319, %v2284
      %vm2351 = vcmask 391488
      %2352 = vst.msk [vmem:[#allocation2 + $0xf8] sm:$0x7f] %vm2351, %v2286
      %vm2353 = vcmask 458112
      %2354 = vst.msk [vmem:[#allocation2 + $0xf1] sm:$0xff] %vm2353, 0.0
      %vm2355 = vcmask 457088
      %2356 = vst.msk [vmem:[#allocation2 + $0xf9] sm:$0x7f] %vm2355, 0.0
      %v2358 = vsel %vm1812, %v961, 0.0
      %v2359 = vsel %vm1813, %v963, 0.0
      %v2360 = vsel %vm896, %v965, 0.0
      %v2361 = vsel %vm897, %v967, 0.0
      %v2362 = vsel %vm898, %v969, 0.0
      %v2363 = vsel %vm899, %v971, 0.0
      %v2364 = vsel %vm900, %v973, 0.0
      %v2365 = vsel %vm901, %v975, 0.0
      %v2366 = vsel %vm902, %v977, 0.0
      %v2367 = vsel %vm903, %v979, 0.0
      %v2368 = vsel %vm904, %v981, 0.0
      %v2369 = vsel %vm905, %v983, 0.0
      %v2370 = vsel %vm906, %v985, 0.0
      %v2371 = vsel %vm907, %v987, 0.0
      %v2372 = vsel %vm908, %v989, 0.0
      %v2373 = vsel %vm909, %v991, 0.0
      %v2374 = vsel %vm910, %v993, 0.0
      %v2375 = vsel %vm911, %v995, 0.0
      %v2376 = vsel %vm912, %v997, 0.0
      %v2377 = vsel %vm913, %v999, 0.0
      %v2378 = vsel %vm914, %v1001, 0.0
      %v2379 = vsel %vm915, %v1003, 0.0
      %v2380 = vsel %vm916, %v1005, 0.0
      %v2381 = vsel %vm917, %v1007, 0.0
      %v2382 = vsel %vm918, %v1009, 0.0
      %v2383 = vsel %vm919, %v1011, 0.0
      %v2384 = vsel %vm920, %v1013, 0.0
      %v2385 = vsel %vm921, %v1015, 0.0
      %v2386 = vsel %vm922, %v1816, 0.0
      %v2387 = vsel %vm923, %v1818, 0.0
      %v2388 = vsel %vm924, %v1817, 0.0
      %2420 = vrot.lane.b32.xlu0 %v2358, 48
      %v2421 = vpop.permute.xlu0 %2420
      %2422 = vrot.lane.b32.xlu0 %v2359, 48
      %v2423 = vpop.permute.xlu0 %2422
      %2424 = vrot.lane.b32.xlu0 %v2360, 48
      %v2425 = vpop.permute.xlu0 %2424
      %2426 = vrot.lane.b32.xlu0 %v2361, 48
      %v2427 = vpop.permute.xlu0 %2426
      %2428 = vrot.lane.b32.xlu0 %v2362, 48
      %v2429 = vpop.permute.xlu0 %2428
      %2430 = vrot.lane.b32.xlu0 %v2363, 48
      %v2431 = vpop.permute.xlu0 %2430
      %2432 = vrot.lane.b32.xlu0 %v2364, 48
      %v2433 = vpop.permute.xlu0 %2432
      %2434 = vrot.lane.b32.xlu0 %v2365, 48
      %v2435 = vpop.permute.xlu0 %2434
      %2436 = vrot.lane.b32.xlu0 %v2366, 48
      %v2437 = vpop.permute.xlu0 %2436
      %2438 = vrot.lane.b32.xlu0 %v2367, 48
      %v2439 = vpop.permute.xlu0 %2438
      %2440 = vrot.lane.b32.xlu0 %v2368, 48
      %v2441 = vpop.permute.xlu0 %2440
      %2442 = vrot.lane.b32.xlu0 %v2369, 48
      %v2443 = vpop.permute.xlu0 %2442
      %2444 = vrot.lane.b32.xlu0 %v2370, 48
      %v2445 = vpop.permute.xlu0 %2444
      %2446 = vrot.lane.b32.xlu0 %v2371, 48
      %v2447 = vpop.permute.xlu0 %2446
      %2448 = vrot.lane.b32.xlu0 %v2372, 48
      %v2449 = vpop.permute.xlu0 %2448
      %2450 = vrot.lane.b32.xlu0 %v2373, 48
      %v2451 = vpop.permute.xlu0 %2450
      %2452 = vrot.lane.b32.xlu0 %v2374, 48
      %v2453 = vpop.permute.xlu0 %2452
      %2454 = vrot.lane.b32.xlu0 %v2375, 48
      %v2455 = vpop.permute.xlu0 %2454
      %2456 = vrot.lane.b32.xlu0 %v2376, 48
      %v2457 = vpop.permute.xlu0 %2456
      %2458 = vrot.lane.b32.xlu0 %v2377, 48
      %v2459 = vpop.permute.xlu0 %2458
      %2460 = vrot.lane.b32.xlu0 %v2378, 48
      %v2461 = vpop.permute.xlu0 %2460
      %2462 = vrot.lane.b32.xlu0 %v2379, 48
      %v2463 = vpop.permute.xlu0 %2462
      %2464 = vrot.lane.b32.xlu0 %v2380, 48
      %v2465 = vpop.permute.xlu0 %2464
      %2466 = vrot.lane.b32.xlu0 %v2381, 48
      %v2467 = vpop.permute.xlu0 %2466
      %2468 = vrot.lane.b32.xlu0 %v2382, 48
      %v2469 = vpop.permute.xlu0 %2468
      %2470 = vrot.lane.b32.xlu0 %v2383, 48
      %v2471 = vpop.permute.xlu0 %2470
      %2472 = vrot.lane.b32.xlu0 %v2384, 48
      %v2473 = vpop.permute.xlu0 %2472
      %2474 = vrot.lane.b32.xlu0 %v2385, 48
      %v2475 = vpop.permute.xlu0 %2474
      %2476 = vrot.lane.b32.xlu0 %v2386, 48
      %v2477 = vpop.permute.xlu0 %2476
      %2478 = vrot.lane.b32.xlu0 %v2387, 48
      %v2479 = vpop.permute.xlu0 %2478
      %2480 = vrot.lane.b32.xlu0 %v2388, 48
      %v2481 = vpop.permute.xlu0 %2480
      %2513 = vst.msk [vmem:[#allocation2] sm:$0xff] %vm2353, %v2421
      %2514 = vst.msk [vmem:[#allocation2 + $0x8] sm:$0xff] %vm2353, %v2423
      %2515 = vst.msk [vmem:[#allocation2 + $0x10] sm:$0xff] %vm2353, %v2425
      %2516 = vst.msk [vmem:[#allocation2 + $0x18] sm:$0xff] %vm2353, %v2427
      %2517 = vst.msk [vmem:[#allocation2 + $0x20] sm:$0xff] %vm2353, %v2429
      %2518 = vst.msk [vmem:[#allocation2 + $0x28] sm:$0xff] %vm2353, %v2431
      %2519 = vst.msk [vmem:[#allocation2 + $0x30] sm:$0xff] %vm2353, %v2433
      %2520 = vst.msk [vmem:[#allocation2 + $0x38] sm:$0xff] %vm2353, %v2435
      %2521 = vst.msk [vmem:[#allocation2 + $0x40] sm:$0xff] %vm2353, %v2437
      %2522 = vst.msk [vmem:[#allocation2 + $0x48] sm:$0xff] %vm2353, %v2439
      %2523 = vst.msk [vmem:[#allocation2 + $0x50] sm:$0xff] %vm2353, %v2441
      %2524 = vst.msk [vmem:[#allocation2 + $0x58] sm:$0xff] %vm2353, %v2443
      %2525 = vst.msk [vmem:[#allocation2 + $0x60] sm:$0xff] %vm2353, %v2445
      %2526 = vst.msk [vmem:[#allocation2 + $0x68] sm:$0xff] %vm2353, %v2447
      %2527 = vst.msk [vmem:[#allocation2 + $0x70] sm:$0xff] %vm2353, %v2449
      %2528 = vst.msk [vmem:[#allocation2 + $0x78] sm:$0xff] %vm2353, %v2451
      %2529 = vst.msk [vmem:[#allocation2 + $0x80] sm:$0xff] %vm2353, %v2453
      %2530 = vst.msk [vmem:[#allocation2 + $0x88] sm:$0xff] %vm2353, %v2455
      %2531 = vst.msk [vmem:[#allocation2 + $0x90] sm:$0xff] %vm2353, %v2457
      %2532 = vst.msk [vmem:[#allocation2 + $0x98] sm:$0xff] %vm2353, %v2459
      %2533 = vst.msk [vmem:[#allocation2 + $0xa0] sm:$0xff] %vm2353, %v2461
      %2534 = vst.msk [vmem:[#allocation2 + $0xa8] sm:$0xff] %vm2353, %v2463
      %2535 = vst.msk [vmem:[#allocation2 + $0xb0] sm:$0xff] %vm2353, %v2465
      %2536 = vst.msk [vmem:[#allocation2 + $0xb8] sm:$0xff] %vm2353, %v2467
      %2537 = vst.msk [vmem:[#allocation2 + $0xc0] sm:$0xff] %vm2353, %v2469
      %2538 = vst.msk [vmem:[#allocation2 + $0xc8] sm:$0xff] %vm2353, %v2471
      %2539 = vst.msk [vmem:[#allocation2 + $0xd0] sm:$0xff] %vm2353, %v2473
      %2540 = vst.msk [vmem:[#allocation2 + $0xd8] sm:$0xff] %vm2353, %v2475
      %2541 = vst.msk [vmem:[#allocation2 + $0xe0] sm:$0xff] %vm2353, %v2477
      %2542 = vst.msk [vmem:[#allocation2 + $0xe8] sm:$0xff] %vm2353, %v2479
      %vm2543 = vcmask 450944
      %2544 = vst.msk [vmem:[#allocation2 + $0xf0] sm:$0x1] %vm2543, %v2481
      %vm2545 = vcmask 523712
      %2546 = vst.msk [vmem:[#allocation2 + $0xf0] sm:$0xff] %vm2545, 0.0
      %2547 = vst.msk [vmem:[#allocation2 + $0xf8] sm:$0xff] %vm2545, 0.0
      %2548 = vrot.lane.b32.xlu0 %v611, 56
      %v2549 = vpop.permute.xlu0 %2548
      %2550 = vrot.lane.b32.xlu0 %v612, 56
      %v2551 = vpop.permute.xlu0 %2550
      %2552 = vrot.lane.b32.xlu0 %v613, 56
      %v2553 = vpop.permute.xlu0 %2552
      %2554 = vrot.lane.b32.xlu0 %v614, 56
      %v2555 = vpop.permute.xlu0 %2554
      %2556 = vrot.lane.b32.xlu0 %v615, 56
      %v2557 = vpop.permute.xlu0 %2556
      %2558 = vrot.lane.b32.xlu0 %v616, 56
      %v2559 = vpop.permute.xlu0 %2558
      %2560 = vrot.lane.b32.xlu0 %v617, 56
      %v2561 = vpop.permute.xlu0 %2560
      %2562 = vrot.lane.b32.xlu0 %v618, 56
      %v2563 = vpop.permute.xlu0 %2562
      %2564 = vrot.lane.b32.xlu0 %v619, 56
      %v2565 = vpop.permute.xlu0 %2564
      %2566 = vrot.lane.b32.xlu0 %v620, 56
      %v2567 = vpop.permute.xlu0 %2566
      %2568 = vrot.lane.b32.xlu0 %v621, 56
      %v2569 = vpop.permute.xlu0 %2568
      %2570 = vrot.lane.b32.xlu0 %v622, 56
      %v2571 = vpop.permute.xlu0 %2570
      %2572 = vrot.lane.b32.xlu0 %v623, 56
      %v2573 = vpop.permute.xlu0 %2572
      %2574 = vrot.lane.b32.xlu0 %v624, 56
      %v2575 = vpop.permute.xlu0 %2574
      %2576 = vrot.lane.b32.xlu0 %v625, 56
      %v2577 = vpop.permute.xlu0 %2576
      %2578 = vrot.lane.b32.xlu0 %v626, 56
      %v2579 = vpop.permute.xlu0 %2578
      %2580 = vrot.lane.b32.xlu0 %v627, 56
      %v2581 = vpop.permute.xlu0 %2580
      %2582 = vrot.lane.b32.xlu0 %v628, 56
      %v2583 = vpop.permute.xlu0 %2582
      %2584 = vrot.lane.b32.xlu0 %v629, 56
      %v2585 = vpop.permute.xlu0 %2584
      %2586 = vrot.lane.b32.xlu0 %v630, 56
      %v2587 = vpop.permute.xlu0 %2586
      %2588 = vrot.lane.b32.xlu0 %v631, 56
      %v2589 = vpop.permute.xlu0 %2588
      %2590 = vrot.lane.b32.xlu0 %v632, 56
      %v2591 = vpop.permute.xlu0 %2590
      %2592 = vrot.lane.b32.xlu0 %v633, 56
      %v2593 = vpop.permute.xlu0 %2592
      %2594 = vrot.lane.b32.xlu0 %v634, 56
      %v2595 = vpop.permute.xlu0 %2594
      %2596 = vrot.lane.b32.xlu0 %v635, 56
      %v2597 = vpop.permute.xlu0 %2596
      %2598 = vrot.lane.b32.xlu0 %v636, 56
      %v2599 = vpop.permute.xlu0 %2598
      %2600 = vrot.lane.b32.xlu0 %v637, 56
      %v2601 = vpop.permute.xlu0 %2600
      %2602 = vrot.lane.b32.xlu0 %v638, 56
      %v2603 = vpop.permute.xlu0 %2602
      %2604 = vrot.lane.b32.xlu0 %v639, 56
      %v2605 = vpop.permute.xlu0 %2604
      %2606 = vrot.lane.b32.xlu0 %v640, 56
      %v2607 = vpop.permute.xlu0 %2606
      %2638 = vst.msk [vmem:[#allocation2] sm:$0xff] %vm2545, %v2549
      %2639 = vst.msk [vmem:[#allocation2 + $0x8] sm:$0xff] %vm2545, %v2551
      %2640 = vst.msk [vmem:[#allocation2 + $0x10] sm:$0xff] %vm2545, %v2553
      %2641 = vst.msk [vmem:[#allocation2 + $0x18] sm:$0xff] %vm2545, %v2555
      %2642 = vst.msk [vmem:[#allocation2 + $0x20] sm:$0xff] %vm2545, %v2557
      %2643 = vst.msk [vmem:[#allocation2 + $0x28] sm:$0xff] %vm2545, %v2559
      %2644 = vst.msk [vmem:[#allocation2 + $0x30] sm:$0xff] %vm2545, %v2561
      %2645 = vst.msk [vmem:[#allocation2 + $0x38] sm:$0xff] %vm2545, %v2563
      %2646 = vst.msk [vmem:[#allocation2 + $0x40] sm:$0xff] %vm2545, %v2565
      %2647 = vst.msk [vmem:[#allocation2 + $0x48] sm:$0xff] %vm2545, %v2567
      %2648 = vst.msk [vmem:[#allocation2 + $0x50] sm:$0xff] %vm2545, %v2569
      %2649 = vst.msk [vmem:[#allocation2 + $0x58] sm:$0xff] %vm2545, %v2571
      %2650 = vst.msk [vmem:[#allocation2 + $0x60] sm:$0xff] %vm2545, %v2573
      %2651 = vst.msk [vmem:[#allocation2 + $0x68] sm:$0xff] %vm2545, %v2575
      %2652 = vst.msk [vmem:[#allocation2 + $0x70] sm:$0xff] %vm2545, %v2577
      %2653 = vst.msk [vmem:[#allocation2 + $0x78] sm:$0xff] %vm2545, %v2579
      %2654 = vst.msk [vmem:[#allocation2 + $0x80] sm:$0xff] %vm2545, %v2581
      %2655 = vst.msk [vmem:[#allocation2 + $0x88] sm:$0xff] %vm2545, %v2583
      %2656 = vst.msk [vmem:[#allocation2 + $0x90] sm:$0xff] %vm2545, %v2585
      %2657 = vst.msk [vmem:[#allocation2 + $0x98] sm:$0xff] %vm2545, %v2587
      %2658 = vst.msk [vmem:[#allocation2 + $0xa0] sm:$0xff] %vm2545, %v2589
      %2659 = vst.msk [vmem:[#allocation2 + $0xa8] sm:$0xff] %vm2545, %v2591
      %2660 = vst.msk [vmem:[#allocation2 + $0xb0] sm:$0xff] %vm2545, %v2593
      %2661 = vst.msk [vmem:[#allocation2 + $0xb8] sm:$0xff] %vm2545, %v2595
      %2662 = vst.msk [vmem:[#allocation2 + $0xc0] sm:$0xff] %vm2545, %v2597
      %2663 = vst.msk [vmem:[#allocation2 + $0xc8] sm:$0xff] %vm2545, %v2599
      %2664 = vst.msk [vmem:[#allocation2 + $0xd0] sm:$0xff] %vm2545, %v2601
      %2665 = vst.msk [vmem:[#allocation2 + $0xd8] sm:$0xff] %vm2545, %v2603
      %2666 = vst.msk [vmem:[#allocation2 + $0xe0] sm:$0xff] %vm2545, %v2605
      %2667 = vst.msk [vmem:[#allocation2 + $0xe8] sm:$0xff] %vm2545, %v2607
      %vm2668 = vcmask 589312
      %2669 = vst.msk [vmem:[#allocation2 + $0xef] sm:$0xff] %vm2668, 0.0
      %2670 = vst.msk [vmem:[#allocation2 + $0xf7] sm:$0xff] %vm2668, 0.0
      %vm2671 = vcmask 582144
      %2672 = vst.msk [vmem:[#allocation2 + $0xff] sm:$0x1] %vm2671, 0.0
      %v2673 = vsel %vm2154, %v1521, 0.0
      %v2674 = vsel %vm1482, %v1523, 0.0
      %v2675 = vsel %vm1483, %v1525, 0.0
      %v2676 = vsel %vm1484, %v1527, 0.0
      %v2677 = vsel %vm1485, %v1529, 0.0
      %v2678 = vsel %vm1486, %v1531, 0.0
      %v2679 = vsel %vm1487, %v1533, 0.0
      %v2680 = vsel %vm1488, %v1535, 0.0
      %v2681 = vsel %vm1489, %v1537, 0.0
      %v2682 = vsel %vm1490, %v1539, 0.0
      %v2683 = vsel %vm1491, %v1541, 0.0
      %v2684 = vsel %vm1492, %v1543, 0.0
      %v2685 = vsel %vm1493, %v1545, 0.0
      %v2686 = vsel %vm1494, %v1547, 0.0
      %v2687 = vsel %vm1495, %v1549, 0.0
      %v2688 = vsel %vm1496, %v1551, 0.0
      %v2689 = vsel %vm1497, %v1553, 0.0
      %v2690 = vsel %vm1498, %v1555, 0.0
      %v2691 = vsel %vm1499, %v1557, 0.0
      %v2692 = vsel %vm1500, %v1559, 0.0
      %v2693 = vsel %vm1501, %v1561, 0.0
      %v2694 = vsel %vm1502, %v1563, 0.0
      %v2695 = vsel %vm1503, %v1565, 0.0
      %v2696 = vsel %vm1504, %v1567, 0.0
      %v2697 = vsel %vm1505, %v1569, 0.0
      %v2698 = vsel %vm1506, %v1571, 0.0
      %v2699 = vsel %vm1507, %v1573, 0.0
      %v2700 = vsel %vm1508, %v1575, 0.0
      %v2701 = vsel %vm1509, %v2156, 0.0
      %v2702 = vsel %vm1510, %v2155, 0.0
      %2733 = vrot.lane.b32.xlu0 %v2673, 64
      %v2734 = vpop.permute.xlu0 %2733
      %2735 = vrot.lane.b32.xlu0 %v2674, 64
      %v2736 = vpop.permute.xlu0 %2735
      %2737 = vrot.lane.b32.xlu0 %v2675, 64
      %v2738 = vpop.permute.xlu0 %2737
      %2739 = vrot.lane.b32.xlu0 %v2676, 64
      %v2740 = vpop.permute.xlu0 %2739
      %2741 = vrot.lane.b32.xlu0 %v2677, 64
      %v2742 = vpop.permute.xlu0 %2741
      %2743 = vrot.lane.b32.xlu0 %v2678, 64
      %v2744 = vpop.permute.xlu0 %2743
      %2745 = vrot.lane.b32.xlu0 %v2679, 64
      %v2746 = vpop.permute.xlu0 %2745
      %2747 = vrot.lane.b32.xlu0 %v2680, 64
      %v2748 = vpop.permute.xlu0 %2747
      %2749 = vrot.lane.b32.xlu0 %v2681, 64
      %v2750 = vpop.permute.xlu0 %2749
      %2751 = vrot.lane.b32.xlu0 %v2682, 64
      %v2752 = vpop.permute.xlu0 %2751
      %2753 = vrot.lane.b32.xlu0 %v2683, 64
      %v2754 = vpop.permute.xlu0 %2753
      %2755 = vrot.lane.b32.xlu0 %v2684, 64
      %v2756 = vpop.permute.xlu0 %2755
      %2757 = vrot.lane.b32.xlu0 %v2685, 64
      %v2758 = vpop.permute.xlu0 %2757
      %2759 = vrot.lane.b32.xlu0 %v2686, 64
      %v2760 = vpop.permute.xlu0 %2759
      %2761 = vrot.lane.b32.xlu0 %v2687, 64
      %v2762 = vpop.permute.xlu0 %2761
      %2763 = vrot.lane.b32.xlu0 %v2688, 64
      %v2764 = vpop.permute.xlu0 %2763
      %2765 = vrot.lane.b32.xlu0 %v2689, 64
      %v2766 = vpop.permute.xlu0 %2765
      %2767 = vrot.lane.b32.xlu0 %v2690, 64
      %v2768 = vpop.permute.xlu0 %2767
      %2769 = vrot.lane.b32.xlu0 %v2691, 64
      %v2770 = vpop.permute.xlu0 %2769
      %2771 = vrot.lane.b32.xlu0 %v2692, 64
      %v2772 = vpop.permute.xlu0 %2771
      %2773 = vrot.lane.b32.xlu0 %v2693, 64
      %v2774 = vpop.permute.xlu0 %2773
      %2775 = vrot.lane.b32.xlu0 %v2694, 64
      %v2776 = vpop.permute.xlu0 %2775
      %2777 = vrot.lane.b32.xlu0 %v2695, 64
      %v2778 = vpop.permute.xlu0 %2777
      %2779 = vrot.lane.b32.xlu0 %v2696, 64
      %v2780 = vpop.permute.xlu0 %2779
      %2781 = vrot.lane.b32.xlu0 %v2697, 64
      %v2782 = vpop.permute.xlu0 %2781
      %2783 = vrot.lane.b32.xlu0 %v2698, 64
      %v2784 = vpop.permute.xlu0 %2783
      %2785 = vrot.lane.b32.xlu0 %v2699, 64
      %v2786 = vpop.permute.xlu0 %2785
      %2787 = vrot.lane.b32.xlu0 %v2700, 64
      %v2788 = vpop.permute.xlu0 %2787
      %2789 = vrot.lane.b32.xlu0 %v2701, 64
      %v2790 = vpop.permute.xlu0 %2789
      %2791 = vrot.lane.b32.xlu0 %v2702, 64
      %v2792 = vpop.permute.xlu0 %2791
      %2823 = vst.msk [vmem:[#allocation2] sm:$0xff] %vm2668, %v2734
      %2824 = vst.msk [vmem:[#allocation2 + $0x8] sm:$0xff] %vm2668, %v2736
      %2825 = vst.msk [vmem:[#allocation2 + $0x10] sm:$0xff] %vm2668, %v2738
      %2826 = vst.msk [vmem:[#allocation2 + $0x18] sm:$0xff] %vm2668, %v2740
      %2827 = vst.msk [vmem:[#allocation2 + $0x20] sm:$0xff] %vm2668, %v2742
      %2828 = vst.msk [vmem:[#allocation2 + $0x28] sm:$0xff] %vm2668, %v2744
      %2829 = vst.msk [vmem:[#allocation2 + $0x30] sm:$0xff] %vm2668, %v2746
      %2830 = vst.msk [vmem:[#allocation2 + $0x38] sm:$0xff] %vm2668, %v2748
      %2831 = vst.msk [vmem:[#allocation2 + $0x40] sm:$0xff] %vm2668, %v2750
      %2832 = vst.msk [vmem:[#allocation2 + $0x48] sm:$0xff] %vm2668, %v2752
      %2833 = vst.msk [vmem:[#allocation2 + $0x50] sm:$0xff] %vm2668, %v2754
      %2834 = vst.msk [vmem:[#allocation2 + $0x58] sm:$0xff] %vm2668, %v2756
      %2835 = vst.msk [vmem:[#allocation2 + $0x60] sm:$0xff] %vm2668, %v2758
      %2836 = vst.msk [vmem:[#allocation2 + $0x68] sm:$0xff] %vm2668, %v2760
      %2837 = vst.msk [vmem:[#allocation2 + $0x70] sm:$0xff] %vm2668, %v2762
      %2838 = vst.msk [vmem:[#allocation2 + $0x78] sm:$0xff] %vm2668, %v2764
      %2839 = vst.msk [vmem:[#allocation2 + $0x80] sm:$0xff] %vm2668, %v2766
      %2840 = vst.msk [vmem:[#allocation2 + $0x88] sm:$0xff] %vm2668, %v2768
      %2841 = vst.msk [vmem:[#allocation2 + $0x90] sm:$0xff] %vm2668, %v2770
      %2842 = vst.msk [vmem:[#allocation2 + $0x98] sm:$0xff] %vm2668, %v2772
      %2843 = vst.msk [vmem:[#allocation2 + $0xa0] sm:$0xff] %vm2668, %v2774
      %2844 = vst.msk [vmem:[#allocation2 + $0xa8] sm:$0xff] %vm2668, %v2776
      %2845 = vst.msk [vmem:[#allocation2 + $0xb0] sm:$0xff] %vm2668, %v2778
      %2846 = vst.msk [vmem:[#allocation2 + $0xb8] sm:$0xff] %vm2668, %v2780
      %2847 = vst.msk [vmem:[#allocation2 + $0xc0] sm:$0xff] %vm2668, %v2782
      %2848 = vst.msk [vmem:[#allocation2 + $0xc8] sm:$0xff] %vm2668, %v2784
      %2849 = vst.msk [vmem:[#allocation2 + $0xd0] sm:$0xff] %vm2668, %v2786
      %2850 = vst.msk [vmem:[#allocation2 + $0xd8] sm:$0xff] %vm2668, %v2788
      %2851 = vst.msk [vmem:[#allocation2 + $0xe0] sm:$0xff] %vm2668, %v2790
      %vm2852 = vcmask 588288
      %2853 = vst.msk [vmem:[#allocation2 + $0xe8] sm:$0x7f] %vm2852, %v2792
      %v2854 = vld [vmem:[#allocation2] sm:$0xff]
      %v2855 = vld [vmem:[#allocation2 + $0x8] sm:$0xff]
      %v2856 = vld [vmem:[#allocation2 + $0x10] sm:$0xff]
      %v2857 = vld [vmem:[#allocation2 + $0x18] sm:$0xff]
      %v2858 = vld [vmem:[#allocation2 + $0x20] sm:$0xff]
      %v2859 = vld [vmem:[#allocation2 + $0x28] sm:$0xff]
      %v2860 = vld [vmem:[#allocation2 + $0x30] sm:$0xff]
      %v2861 = vld [vmem:[#allocation2 + $0x38] sm:$0xff]
      %v2862 = vld [vmem:[#allocation2 + $0x40] sm:$0xff]
      %v2863 = vld [vmem:[#allocation2 + $0x48] sm:$0xff]
      %v2864 = vld [vmem:[#allocation2 + $0x50] sm:$0xff]
      %v2865 = vld [vmem:[#allocation2 + $0x58] sm:$0xff]
      %v2866 = vld [vmem:[#allocation2 + $0x60] sm:$0xff]
      %v2867 = vld [vmem:[#allocation2 + $0x68] sm:$0xff]
      %v2868 = vld [vmem:[#allocation2 + $0x70] sm:$0xff]
      %v2869 = vld [vmem:[#allocation2 + $0x78] sm:$0xff]
      %v2870 = vld [vmem:[#allocation2 + $0x80] sm:$0xff]
      %v2871 = vld [vmem:[#allocation2 + $0x88] sm:$0xff]
      %v2872 = vld [vmem:[#allocation2 + $0x90] sm:$0xff]
      %v2873 = vld [vmem:[#allocation2 + $0x98] sm:$0xff]
      %v2874 = vld [vmem:[#allocation2 + $0xa0] sm:$0xff]
      %v2875 = vld [vmem:[#allocation2 + $0xa8] sm:$0xff]
      %v2876 = vld [vmem:[#allocation2 + $0xb0] sm:$0xff]
      %v2877 = vld [vmem:[#allocation2 + $0xb8] sm:$0xff]
      %v2878 = vld [vmem:[#allocation2 + $0xc0] sm:$0xff]
      %v2879 = vld [vmem:[#allocation2 + $0xc8] sm:$0xff]
      %v2880 = vld [vmem:[#allocation2 + $0xd0] sm:$0xff]
      %v2881 = vld [vmem:[#allocation2 + $0xd8] sm:$0xff]
      %v2882 = vld [vmem:[#allocation2 + $0xe0] sm:$0xff]
      %v2883 = vld [vmem:[#allocation2 + $0xe8] sm:$0xff]
      %v2884 = vld [vmem:[#allocation2 + $0xf0] sm:$0xff]
      %v2885 = vld [vmem:[#allocation2 + $0xf8] sm:$0xff]
      %v2886 = vpack.c.bf16 %v2855, %v2854
      %v2887 = vpack.c.bf16 %v2857, %v2856
      %v2888 = vpack.c.bf16 %v2859, %v2858
      %v2889 = vpack.c.bf16 %v2861, %v2860
      %v2890 = vpack.c.bf16 %v2863, %v2862
      %v2891 = vpack.c.bf16 %v2865, %v2864
      %v2892 = vpack.c.bf16 %v2867, %v2866
      %v2893 = vpack.c.bf16 %v2869, %v2868
      %v2894 = vpack.c.bf16 %v2871, %v2870
      %v2895 = vpack.c.bf16 %v2873, %v2872
      %v2896 = vpack.c.bf16 %v2875, %v2874
      %v2897 = vpack.c.bf16 %v2877, %v2876
      %v2898 = vpack.c.bf16 %v2879, %v2878
      %v2899 = vpack.c.bf16 %v2881, %v2880
      %v2900 = vpack.c.bf16 %v2883, %v2882
      %v2901 = vpack.c.bf16 %v2885, %v2884
      %v2903 = vlaneseq
      %v2904 = vshrl.u32 %v2903, 7
      %v2905 = vsub.s32 0, %v2904
      %v2906 = vrot.slane %v650, %v2905
      %v2917 = vunpack.c.l.b16 %v641
      %v2918 = vunpack.c.l.b16 %v642
      %v2919 = vunpack.c.l.b16 %v643
      %v2920 = vunpack.c.l.b16 %v644
      %v2921 = vunpack.c.l.b16 %v645
      %v2922 = vunpack.c.l.b16 %v646
      %v2923 = vunpack.c.l.b16 %v647
      %v2924 = vunpack.c.l.b16 %v648
      %v2925 = vunpack.c.l.b16 %v649
      %v2926 = vpack.c.b16 %v2918, %v2917
      %v2927 = vpack.c.b16 %v2920, %v2919
      %v2928 = vpack.c.b16 %v2922, %v2921
      %v2929 = vpack.c.b16 %v2924, %v2923
      %v2930 = vpack.c.b16 %v2925, %v2925
      %vm2935 = vcmask 588800
      %v2937 = vsel %vm2935, %v2886, 0
      %v2940 = vsel %vm2935, %v2887, 0
      %v2943 = vsel %vm2935, %v2888, 0
      %v2946 = vsel %vm2935, %v2889, 0
      %v2949 = vsel %vm2935, %v2890, 0
      %v2952 = vsel %vm2935, %v2891, 0
      %v2955 = vsel %vm2935, %v2892, 0
      %v2958 = vsel %vm2935, %v2893, 0
      %v2961 = vsel %vm2935, %v2894, 0
      %v2964 = vsel %vm2935, %v2895, 0
      %v2967 = vsel %vm2935, %v2896, 0
      %v2970 = vsel %vm2935, %v2897, 0
      %v2973 = vsel %vm2935, %v2898, 0
      %v2976 = vsel %vm2935, %v2899, 0
      %v2979 = vsel %vm2935, %v2900, 0
      %v2982 = vsel %vm2935, %v2901, 0
      %vm2984 = vcmask 1043456
      %v2986 = vsel %vm2984, %v2930, 0
      %2988 = vmatprep.subr.bf16.mxu0 0
      %2989 = vmatpush1.bf16.msra.mxu0 0
      %2990 = vmatprep.subr.bf16.mxu0 0
      %2991 = vmatpush1.bf16.msra.mxu0 0
      %2992 = vmatprep.subr.bf16.mxu0 0
      %2993 = vmatpush1.bf16.msra.mxu0 0
      %2994 = vmatprep.subr.bf16.mxu0 0
      %2995 = vmatpush1.bf16.msra.mxu0 %v2986
      %2996 = vmatprep.subr.bf16.mxu0 0
      %2997 = vmatpush1.bf16.msra.mxu0 %v2929
      %2998 = vmatprep.subr.bf16.mxu0 0
      %2999 = vmatpush1.bf16.msra.mxu0 %v2928
      %3000 = vmatprep.subr.bf16.mxu0 0
      %3001 = vmatpush1.bf16.msra.mxu0 %v2927
      %3002 = vmatprep.subr.bf16.mxu0 0
      %3003 = vmatpush1.bf16.msra.mxu0 %v2926
      %3004 = vmatprep.subr.bf16.mxu0 0
      %3005 = vmatpush2.bf16.msra.mxu0 0
      %3006 = vmatprep.subr.bf16.mxu0 0
      %3007 = vmatpush2.bf16.msra.mxu0 0
      %3008 = vmatprep.subr.bf16.mxu0 0
      %3009 = vmatpush2.bf16.msra.mxu0 0
      %3010 = vmatprep.subr.bf16.mxu0 0
      %3011 = vmatpush2.bf16.msra.mxu0 0
      %3012 = vmatprep.subr.bf16.mxu0 0
      %3013 = vmatpush2.bf16.msra.mxu0 0
      %3014 = vmatprep.subr.bf16.mxu0 0
      %3015 = vmatpush2.bf16.msra.mxu0 0
      %3016 = vmatprep.subr.bf16.mxu0 0
      %3017 = vmatpush2.bf16.msra.mxu0 0
      %3018 = vmatprep.subr.bf16.mxu0 0
      %3019 = vmatpush2.bf16.msra.mxu0 0
      %3020 = vmatprep.mubr.bf16.mxu0 0
      %3021 = vmatmul.mubr.bf16.gmra.mxu0 %v2937
      %v3022 = vpop.f32.mrf.mxu0
      %v3023 = vadd.f32 %v2906, %v3022
      %v3024 = vpop.f32.mrf.mxu0
      %v3025 = vpop.f32.mrf.mxu0
      %v3026 = vadd.f32 %v2906, %v3025
      %v3027 = vpop.f32.mrf.mxu0
      %3028 = vmatprep.mubr.bf16.mxu0 0
      %3029 = vmatmul.mubr.bf16.gmra.mxu0 %v2940
      %v3030 = vpop.f32.mrf.mxu0
      %v3031 = vadd.f32 %v2906, %v3030
      %v3032 = vpop.f32.mrf.mxu0
      %v3033 = vpop.f32.mrf.mxu0
      %v3034 = vadd.f32 %v2906, %v3033
      %v3035 = vpop.f32.mrf.mxu0
      %3036 = vmatprep.mubr.bf16.mxu0 0
      %3037 = vmatmul.mubr.bf16.gmra.mxu0 %v2943
      %v3038 = vpop.f32.mrf.mxu0
      %v3039 = vadd.f32 %v2906, %v3038
      %v3040 = vpop.f32.mrf.mxu0
      %v3041 = vpop.f32.mrf.mxu0
      %v3042 = vadd.f32 %v2906, %v3041
      %v3043 = vpop.f32.mrf.mxu0
      %3044 = vmatprep.mubr.bf16.mxu0 0
      %3045 = vmatmul.mubr.bf16.gmra.mxu0 %v2946
      %v3046 = vpop.f32.mrf.mxu0
      %v3047 = vadd.f32 %v2906, %v3046
      %v3048 = vpop.f32.mrf.mxu0
      %v3049 = vpop.f32.mrf.mxu0
      %v3050 = vadd.f32 %v2906, %v3049
      %v3051 = vpop.f32.mrf.mxu0
      %3052 = vmatprep.mubr.bf16.mxu0 0
      %3053 = vmatmul.mubr.bf16.gmra.mxu0 %v2949
      %v3054 = vpop.f32.mrf.mxu0
      %v3055 = vadd.f32 %v2906, %v3054
      %v3056 = vpop.f32.mrf.mxu0
      %v3057 = vpop.f32.mrf.mxu0
      %v3058 = vadd.f32 %v2906, %v3057
      %v3059 = vpop.f32.mrf.mxu0
      %3060 = vmatprep.mubr.bf16.mxu0 0
      %3061 = vmatmul.mubr.bf16.gmra.mxu0 %v2952
      %v3062 = vpop.f32.mrf.mxu0
      %v3063 = vadd.f32 %v2906, %v3062
      %v3064 = vpop.f32.mrf.mxu0
      %v3065 = vpop.f32.mrf.mxu0
      %v3066 = vadd.f32 %v2906, %v3065
      %v3067 = vpop.f32.mrf.mxu0
      %3068 = vmatprep.mubr.bf16.mxu0 0
      %3069 = vmatmul.mubr.bf16.gmra.mxu0 %v2955
      %v3070 = vpop.f32.mrf.mxu0
      %v3071 = vadd.f32 %v2906, %v3070
      %v3072 = vpop.f32.mrf.mxu0
      %v3073 = vpop.f32.mrf.mxu0
      %v3074 = vadd.f32 %v2906, %v3073
      %v3075 = vpop.f32.mrf.mxu0
      %3076 = vmatprep.mubr.bf16.mxu0 0
      %3077 = vmatmul.mubr.bf16.gmra.mxu0 %v2958
      %v3078 = vpop.f32.mrf.mxu0
      %v3079 = vadd.f32 %v2906, %v3078
      %v3080 = vpop.f32.mrf.mxu0
      %v3081 = vpop.f32.mrf.mxu0
      %v3082 = vadd.f32 %v2906, %v3081
      %v3083 = vpop.f32.mrf.mxu0
      %3084 = vmatprep.mubr.bf16.mxu0 0
      %3085 = vmatmul.mubr.bf16.gmra.mxu0 %v2961
      %v3086 = vpop.f32.mrf.mxu0
      %v3087 = vadd.f32 %v2906, %v3086
      %v3088 = vpop.f32.mrf.mxu0
      %v3089 = vpop.f32.mrf.mxu0
      %v3090 = vadd.f32 %v2906, %v3089
      %v3091 = vpop.f32.mrf.mxu0
      %3092 = vmatprep.mubr.bf16.mxu0 0
      %3093 = vmatmul.mubr.bf16.gmra.mxu0 %v2964
      %v3094 = vpop.f32.mrf.mxu0
      %v3095 = vadd.f32 %v2906, %v3094
      %v3096 = vpop.f32.mrf.mxu0
      %v3097 = vpop.f32.mrf.mxu0
      %v3098 = vadd.f32 %v2906, %v3097
      %v3099 = vpop.f32.mrf.mxu0
      %3100 = vmatprep.mubr.bf16.mxu0 0
      %3101 = vmatmul.mubr.bf16.gmra.mxu0 %v2967
      %v3102 = vpop.f32.mrf.mxu0
      %v3103 = vadd.f32 %v2906, %v3102
      %v3104 = vpop.f32.mrf.mxu0
      %v3105 = vpop.f32.mrf.mxu0
      %v3106 = vadd.f32 %v2906, %v3105
      %v3107 = vpop.f32.mrf.mxu0
      %3108 = vmatprep.mubr.bf16.mxu0 0
      %3109 = vmatmul.mubr.bf16.gmra.mxu0 %v2970
      %v3110 = vpop.f32.mrf.mxu0
      %v3111 = vadd.f32 %v2906, %v3110
      %v3112 = vpop.f32.mrf.mxu0
      %v3113 = vpop.f32.mrf.mxu0
      %v3114 = vadd.f32 %v2906, %v3113
      %v3115 = vpop.f32.mrf.mxu0
      %3116 = vmatprep.mubr.bf16.mxu0 0
      %3117 = vmatmul.mubr.bf16.gmra.mxu0 %v2973
      %v3118 = vpop.f32.mrf.mxu0
      %v3119 = vadd.f32 %v2906, %v3118
      %v3120 = vpop.f32.mrf.mxu0
      %v3121 = vpop.f32.mrf.mxu0
      %v3122 = vadd.f32 %v2906, %v3121
      %v3123 = vpop.f32.mrf.mxu0
      %3124 = vmatprep.mubr.bf16.mxu0 0
      %3125 = vmatmul.mubr.bf16.gmra.mxu0 %v2976
      %v3126 = vpop.f32.mrf.mxu0
      %v3127 = vadd.f32 %v2906, %v3126
      %v3128 = vpop.f32.mrf.mxu0
      %v3129 = vpop.f32.mrf.mxu0
      %v3130 = vadd.f32 %v2906, %v3129
      %v3131 = vpop.f32.mrf.mxu0
      %3132 = vmatprep.mubr.bf16.mxu0 0
      %3133 = vmatmul.mubr.bf16.gmra.mxu0 %v2979
      %v3134 = vpop.f32.mrf.mxu0
      %v3135 = vadd.f32 %v2906, %v3134
      %v3136 = vpop.f32.mrf.mxu0
      %v3137 = vpop.f32.mrf.mxu0
      %v3138 = vadd.f32 %v2906, %v3137
      %v3139 = vpop.f32.mrf.mxu0
      %3140 = vmatprep.mubr.bf16.mxu0 0
      %3141 = vmatmul.mubr.bf16.gmra.mxu0 %v2982
      %v3142 = vpop.f32.mrf.mxu0
      %v3143 = vadd.f32 %v2906, %v3142
      %v3144 = vpop.f32.mrf.mxu0
      %v3145 = vpop.f32.mrf.mxu0
      %v3146 = vadd.f32 %v2906, %v3145
      %v3147 = vpop.f32.mrf.mxu0
      %3148 = vdwg.mxu0
      %v3149 = vmax.f32 %v3023, 0.0
      %v3150 = vmax.f32 %v3026, 0.0
      %v3151 = vmax.f32 %v3031, 0.0
      %v3152 = vmax.f32 %v3034, 0.0
      %v3153 = vmax.f32 %v3039, 0.0
      %v3154 = vmax.f32 %v3042, 0.0
      %v3155 = vmax.f32 %v3047, 0.0
      %v3156 = vmax.f32 %v3050, 0.0
      %v3157 = vmax.f32 %v3055, 0.0
      %v3158 = vmax.f32 %v3058, 0.0
      %v3159 = vmax.f32 %v3063, 0.0
      %v3160 = vmax.f32 %v3066, 0.0
      %v3161 = vmax.f32 %v3071, 0.0
      %v3162 = vmax.f32 %v3074, 0.0
      %v3163 = vmax.f32 %v3079, 0.0
      %v3164 = vmax.f32 %v3082, 0.0
      %v3165 = vmax.f32 %v3087, 0.0
      %v3166 = vmax.f32 %v3090, 0.0
      %v3167 = vmax.f32 %v3095, 0.0
      %v3168 = vmax.f32 %v3098, 0.0
      %v3169 = vmax.f32 %v3103, 0.0
      %v3170 = vmax.f32 %v3106, 0.0
      %v3171 = vmax.f32 %v3111, 0.0
      %v3172 = vmax.f32 %v3114, 0.0
      %v3173 = vmax.f32 %v3119, 0.0
      %v3174 = vmax.f32 %v3122, 0.0
      %v3175 = vmax.f32 %v3127, 0.0
      %v3176 = vmax.f32 %v3130, 0.0
      %v3177 = vmax.f32 %v3135, 0.0
      %v3178 = vmax.f32 %v3138, 0.0
      %v3179 = vmax.f32 %v3143, 0.0
      %v3180 = vmax.f32 %v3146, 0.0
      %v3181 = vld [vmem:[%s8] sm:$0xf]
      %v3182 = vld [vmem:[%s8 + $0x4] sm:$0xf]
      %v3183 = vld [vmem:[%s8 + $0x8] sm:$0xf]
      %v3184 = vld [vmem:[%s8 + $0xc] sm:$0xf]
      %v3185 = vld [vmem:[%s8 + $0x10] sm:$0xf]
      %v3186 = vld [vmem:[%s8 + $0x14] sm:$0xf]
      %v3187 = vld [vmem:[%s8 + $0x18] sm:$0xf]
      %v3188 = vld [vmem:[%s8 + $0x1c] sm:$0xf]
      %v3189 = vld [vmem:[%s8 + $0x20] sm:$0xf]
      %v3190 = vld [vmem:[%s9] sm:$0x1]
      %3191 = vst.msk [vmem:[#allocation2] sm:$0xff] %vm651, 0.0
      %3192 = vst.msk [vmem:[#allocation2 + $0x8] sm:$0xff] %vm651, 0.0
      %3193 = vst.msk [vmem:[#allocation2 + $0x10] sm:$0xff] %vm651, 0.0
      %3194 = vst.msk [vmem:[#allocation2 + $0x18] sm:$0xff] %vm651, 0.0
      %vm3195 = vcmask 58368
      %3196 = vst.msk [vmem:[#allocation2 + $0x20] sm:$0x3] %vm3195, 0.0
      %v3197 = vadd.s32 %v425, 4294967294
      %v3198 = vadd.s32 %v426, 4294967294
      %v3199 = vadd.s32 %v427, 4294967294
      %v3200 = vadd.s32 %v428, 4294967294
      %v3201 = vadd.s32 %v429, 4294967294
      %v3202 = vadd.s32 %v430, 4294967294
      %v3203 = vadd.s32 %v431, 4294967294
      %v3204 = vadd.s32 %v432, 4294967294
      %v3205 = vadd.s32 %v433, 4294967294
      %v3206 = vadd.s32 %v434, 4294967294
      %v3207 = vadd.s32 %v435, 4294967294
      %v3208 = vadd.s32 %v436, 4294967294
      %v3209 = vadd.s32 %v437, 4294967294
      %v3210 = vadd.s32 %v438, 4294967294
      %v3211 = vadd.s32 %v439, 4294967294
      %v3212 = vadd.s32 %v440, 4294967294
      %v3213 = vadd.s32 %v441, 4294967294
      %v3214 = vadd.s32 %v442, 4294967294
      %v3215 = vadd.s32 %v443, 4294967294
      %v3216 = vadd.s32 %v444, 4294967294
      %v3217 = vadd.s32 %v445, 4294967294
      %v3218 = vadd.s32 %v446, 4294967294
      %v3219 = vadd.s32 %v447, 4294967294
      %v3220 = vadd.s32 %v448, 4294967294
      %v3221 = vadd.s32 %v449, 4294967294
      %v3222 = vadd.s32 %v450, 4294967294
      %v3223 = vadd.s32 %v451, 4294967294
      %v3224 = vadd.s32 %v452, 4294967294
      %vm3225 = vcmp.ge.s32.totalorder %v3197, 0
      %vm3226 = vcmp.ge.s32.totalorder %v3198, 0
      %vm3227 = vcmp.ge.s32.totalorder %v3199, 0
      %vm3228 = vcmp.ge.s32.totalorder %v3200, 0
      %vm3229 = vcmp.ge.s32.totalorder %v3201, 0
      %vm3230 = vcmp.ge.s32.totalorder %v3202, 0
      %vm3231 = vcmp.ge.s32.totalorder %v3203, 0
      %vm3232 = vcmp.ge.s32.totalorder %v3204, 0
      %vm3233 = vcmp.ge.s32.totalorder %v3205, 0
      %vm3234 = vcmp.ge.s32.totalorder %v3206, 0
      %vm3235 = vcmp.ge.s32.totalorder %v3207, 0
      %vm3236 = vcmp.ge.s32.totalorder %v3208, 0
      %vm3237 = vcmp.ge.s32.totalorder %v3209, 0
      %vm3238 = vcmp.ge.s32.totalorder %v3210, 0
      %vm3239 = vcmp.ge.s32.totalorder %v3211, 0
      %vm3240 = vcmp.ge.s32.totalorder %v3212, 0
      %vm3241 = vcmp.ge.s32.totalorder %v3213, 0
      %vm3242 = vcmp.ge.s32.totalorder %v3214, 0
      %vm3243 = vcmp.ge.s32.totalorder %v3215, 0
      %vm3244 = vcmp.ge.s32.totalorder %v3216, 0
      %vm3245 = vcmp.ge.s32.totalorder %v3217, 0
      %vm3246 = vcmp.ge.s32.totalorder %v3218, 0
      %vm3247 = vcmp.ge.s32.totalorder %v3219, 0
      %vm3248 = vcmp.ge.s32.totalorder %v3220, 0
      %vm3249 = vcmp.ge.s32.totalorder %v3221, 0
      %vm3250 = vcmp.ge.s32.totalorder %v3222, 0
      %vm3251 = vcmp.ge.s32.totalorder %v3223, 0
      %vm3252 = vcmp.ge.s32.totalorder %v3224, 0
      %vm3253 = vcmp.lt.s32.totalorder %v3197, 16
      %vm3254 = vcmp.lt.s32.totalorder %v3198, 16
      %vm3255 = vcmp.lt.s32.totalorder %v3199, 16
      %vm3256 = vcmp.lt.s32.totalorder %v3200, 16
      %vm3257 = vcmp.lt.s32.totalorder %v3201, 16
      %vm3258 = vcmp.lt.s32.totalorder %v3202, 16
      %vm3259 = vcmp.lt.s32.totalorder %v3203, 16
      %vm3260 = vcmp.lt.s32.totalorder %v3204, 16
      %vm3261 = vcmp.lt.s32.totalorder %v3205, 16
      %vm3262 = vcmp.lt.s32.totalorder %v3206, 16
      %vm3263 = vcmp.lt.s32.totalorder %v3207, 16
      %vm3264 = vcmp.lt.s32.totalorder %v3208, 16
      %vm3265 = vcmp.lt.s32.totalorder %v3209, 16
      %vm3266 = vcmp.lt.s32.totalorder %v3210, 16
      %vm3267 = vcmp.lt.s32.totalorder %v3211, 16
      %vm3268 = vcmp.lt.s32.totalorder %v3212, 16
      %vm3269 = vcmp.lt.s32.totalorder %v3213, 16
      %vm3270 = vcmp.lt.s32.totalorder %v3214, 16
      %vm3271 = vcmp.lt.s32.totalorder %v3215, 16
      %vm3272 = vcmp.lt.s32.totalorder %v3216, 16
      %vm3273 = vcmp.lt.s32.totalorder %v3217, 16
      %vm3274 = vcmp.lt.s32.totalorder %v3218, 16
      %vm3275 = vcmp.lt.s32.totalorder %v3219, 16
      %vm3276 = vcmp.lt.s32.totalorder %v3220, 16
      %vm3277 = vcmp.lt.s32.totalorder %v3221, 16
      %vm3278 = vcmp.lt.s32.totalorder %v3222, 16
      %vm3279 = vcmp.lt.s32.totalorder %v3223, 16
      %vm3280 = vcmp.lt.s32.totalorder %v3224, 16
      %vm3281 = vmand %vm3225, %vm3253
      %vm3282 = vmand %vm3226, %vm3254
      %vm3283 = vmand %vm3227, %vm3255
      %vm3284 = vmand %vm3228, %vm3256
      %vm3285 = vmand %vm3229, %vm3257
      %vm3286 = vmand %vm3230, %vm3258
      %vm3287 = vmand %vm3231, %vm3259
      %vm3288 = vmand %vm3232, %vm3260
      %vm3289 = vmand %vm3233, %vm3261
      %vm3290 = vmand %vm3234, %vm3262
      %vm3291 = vmand %vm3235, %vm3263
      %vm3292 = vmand %vm3236, %vm3264
      %vm3293 = vmand %vm3237, %vm3265
      %vm3294 = vmand %vm3238, %vm3266
      %vm3295 = vmand %vm3239, %vm3267
      %vm3296 = vmand %vm3240, %vm3268
      %vm3297 = vmand %vm3241, %vm3269
      %vm3298 = vmand %vm3242, %vm3270
      %vm3299 = vmand %vm3243, %vm3271
      %vm3300 = vmand %vm3244, %vm3272
      %vm3301 = vmand %vm3245, %vm3273
      %vm3302 = vmand %vm3246, %vm3274
      %vm3303 = vmand %vm3247, %vm3275
      %vm3304 = vmand %vm3248, %vm3276
      %vm3305 = vmand %vm3249, %vm3277
      %vm3306 = vmand %vm3250, %vm3278
      %vm3307 = vmand %vm3251, %vm3279
      %vm3308 = vmand %vm3252, %vm3280
      %v3309 = vsel %vm3281, 1, 0
      %v3310 = vsel %vm3282, 1, 0
      %v3311 = vsel %vm3283, 1, 0
      %v3312 = vsel %vm3284, 1, 0
      %v3313 = vsel %vm3285, 1, 0
      %v3314 = vsel %vm3286, 1, 0
      %v3315 = vsel %vm3287, 1, 0
      %v3316 = vsel %vm3288, 1, 0
      %v3317 = vsel %vm3289, 1, 0
      %v3318 = vsel %vm3290, 1, 0
      %v3319 = vsel %vm3291, 1, 0
      %v3320 = vsel %vm3292, 1, 0
      %v3321 = vsel %vm3293, 1, 0
      %v3322 = vsel %vm3294, 1, 0
      %v3323 = vsel %vm3295, 1, 0
      %v3324 = vsel %vm3296, 1, 0
      %v3325 = vsel %vm3297, 1, 0
      %v3326 = vsel %vm3298, 1, 0
      %v3327 = vsel %vm3299, 1, 0
      %v3328 = vsel %vm3300, 1, 0
      %v3329 = vsel %vm3301, 1, 0
      %v3330 = vsel %vm3302, 1, 0
      %v3331 = vsel %vm3303, 1, 0
      %v3332 = vsel %vm3304, 1, 0
      %v3333 = vsel %vm3305, 1, 0
      %v3334 = vsel %vm3306, 1, 0
      %v3335 = vsel %vm3307, 1, 0
      %v3336 = vsel %vm3308, 1, 0
      %3337 = vset.pattern.permute.xlu0 0
      %3338 = vperm.xlu0 %3337, %v3309
      %v3339 = vpop.permute.xlu0 %3338
      %3340 = vset.pattern.permute.xlu0 0
      %3341 = vperm.xlu0 %3340, %v3310
      %v3342 = vpop.permute.xlu0 %3341
      %3343 = vset.pattern.permute.xlu0 0
      %3344 = vperm.xlu0 %3343, %v3311
      %v3345 = vpop.permute.xlu0 %3344
      %3346 = vset.pattern.permute.xlu0 0
      %3347 = vperm.xlu0 %3346, %v3312
      %v3348 = vpop.permute.xlu0 %3347
      %3349 = vset.pattern.permute.xlu0 0
      %3350 = vperm.xlu0 %3349, %v3313
      %v3351 = vpop.permute.xlu0 %3350
      %3352 = vset.pattern.permute.xlu0 0
      %3353 = vperm.xlu0 %3352, %v3314
      %v3354 = vpop.permute.xlu0 %3353
      %3355 = vset.pattern.permute.xlu0 0
      %3356 = vperm.xlu0 %3355, %v3315
      %v3357 = vpop.permute.xlu0 %3356
      %3358 = vset.pattern.permute.xlu0 0
      %3359 = vperm.xlu0 %3358, %v3316
      %v3360 = vpop.permute.xlu0 %3359
      %3361 = vset.pattern.permute.xlu0 0
      %3362 = vperm.xlu0 %3361, %v3317
      %v3363 = vpop.permute.xlu0 %3362
      %3364 = vset.pattern.permute.xlu0 0
      %3365 = vperm.xlu0 %3364, %v3318
      %v3366 = vpop.permute.xlu0 %3365
      %3367 = vset.pattern.permute.xlu0 0
      %3368 = vperm.xlu0 %3367, %v3319
      %v3369 = vpop.permute.xlu0 %3368
      %3370 = vset.pattern.permute.xlu0 0
      %3371 = vperm.xlu0 %3370, %v3320
      %v3372 = vpop.permute.xlu0 %3371
      %3373 = vset.pattern.permute.xlu0 0
      %3374 = vperm.xlu0 %3373, %v3321
      %v3375 = vpop.permute.xlu0 %3374
      %3376 = vset.pattern.permute.xlu0 0
      %3377 = vperm.xlu0 %3376, %v3322
      %v3378 = vpop.permute.xlu0 %3377
      %3379 = vset.pattern.permute.xlu0 0
      %3380 = vperm.xlu0 %3379, %v3323
      %v3381 = vpop.permute.xlu0 %3380
      %3382 = vset.pattern.permute.xlu0 0
      %3383 = vperm.xlu0 %3382, %v3324
      %v3384 = vpop.permute.xlu0 %3383
      %3385 = vset.pattern.permute.xlu0 0
      %3386 = vperm.xlu0 %3385, %v3325
      %v3387 = vpop.permute.xlu0 %3386
      %3388 = vset.pattern.permute.xlu0 0
      %3389 = vperm.xlu0 %3388, %v3326
      %v3390 = vpop.permute.xlu0 %3389
      %3391 = vset.pattern.permute.xlu0 0
      %3392 = vperm.xlu0 %3391, %v3327
      %v3393 = vpop.permute.xlu0 %3392
      %3394 = vset.pattern.permute.xlu0 0
      %3395 = vperm.xlu0 %3394, %v3328
      %v3396 = vpop.permute.xlu0 %3395
      %3397 = vset.pattern.permute.xlu0 0
      %3398 = vperm.xlu0 %3397, %v3329
      %v3399 = vpop.permute.xlu0 %3398
      %3400 = vset.pattern.permute.xlu0 0
      %3401 = vperm.xlu0 %3400, %v3330
      %v3402 = vpop.permute.xlu0 %3401
      %3403 = vset.pattern.permute.xlu0 0
      %3404 = vperm.xlu0 %3403, %v3331
      %v3405 = vpop.permute.xlu0 %3404
      %3406 = vset.pattern.permute.xlu0 0
      %3407 = vperm.xlu0 %3406, %v3332
      %v3408 = vpop.permute.xlu0 %3407
      %3409 = vset.pattern.permute.xlu0 0
      %3410 = vperm.xlu0 %3409, %v3333
      %v3411 = vpop.permute.xlu0 %3410
      %3412 = vset.pattern.permute.xlu0 0
      %3413 = vperm.xlu0 %3412, %v3334
      %v3414 = vpop.permute.xlu0 %3413
      %3415 = vset.pattern.permute.xlu0 0
      %3416 = vperm.xlu0 %3415, %v3335
      %v3417 = vpop.permute.xlu0 %3416
      %3418 = vset.pattern.permute.xlu0 0
      %3419 = vperm.xlu0 %3418, %v3336
      %v3420 = vpop.permute.xlu0 %3419
      %vm3421 = vcmp.eq.s32.totalorder %v3339, 1
      %vm3422 = vcmp.eq.s32.totalorder %v3342, 1
      %vm3423 = vcmp.eq.s32.totalorder %v3345, 1
      %vm3424 = vcmp.eq.s32.totalorder %v3348, 1
      %vm3425 = vcmp.eq.s32.totalorder %v3351, 1
      %vm3426 = vcmp.eq.s32.totalorder %v3354, 1
      %vm3427 = vcmp.eq.s32.totalorder %v3357, 1
      %vm3428 = vcmp.eq.s32.totalorder %v3360, 1
      %vm3429 = vcmp.eq.s32.totalorder %v3363, 1
      %vm3430 = vcmp.eq.s32.totalorder %v3366, 1
      %vm3431 = vcmp.eq.s32.totalorder %v3369, 1
      %vm3432 = vcmp.eq.s32.totalorder %v3372, 1
      %vm3433 = vcmp.eq.s32.totalorder %v3375, 1
      %vm3434 = vcmp.eq.s32.totalorder %v3378, 1
      %vm3435 = vcmp.eq.s32.totalorder %v3381, 1
      %vm3436 = vcmp.eq.s32.totalorder %v3384, 1
      %vm3437 = vcmp.eq.s32.totalorder %v3387, 1
      %vm3438 = vcmp.eq.s32.totalorder %v3390, 1
      %vm3439 = vcmp.eq.s32.totalorder %v3393, 1
      %vm3440 = vcmp.eq.s32.totalorder %v3396, 1
      %vm3441 = vcmp.eq.s32.totalorder %v3399, 1
      %vm3442 = vcmp.eq.s32.totalorder %v3402, 1
      %vm3443 = vcmp.eq.s32.totalorder %v3405, 1
      %vm3444 = vcmp.eq.s32.totalorder %v3408, 1
      %vm3445 = vcmp.eq.s32.totalorder %v3411, 1
      %vm3446 = vcmp.eq.s32.totalorder %v3414, 1
      %vm3447 = vcmp.eq.s32.totalorder %v3417, 1
      %vm3448 = vcmp.eq.s32.totalorder %v3420, 1
      %vm3477 = vcmask 1041408
      %v3478 = vrot.slane %v3149, 6
      %v3479 = vrot.slane %v3150, 6
      %v3480 = vsel %vm3477, %v3478, %v3479
      %v3481 = vrot.slane %v3151, 6
      %v3482 = vsel %vm3477, %v3479, %v3481
      %v3483 = vrot.slane %v3152, 6
      %v3484 = vsel %vm3477, %v3481, %v3483
      %v3485 = vrot.slane %v3153, 6
      %v3486 = vsel %vm3477, %v3483, %v3485
      %v3487 = vrot.slane %v3154, 6
      %v3488 = vsel %vm3477, %v3485, %v3487
      %v3489 = vrot.slane %v3155, 6
      %v3490 = vsel %vm3477, %v3487, %v3489
      %v3491 = vrot.slane %v3156, 6
      %v3492 = vsel %vm3477, %v3489, %v3491
      %v3493 = vrot.slane %v3157, 6
      %v3494 = vsel %vm3477, %v3491, %v3493
      %v3495 = vrot.slane %v3158, 6
      %v3496 = vsel %vm3477, %v3493, %v3495
      %v3497 = vrot.slane %v3159, 6
      %v3498 = vsel %vm3477, %v3495, %v3497
      %v3499 = vrot.slane %v3160, 6
      %v3500 = vsel %vm3477, %v3497, %v3499
      %v3501 = vrot.slane %v3161, 6
      %v3502 = vsel %vm3477, %v3499, %v3501
      %v3503 = vrot.slane %v3162, 6
      %v3504 = vsel %vm3477, %v3501, %v3503
      %v3505 = vrot.slane %v3163, 6
      %v3506 = vsel %vm3477, %v3503, %v3505
      %v3507 = vrot.slane %v3164, 6
      %v3508 = vsel %vm3477, %v3505, %v3507
      %v3509 = vrot.slane %v3165, 6
      %v3510 = vsel %vm3477, %v3507, %v3509
      %v3511 = vrot.slane %v3166, 6
      %v3512 = vsel %vm3477, %v3509, %v3511
      %v3513 = vrot.slane %v3167, 6
      %v3514 = vsel %vm3477, %v3511, %v3513
      %v3515 = vrot.slane %v3168, 6
      %v3516 = vsel %vm3477, %v3513, %v3515
      %v3517 = vrot.slane %v3169, 6
      %v3518 = vsel %vm3477, %v3515, %v3517
      %v3519 = vrot.slane %v3170, 6
      %v3520 = vsel %vm3477, %v3517, %v3519
      %v3521 = vrot.slane %v3171, 6
      %v3522 = vsel %vm3477, %v3519, %v3521
      %v3523 = vrot.slane %v3172, 6
      %v3524 = vsel %vm3477, %v3521, %v3523
      %v3525 = vrot.slane %v3173, 6
      %v3526 = vsel %vm3477, %v3523, %v3525
      %v3527 = vrot.slane %v3174, 6
      %v3528 = vsel %vm3477, %v3525, %v3527
      %v3529 = vrot.slane %v3175, 6
      %v3530 = vsel %vm3477, %v3527, %v3529
      %v3531 = vrot.slane %v3176, 6
      %v3532 = vsel %vm3477, %v3529, %v3531
      %v3561 = vsel %vm3421, %v3478, 0.0
      %v3562 = vsel %vm3422, %v3480, 0.0
      %v3563 = vsel %vm3423, %v3482, 0.0
      %v3564 = vsel %vm3424, %v3484, 0.0
      %v3565 = vsel %vm3425, %v3486, 0.0
      %v3566 = vsel %vm3426, %v3488, 0.0
      %v3567 = vsel %vm3427, %v3490, 0.0
      %v3568 = vsel %vm3428, %v3492, 0.0
      %v3569 = vsel %vm3429, %v3494, 0.0
      %v3570 = vsel %vm3430, %v3496, 0.0
      %v3571 = vsel %vm3431, %v3498, 0.0
      %v3572 = vsel %vm3432, %v3500, 0.0
      %v3573 = vsel %vm3433, %v3502, 0.0
      %v3574 = vsel %vm3434, %v3504, 0.0
      %v3575 = vsel %vm3435, %v3506, 0.0
      %v3576 = vsel %vm3436, %v3508, 0.0
      %v3577 = vsel %vm3437, %v3510, 0.0
      %v3578 = vsel %vm3438, %v3512, 0.0
      %v3579 = vsel %vm3439, %v3514, 0.0
      %v3580 = vsel %vm3440, %v3516, 0.0
      %v3581 = vsel %vm3441, %v3518, 0.0
      %v3582 = vsel %vm3442, %v3520, 0.0
      %v3583 = vsel %vm3443, %v3522, 0.0
      %v3584 = vsel %vm3444, %v3524, 0.0
      %v3585 = vsel %vm3445, %v3526, 0.0
      %v3586 = vsel %vm3446, %v3528, 0.0
      %v3587 = vsel %vm3447, %v3530, 0.0
      %v3588 = vsel %vm3448, %v3532, 0.0
      %vm3589 = vcmask 64514
      %3590 = vst.msk [vmem:[#allocation2 + $0x20] sm:$0xfc] %vm3589, %v3561
      %3591 = vst.msk [vmem:[#allocation2 + $0x28] sm:$0xff] %vm651, %v3562
      %3592 = vst.msk [vmem:[#allocation2 + $0x30] sm:$0xff] %vm651, %v3563
      %3593 = vst.msk [vmem:[#allocation2 + $0x38] sm:$0xff] %vm651, %v3564
      %3594 = vst.msk [vmem:[#allocation2 + $0x40] sm:$0xff] %vm651, %v3565
      %3595 = vst.msk [vmem:[#allocation2 + $0x48] sm:$0xff] %vm651, %v3566
      %3596 = vst.msk [vmem:[#allocation2 + $0x50] sm:$0xff] %vm651, %v3567
      %3597 = vst.msk [vmem:[#allocation2 + $0x58] sm:$0xff] %vm651, %v3568
      %3598 = vst.msk [vmem:[#allocation2 + $0x60] sm:$0xff] %vm651, %v3569
      %3599 = vst.msk [vmem:[#allocation2 + $0x68] sm:$0xff] %vm651, %v3570
      %3600 = vst.msk [vmem:[#allocation2 + $0x70] sm:$0xff] %vm651, %v3571
      %3601 = vst.msk [vmem:[#allocation2 + $0x78] sm:$0xff] %vm651, %v3572
      %3602 = vst.msk [vmem:[#allocation2 + $0x80] sm:$0xff] %vm651, %v3573
      %3603 = vst.msk [vmem:[#allocation2 + $0x88] sm:$0xff] %vm651, %v3574
      %3604 = vst.msk [vmem:[#allocation2 + $0x90] sm:$0xff] %vm651, %v3575
      %3605 = vst.msk [vmem:[#allocation2 + $0x98] sm:$0xff] %vm651, %v3576
      %3606 = vst.msk [vmem:[#allocation2 + $0xa0] sm:$0xff] %vm651, %v3577
      %3607 = vst.msk [vmem:[#allocation2 + $0xa8] sm:$0xff] %vm651, %v3578
      %3608 = vst.msk [vmem:[#allocation2 + $0xb0] sm:$0xff] %vm651, %v3579
      %3609 = vst.msk [vmem:[#allocation2 + $0xb8] sm:$0xff] %vm651, %v3580
      %3610 = vst.msk [vmem:[#allocation2 + $0xc0] sm:$0xff] %vm651, %v3581
      %3611 = vst.msk [vmem:[#allocation2 + $0xc8] sm:$0xff] %vm651, %v3582
      %3612 = vst.msk [vmem:[#allocation2 + $0xd0] sm:$0xff] %vm651, %v3583
      %3613 = vst.msk [vmem:[#allocation2 + $0xd8] sm:$0xff] %vm651, %v3584
      %3614 = vst.msk [vmem:[#allocation2 + $0xe0] sm:$0xff] %vm651, %v3585
      %3615 = vst.msk [vmem:[#allocation2 + $0xe8] sm:$0xff] %vm651, %v3586
      %3616 = vst.msk [vmem:[#allocation2 + $0xf0] sm:$0xff] %vm651, %v3587
      %3617 = vst.msk [vmem:[#allocation2 + $0xf8] sm:$0xff] %vm651, %v3588
      %3618 = vst.msk [vmem:[#allocation2] sm:$0xff] %vm1107, 0.0
      %3619 = vst.msk [vmem:[#allocation2 + $0x8] sm:$0xff] %vm1107, 0.0
      %3620 = vst.msk [vmem:[#allocation2 + $0x10] sm:$0xff] %vm1107, 0.0
      %3621 = vst.msk [vmem:[#allocation2 + $0x18] sm:$0xff] %vm1107, 0.0
      %3622 = vrot.lane.b32.xlu0 %v3149, 8
      %v3623 = vpop.permute.xlu0 %3622
      %3624 = vrot.lane.b32.xlu0 %v3150, 8
      %v3625 = vpop.permute.xlu0 %3624
      %3626 = vrot.lane.b32.xlu0 %v3151, 8
      %v3627 = vpop.permute.xlu0 %3626
      %3628 = vrot.lane.b32.xlu0 %v3152, 8
      %v3629 = vpop.permute.xlu0 %3628
      %3630 = vrot.lane.b32.xlu0 %v3153, 8
      %v3631 = vpop.permute.xlu0 %3630
      %3632 = vrot.lane.b32.xlu0 %v3154, 8
      %v3633 = vpop.permute.xlu0 %3632
      %3634 = vrot.lane.b32.xlu0 %v3155, 8
      %v3635 = vpop.permute.xlu0 %3634
      %3636 = vrot.lane.b32.xlu0 %v3156, 8
      %v3637 = vpop.permute.xlu0 %3636
      %3638 = vrot.lane.b32.xlu0 %v3157, 8
      %v3639 = vpop.permute.xlu0 %3638
      %3640 = vrot.lane.b32.xlu0 %v3158, 8
      %v3641 = vpop.permute.xlu0 %3640
      %3642 = vrot.lane.b32.xlu0 %v3159, 8
      %v3643 = vpop.permute.xlu0 %3642
      %3644 = vrot.lane.b32.xlu0 %v3160, 8
      %v3645 = vpop.permute.xlu0 %3644
      %3646 = vrot.lane.b32.xlu0 %v3161, 8
      %v3647 = vpop.permute.xlu0 %3646
      %3648 = vrot.lane.b32.xlu0 %v3162, 8
      %v3649 = vpop.permute.xlu0 %3648
      %3650 = vrot.lane.b32.xlu0 %v3163, 8
      %v3651 = vpop.permute.xlu0 %3650
      %3652 = vrot.lane.b32.xlu0 %v3164, 8
      %v3653 = vpop.permute.xlu0 %3652
      %3654 = vrot.lane.b32.xlu0 %v3165, 8
      %v3655 = vpop.permute.xlu0 %3654
      %3656 = vrot.lane.b32.xlu0 %v3166, 8
      %v3657 = vpop.permute.xlu0 %3656
      %3658 = vrot.lane.b32.xlu0 %v3167, 8
      %v3659 = vpop.permute.xlu0 %3658
      %3660 = vrot.lane.b32.xlu0 %v3168, 8
      %v3661 = vpop.permute.xlu0 %3660
      %3662 = vrot.lane.b32.xlu0 %v3169, 8
      %v3663 = vpop.permute.xlu0 %3662
      %3664 = vrot.lane.b32.xlu0 %v3170, 8
      %v3665 = vpop.permute.xlu0 %3664
      %3666 = vrot.lane.b32.xlu0 %v3171, 8
      %v3667 = vpop.permute.xlu0 %3666
      %3668 = vrot.lane.b32.xlu0 %v3172, 8
      %v3669 = vpop.permute.xlu0 %3668
      %3670 = vrot.lane.b32.xlu0 %v3173, 8
      %v3671 = vpop.permute.xlu0 %3670
      %3672 = vrot.lane.b32.xlu0 %v3174, 8
      %v3673 = vpop.permute.xlu0 %3672
      %3674 = vrot.lane.b32.xlu0 %v3175, 8
      %v3675 = vpop.permute.xlu0 %3674
      %3676 = vrot.lane.b32.xlu0 %v3176, 8
      %v3677 = vpop.permute.xlu0 %3676
      %3706 = vst.msk [vmem:[#allocation2 + $0x20] sm:$0xff] %vm1107, %v3623
      %3707 = vst.msk [vmem:[#allocation2 + $0x28] sm:$0xff] %vm1107, %v3625
      %3708 = vst.msk [vmem:[#allocation2 + $0x30] sm:$0xff] %vm1107, %v3627
      %3709 = vst.msk [vmem:[#allocation2 + $0x38] sm:$0xff] %vm1107, %v3629
      %3710 = vst.msk [vmem:[#allocation2 + $0x40] sm:$0xff] %vm1107, %v3631
      %3711 = vst.msk [vmem:[#allocation2 + $0x48] sm:$0xff] %vm1107, %v3633
      %3712 = vst.msk [vmem:[#allocation2 + $0x50] sm:$0xff] %vm1107, %v3635
      %3713 = vst.msk [vmem:[#allocation2 + $0x58] sm:$0xff] %vm1107, %v3637
      %3714 = vst.msk [vmem:[#allocation2 + $0x60] sm:$0xff] %vm1107, %v3639
      %3715 = vst.msk [vmem:[#allocation2 + $0x68] sm:$0xff] %vm1107, %v3641
      %3716 = vst.msk [vmem:[#allocation2 + $0x70] sm:$0xff] %vm1107, %v3643
      %3717 = vst.msk [vmem:[#allocation2 + $0x78] sm:$0xff] %vm1107, %v3645
      %3718 = vst.msk [vmem:[#allocation2 + $0x80] sm:$0xff] %vm1107, %v3647
      %3719 = vst.msk [vmem:[#allocation2 + $0x88] sm:$0xff] %vm1107, %v3649
      %3720 = vst.msk [vmem:[#allocation2 + $0x90] sm:$0xff] %vm1107, %v3651
      %3721 = vst.msk [vmem:[#allocation2 + $0x98] sm:$0xff] %vm1107, %v3653
      %3722 = vst.msk [vmem:[#allocation2 + $0xa0] sm:$0xff] %vm1107, %v3655
      %3723 = vst.msk [vmem:[#allocation2 + $0xa8] sm:$0xff] %vm1107, %v3657
      %3724 = vst.msk [vmem:[#allocation2 + $0xb0] sm:$0xff] %vm1107, %v3659
      %3725 = vst.msk [vmem:[#allocation2 + $0xb8] sm:$0xff] %vm1107, %v3661
      %3726 = vst.msk [vmem:[#allocation2 + $0xc0] sm:$0xff] %vm1107, %v3663
      %3727 = vst.msk [vmem:[#allocation2 + $0xc8] sm:$0xff] %vm1107, %v3665
      %3728 = vst.msk [vmem:[#allocation2 + $0xd0] sm:$0xff] %vm1107, %v3667
      %3729 = vst.msk [vmem:[#allocation2 + $0xd8] sm:$0xff] %vm1107, %v3669
      %3730 = vst.msk [vmem:[#allocation2 + $0xe0] sm:$0xff] %vm1107, %v3671
      %3731 = vst.msk [vmem:[#allocation2 + $0xe8] sm:$0xff] %vm1107, %v3673
      %3732 = vst.msk [vmem:[#allocation2 + $0xf0] sm:$0xff] %vm1107, %v3675
      %3733 = vst.msk [vmem:[#allocation2 + $0xf8] sm:$0xff] %vm1107, %v3677
      %3734 = vst.msk [vmem:[#allocation2] sm:$0xff] %vm1230, 0.0
      %3735 = vst.msk [vmem:[#allocation2 + $0x8] sm:$0xff] %vm1230, 0.0
      %3736 = vst.msk [vmem:[#allocation2 + $0x10] sm:$0xff] %vm1230, 0.0
      %vm3737 = vcmask 193664
      %3738 = vst.msk [vmem:[#allocation2 + $0x18] sm:$0x3f] %vm3737, 0.0
      %v3739 = vadd.s32 %v424, 2
      %v3740 = vadd.s32 %v425, 2
      %v3741 = vadd.s32 %v426, 2
      %v3742 = vadd.s32 %v427, 2
      %v3743 = vadd.s32 %v428, 2
      %v3744 = vadd.s32 %v429, 2
      %v3745 = vadd.s32 %v430, 2
      %v3746 = vadd.s32 %v431, 2
      %v3747 = vadd.s32 %v432, 2
      %v3748 = vadd.s32 %v433, 2
      %v3749 = vadd.s32 %v434, 2
      %v3750 = vadd.s32 %v435, 2
      %v3751 = vadd.s32 %v436, 2
      %v3752 = vadd.s32 %v437, 2
      %v3753 = vadd.s32 %v438, 2
      %v3754 = vadd.s32 %v439, 2
      %v3755 = vadd.s32 %v440, 2
      %v3756 = vadd.s32 %v441, 2
      %v3757 = vadd.s32 %v442, 2
      %v3758 = vadd.s32 %v443, 2
      %v3759 = vadd.s32 %v444, 2
      %v3760 = vadd.s32 %v445, 2
      %v3761 = vadd.s32 %v446, 2
      %v3762 = vadd.s32 %v447, 2
      %v3763 = vadd.s32 %v448, 2
      %v3764 = vadd.s32 %v449, 2
      %v3765 = vadd.s32 %v450, 2
      %v3766 = vadd.s32 %v451, 2
      %v3767 = vadd.s32 %v452, 2
      %vm3768 = vcmp.ge.s32.totalorder %v3739, 0
      %vm3769 = vcmp.ge.s32.totalorder %v3740, 0
      %vm3770 = vcmp.ge.s32.totalorder %v3741, 0
      %vm3771 = vcmp.ge.s32.totalorder %v3742, 0
      %vm3772 = vcmp.ge.s32.totalorder %v3743, 0
      %vm3773 = vcmp.ge.s32.totalorder %v3744, 0
      %vm3774 = vcmp.ge.s32.totalorder %v3745, 0
      %vm3775 = vcmp.ge.s32.totalorder %v3746, 0
      %vm3776 = vcmp.ge.s32.totalorder %v3747, 0
      %vm3777 = vcmp.ge.s32.totalorder %v3748, 0
      %vm3778 = vcmp.ge.s32.totalorder %v3749, 0
      %vm3779 = vcmp.ge.s32.totalorder %v3750, 0
      %vm3780 = vcmp.ge.s32.totalorder %v3751, 0
      %vm3781 = vcmp.ge.s32.totalorder %v3752, 0
      %vm3782 = vcmp.ge.s32.totalorder %v3753, 0
      %vm3783 = vcmp.ge.s32.totalorder %v3754, 0
      %vm3784 = vcmp.ge.s32.totalorder %v3755, 0
      %vm3785 = vcmp.ge.s32.totalorder %v3756, 0
      %vm3786 = vcmp.ge.s32.totalorder %v3757, 0
      %vm3787 = vcmp.ge.s32.totalorder %v3758, 0
      %vm3788 = vcmp.ge.s32.totalorder %v3759, 0
      %vm3789 = vcmp.ge.s32.totalorder %v3760, 0
      %vm3790 = vcmp.ge.s32.totalorder %v3761, 0
      %vm3791 = vcmp.ge.s32.totalorder %v3762, 0
      %vm3792 = vcmp.ge.s32.totalorder %v3763, 0
      %vm3793 = vcmp.ge.s32.totalorder %v3764, 0
      %vm3794 = vcmp.ge.s32.totalorder %v3765, 0
      %vm3795 = vcmp.ge.s32.totalorder %v3766, 0
      %vm3796 = vcmp.ge.s32.totalorder %v3767, 0
      %vm3797 = vcmp.lt.s32.totalorder %v3739, 16
      %vm3798 = vcmp.lt.s32.totalorder %v3740, 16
      %vm3799 = vcmp.lt.s32.totalorder %v3741, 16
      %vm3800 = vcmp.lt.s32.totalorder %v3742, 16
      %vm3801 = vcmp.lt.s32.totalorder %v3743, 16
      %vm3802 = vcmp.lt.s32.totalorder %v3744, 16
      %vm3803 = vcmp.lt.s32.totalorder %v3745, 16
      %vm3804 = vcmp.lt.s32.totalorder %v3746, 16
      %vm3805 = vcmp.lt.s32.totalorder %v3747, 16
      %vm3806 = vcmp.lt.s32.totalorder %v3748, 16
      %vm3807 = vcmp.lt.s32.totalorder %v3749, 16
      %vm3808 = vcmp.lt.s32.totalorder %v3750, 16
      %vm3809 = vcmp.lt.s32.totalorder %v3751, 16
      %vm3810 = vcmp.lt.s32.totalorder %v3752, 16
      %vm3811 = vcmp.lt.s32.totalorder %v3753, 16
      %vm3812 = vcmp.lt.s32.totalorder %v3754, 16
      %vm3813 = vcmp.lt.s32.totalorder %v3755, 16
      %vm3814 = vcmp.lt.s32.totalorder %v3756, 16
      %vm3815 = vcmp.lt.s32.totalorder %v3757, 16
      %vm3816 = vcmp.lt.s32.totalorder %v3758, 16
      %vm3817 = vcmp.lt.s32.totalorder %v3759, 16
      %vm3818 = vcmp.lt.s32.totalorder %v3760, 16
      %vm3819 = vcmp.lt.s32.totalorder %v3761, 16
      %vm3820 = vcmp.lt.s32.totalorder %v3762, 16
      %vm3821 = vcmp.lt.s32.totalorder %v3763, 16
      %vm3822 = vcmp.lt.s32.totalorder %v3764, 16
      %vm3823 = vcmp.lt.s32.totalorder %v3765, 16
      %vm3824 = vcmp.lt.s32.totalorder %v3766, 16
      %vm3825 = vcmp.lt.s32.totalorder %v3767, 16
      %vm3826 = vmand %vm3768, %vm3797
      %vm3827 = vmand %vm3769, %vm3798
      %vm3828 = vmand %vm3770, %vm3799
      %vm3829 = vmand %vm3771, %vm3800
      %vm3830 = vmand %vm3772, %vm3801
      %vm3831 = vmand %vm3773, %vm3802
      %vm3832 = vmand %vm3774, %vm3803
      %vm3833 = vmand %vm3775, %vm3804
      %vm3834 = vmand %vm3776, %vm3805
      %vm3835 = vmand %vm3777, %vm3806
      %vm3836 = vmand %vm3778, %vm3807
      %vm3837 = vmand %vm3779, %vm3808
      %vm3838 = vmand %vm3780, %vm3809
      %vm3839 = vmand %vm3781, %vm3810
      %vm3840 = vmand %vm3782, %vm3811
      %vm3841 = vmand %vm3783, %vm3812
      %vm3842 = vmand %vm3784, %vm3813
      %vm3843 = vmand %vm3785, %vm3814
      %vm3844 = vmand %vm3786, %vm3815
      %vm3845 = vmand %vm3787, %vm3816
      %vm3846 = vmand %vm3788, %vm3817
      %vm3847 = vmand %vm3789, %vm3818
      %vm3848 = vmand %vm3790, %vm3819
      %vm3849 = vmand %vm3791, %vm3820
      %vm3850 = vmand %vm3792, %vm3821
      %vm3851 = vmand %vm3793, %vm3822
      %vm3852 = vmand %vm3794, %vm3823
      %vm3853 = vmand %vm3795, %vm3824
      %vm3854 = vmand %vm3796, %vm3825
      %v3855 = vsel %vm3826, 1, 0
      %v3856 = vsel %vm3827, 1, 0
      %v3857 = vsel %vm3828, 1, 0
      %v3858 = vsel %vm3829, 1, 0
      %v3859 = vsel %vm3830, 1, 0
      %v3860 = vsel %vm3831, 1, 0
      %v3861 = vsel %vm3832, 1, 0
      %v3862 = vsel %vm3833, 1, 0
      %v3863 = vsel %vm3834, 1, 0
      %v3864 = vsel %vm3835, 1, 0
      %v3865 = vsel %vm3836, 1, 0
      %v3866 = vsel %vm3837, 1, 0
      %v3867 = vsel %vm3838, 1, 0
      %v3868 = vsel %vm3839, 1, 0
      %v3869 = vsel %vm3840, 1, 0
      %v3870 = vsel %vm3841, 1, 0
      %v3871 = vsel %vm3842, 1, 0
      %v3872 = vsel %vm3843, 1, 0
      %v3873 = vsel %vm3844, 1, 0
      %v3874 = vsel %vm3845, 1, 0
      %v3875 = vsel %vm3846, 1, 0
      %v3876 = vsel %vm3847, 1, 0
      %v3877 = vsel %vm3848, 1, 0
      %v3878 = vsel %vm3849, 1, 0
      %v3879 = vsel %vm3850, 1, 0
      %v3880 = vsel %vm3851, 1, 0
      %v3881 = vsel %vm3852, 1, 0
      %v3882 = vsel %vm3853, 1, 0
      %v3883 = vsel %vm3854, 1, 0
      %3884 = vset.pattern.permute.xlu0 0
      %3885 = vperm.xlu0 %3884, %v3855
      %v3886 = vpop.permute.xlu0 %3885
      %3887 = vset.pattern.permute.xlu0 0
      %3888 = vperm.xlu0 %3887, %v3856
      %v3889 = vpop.permute.xlu0 %3888
      %3890 = vset.pattern.permute.xlu0 0
      %3891 = vperm.xlu0 %3890, %v3857
      %v3892 = vpop.permute.xlu0 %3891
      %3893 = vset.pattern.permute.xlu0 0
      %3894 = vperm.xlu0 %3893, %v3858
      %v3895 = vpop.permute.xlu0 %3894
      %3896 = vset.pattern.permute.xlu0 0
      %3897 = vperm.xlu0 %3896, %v3859
      %v3898 = vpop.permute.xlu0 %3897
      %3899 = vset.pattern.permute.xlu0 0
      %3900 = vperm.xlu0 %3899, %v3860
      %v3901 = vpop.permute.xlu0 %3900
      %3902 = vset.pattern.permute.xlu0 0
      %3903 = vperm.xlu0 %3902, %v3861
      %v3904 = vpop.permute.xlu0 %3903
      %3905 = vset.pattern.permute.xlu0 0
      %3906 = vperm.xlu0 %3905, %v3862
      %v3907 = vpop.permute.xlu0 %3906
      %3908 = vset.pattern.permute.xlu0 0
      %3909 = vperm.xlu0 %3908, %v3863
      %v3910 = vpop.permute.xlu0 %3909
      %3911 = vset.pattern.permute.xlu0 0
      %3912 = vperm.xlu0 %3911, %v3864
      %v3913 = vpop.permute.xlu0 %3912
      %3914 = vset.pattern.permute.xlu0 0
      %3915 = vperm.xlu0 %3914, %v3865
      %v3916 = vpop.permute.xlu0 %3915
      %3917 = vset.pattern.permute.xlu0 0
      %3918 = vperm.xlu0 %3917, %v3866
      %v3919 = vpop.permute.xlu0 %3918
      %3920 = vset.pattern.permute.xlu0 0
      %3921 = vperm.xlu0 %3920, %v3867
      %v3922 = vpop.permute.xlu0 %3921
      %3923 = vset.pattern.permute.xlu0 0
      %3924 = vperm.xlu0 %3923, %v3868
      %v3925 = vpop.permute.xlu0 %3924
      %3926 = vset.pattern.permute.xlu0 0
      %3927 = vperm.xlu0 %3926, %v3869
      %v3928 = vpop.permute.xlu0 %3927
      %3929 = vset.pattern.permute.xlu0 0
      %3930 = vperm.xlu0 %3929, %v3870
      %v3931 = vpop.permute.xlu0 %3930
      %3932 = vset.pattern.permute.xlu0 0
      %3933 = vperm.xlu0 %3932, %v3871
      %v3934 = vpop.permute.xlu0 %3933
      %3935 = vset.pattern.permute.xlu0 0
      %3936 = vperm.xlu0 %3935, %v3872
      %v3937 = vpop.permute.xlu0 %3936
      %3938 = vset.pattern.permute.xlu0 0
      %3939 = vperm.xlu0 %3938, %v3873
      %v3940 = vpop.permute.xlu0 %3939
      %3941 = vset.pattern.permute.xlu0 0
      %3942 = vperm.xlu0 %3941, %v3874
      %v3943 = vpop.permute.xlu0 %3942
      %3944 = vset.pattern.permute.xlu0 0
      %3945 = vperm.xlu0 %3944, %v3875
      %v3946 = vpop.permute.xlu0 %3945
      %3947 = vset.pattern.permute.xlu0 0
      %3948 = vperm.xlu0 %3947, %v3876
      %v3949 = vpop.permute.xlu0 %3948
      %3950 = vset.pattern.permute.xlu0 0
      %3951 = vperm.xlu0 %3950, %v3877
      %v3952 = vpop.permute.xlu0 %3951
      %3953 = vset.pattern.permute.xlu0 0
      %3954 = vperm.xlu0 %3953, %v3878
      %v3955 = vpop.permute.xlu0 %3954
      %3956 = vset.pattern.permute.xlu0 0
      %3957 = vperm.xlu0 %3956, %v3879
      %v3958 = vpop.permute.xlu0 %3957
      %3959 = vset.pattern.permute.xlu0 0
      %3960 = vperm.xlu0 %3959, %v3880
      %v3961 = vpop.permute.xlu0 %3960
      %3962 = vset.pattern.permute.xlu0 0
      %3963 = vperm.xlu0 %3962, %v3881
      %v3964 = vpop.permute.xlu0 %3963
      %3965 = vset.pattern.permute.xlu0 0
      %3966 = vperm.xlu0 %3965, %v3882
      %v3967 = vpop.permute.xlu0 %3966
      %3968 = vset.pattern.permute.xlu0 0
      %3969 = vperm.xlu0 %3968, %v3883
      %v3970 = vpop.permute.xlu0 %3969
      %vm3971 = vcmp.eq.s32.totalorder %v3886, 1
      %vm3972 = vcmp.eq.s32.totalorder %v3889, 1
      %vm3973 = vcmp.eq.s32.totalorder %v3892, 1
      %vm3974 = vcmp.eq.s32.totalorder %v3895, 1
      %vm3975 = vcmp.eq.s32.totalorder %v3898, 1
      %vm3976 = vcmp.eq.s32.totalorder %v3901, 1
      %vm3977 = vcmp.eq.s32.totalorder %v3904, 1
      %vm3978 = vcmp.eq.s32.totalorder %v3907, 1
      %vm3979 = vcmp.eq.s32.totalorder %v3910, 1
      %vm3980 = vcmp.eq.s32.totalorder %v3913, 1
      %vm3981 = vcmp.eq.s32.totalorder %v3916, 1
      %vm3982 = vcmp.eq.s32.totalorder %v3919, 1
      %vm3983 = vcmp.eq.s32.totalorder %v3922, 1
      %vm3984 = vcmp.eq.s32.totalorder %v3925, 1
      %vm3985 = vcmp.eq.s32.totalorder %v3928, 1
      %vm3986 = vcmp.eq.s32.totalorder %v3931, 1
      %vm3987 = vcmp.eq.s32.totalorder %v3934, 1
      %vm3988 = vcmp.eq.s32.totalorder %v3937, 1
      %vm3989 = vcmp.eq.s32.totalorder %v3940, 1
      %vm3990 = vcmp.eq.s32.totalorder %v3943, 1
      %vm3991 = vcmp.eq.s32.totalorder %v3946, 1
      %vm3992 = vcmp.eq.s32.totalorder %v3949, 1
      %vm3993 = vcmp.eq.s32.totalorder %v3952, 1
      %vm3994 = vcmp.eq.s32.totalorder %v3955, 1
      %vm3995 = vcmp.eq.s32.totalorder %v3958, 1
      %vm3996 = vcmp.eq.s32.totalorder %v3961, 1
      %vm3997 = vcmp.eq.s32.totalorder %v3964, 1
      %vm3998 = vcmp.eq.s32.totalorder %v3967, 1
      %vm3999 = vcmp.eq.s32.totalorder %v3970, 1
      %vm4001 = vcmask 1045504
      %v4002 = vrot.slane %v3149, 2
      %v4003 = vrot.slane %v3150, 2
      %v4004 = vsel %vm4001, %v4002, %v4003
      %v4005 = vrot.slane %v3151, 2
      %v4006 = vsel %vm4001, %v4003, %v4005
      %v4007 = vrot.slane %v3152, 2
      %v4008 = vsel %vm4001, %v4005, %v4007
      %v4009 = vrot.slane %v3153, 2
      %v4010 = vsel %vm4001, %v4007, %v4009
      %v4011 = vrot.slane %v3154, 2
      %v4012 = vsel %vm4001, %v4009, %v4011
      %v4013 = vrot.slane %v3155, 2
      %v4014 = vsel %vm4001, %v4011, %v4013
      %v4015 = vrot.slane %v3156, 2
      %v4016 = vsel %vm4001, %v4013, %v4015
      %v4017 = vrot.slane %v3157, 2
      %v4018 = vsel %vm4001, %v4015, %v4017
      %v4019 = vrot.slane %v3158, 2
      %v4020 = vsel %vm4001, %v4017, %v4019
      %v4021 = vrot.slane %v3159, 2
      %v4022 = vsel %vm4001, %v4019, %v4021
      %v4023 = vrot.slane %v3160, 2
      %v4024 = vsel %vm4001, %v4021, %v4023
      %v4025 = vrot.slane %v3161, 2
      %v4026 = vsel %vm4001, %v4023, %v4025
      %v4027 = vrot.slane %v3162, 2
      %v4028 = vsel %vm4001, %v4025, %v4027
      %v4029 = vrot.slane %v3163, 2
      %v4030 = vsel %vm4001, %v4027, %v4029
      %v4031 = vrot.slane %v3164, 2
      %v4032 = vsel %vm4001, %v4029, %v4031
      %v4033 = vrot.slane %v3165, 2
      %v4034 = vsel %vm4001, %v4031, %v4033
      %v4035 = vrot.slane %v3166, 2
      %v4036 = vsel %vm4001, %v4033, %v4035
      %v4037 = vrot.slane %v3167, 2
      %v4038 = vsel %vm4001, %v4035, %v4037
      %v4039 = vrot.slane %v3168, 2
      %v4040 = vsel %vm4001, %v4037, %v4039
      %v4041 = vrot.slane %v3169, 2
      %v4042 = vsel %vm4001, %v4039, %v4041
      %v4043 = vrot.slane %v3170, 2
      %v4044 = vsel %vm4001, %v4041, %v4043
      %v4045 = vrot.slane %v3171, 2
      %v4046 = vsel %vm4001, %v4043, %v4045
      %v4047 = vrot.slane %v3172, 2
      %v4048 = vsel %vm4001, %v4045, %v4047
      %v4049 = vrot.slane %v3173, 2
      %v4050 = vsel %vm4001, %v4047, %v4049
      %v4051 = vrot.slane %v3174, 2
      %v4052 = vsel %vm4001, %v4049, %v4051
      %v4053 = vrot.slane %v3175, 2
      %v4054 = vsel %vm4001, %v4051, %v4053
      %v4055 = vrot.slane %v3176, 2
      %v4056 = vsel %vm4001, %v4053, %v4055
      %v4057 = vrot.slane %v3177, 2
      %v4058 = vsel %vm4001, %v4055, %v4057
      %v4088 = vsel %vm3971, %v4002, 0.0
      %v4089 = vsel %vm3972, %v4004, 0.0
      %v4090 = vsel %vm3973, %v4006, 0.0
      %v4091 = vsel %vm3974, %v4008, 0.0
      %v4092 = vsel %vm3975, %v4010, 0.0
      %v4093 = vsel %vm3976, %v4012, 0.0
      %v4094 = vsel %vm3977, %v4014, 0.0
      %v4095 = vsel %vm3978, %v4016, 0.0
      %v4096 = vsel %vm3979, %v4018, 0.0
      %v4097 = vsel %vm3980, %v4020, 0.0
      %v4098 = vsel %vm3981, %v4022, 0.0
      %v4099 = vsel %vm3982, %v4024, 0.0
      %v4100 = vsel %vm3983, %v4026, 0.0
      %v4101 = vsel %vm3984, %v4028, 0.0
      %v4102 = vsel %vm3985, %v4030, 0.0
      %v4103 = vsel %vm3986, %v4032, 0.0
      %v4104 = vsel %vm3987, %v4034, 0.0
      %v4105 = vsel %vm3988, %v4036, 0.0
      %v4106 = vsel %vm3989, %v4038, 0.0
      %v4107 = vsel %vm3990, %v4040, 0.0
      %v4108 = vsel %vm3991, %v4042, 0.0
      %v4109 = vsel %vm3992, %v4044, 0.0
      %v4110 = vsel %vm3993, %v4046, 0.0
      %v4111 = vsel %vm3994, %v4048, 0.0
      %v4112 = vsel %vm3995, %v4050, 0.0
      %v4113 = vsel %vm3996, %v4052, 0.0
      %v4114 = vsel %vm3997, %v4054, 0.0
      %v4115 = vsel %vm3998, %v4056, 0.0
      %v4116 = vsel %vm3999, %v4058, 0.0
      %4146 = vrot.lane.b32.xlu0 %v4088, 16
      %v4147 = vpop.permute.xlu0 %4146
      %4148 = vrot.lane.b32.xlu0 %v4089, 16
      %v4149 = vpop.permute.xlu0 %4148
      %4150 = vrot.lane.b32.xlu0 %v4090, 16
      %v4151 = vpop.permute.xlu0 %4150
      %4152 = vrot.lane.b32.xlu0 %v4091, 16
      %v4153 = vpop.permute.xlu0 %4152
      %4154 = vrot.lane.b32.xlu0 %v4092, 16
      %v4155 = vpop.permute.xlu0 %4154
      %4156 = vrot.lane.b32.xlu0 %v4093, 16
      %v4157 = vpop.permute.xlu0 %4156
      %4158 = vrot.lane.b32.xlu0 %v4094, 16
      %v4159 = vpop.permute.xlu0 %4158
      %4160 = vrot.lane.b32.xlu0 %v4095, 16
      %v4161 = vpop.permute.xlu0 %4160
      %4162 = vrot.lane.b32.xlu0 %v4096, 16
      %v4163 = vpop.permute.xlu0 %4162
      %4164 = vrot.lane.b32.xlu0 %v4097, 16
      %v4165 = vpop.permute.xlu0 %4164
      %4166 = vrot.lane.b32.xlu0 %v4098, 16
      %v4167 = vpop.permute.xlu0 %4166
      %4168 = vrot.lane.b32.xlu0 %v4099, 16
      %v4169 = vpop.permute.xlu0 %4168
      %4170 = vrot.lane.b32.xlu0 %v4100, 16
      %v4171 = vpop.permute.xlu0 %4170
      %4172 = vrot.lane.b32.xlu0 %v4101, 16
      %v4173 = vpop.permute.xlu0 %4172
      %4174 = vrot.lane.b32.xlu0 %v4102, 16
      %v4175 = vpop.permute.xlu0 %4174
      %4176 = vrot.lane.b32.xlu0 %v4103, 16
      %v4177 = vpop.permute.xlu0 %4176
      %4178 = vrot.lane.b32.xlu0 %v4104, 16
      %v4179 = vpop.permute.xlu0 %4178
      %4180 = vrot.lane.b32.xlu0 %v4105, 16
      %v4181 = vpop.permute.xlu0 %4180
      %4182 = vrot.lane.b32.xlu0 %v4106, 16
      %v4183 = vpop.permute.xlu0 %4182
      %4184 = vrot.lane.b32.xlu0 %v4107, 16
      %v4185 = vpop.permute.xlu0 %4184
      %4186 = vrot.lane.b32.xlu0 %v4108, 16
      %v4187 = vpop.permute.xlu0 %4186
      %4188 = vrot.lane.b32.xlu0 %v4109, 16
      %v4189 = vpop.permute.xlu0 %4188
      %4190 = vrot.lane.b32.xlu0 %v4110, 16
      %v4191 = vpop.permute.xlu0 %4190
      %4192 = vrot.lane.b32.xlu0 %v4111, 16
      %v4193 = vpop.permute.xlu0 %4192
      %4194 = vrot.lane.b32.xlu0 %v4112, 16
      %v4195 = vpop.permute.xlu0 %4194
      %4196 = vrot.lane.b32.xlu0 %v4113, 16
      %v4197 = vpop.permute.xlu0 %4196
      %4198 = vrot.lane.b32.xlu0 %v4114, 16
      %v4199 = vpop.permute.xlu0 %4198
      %4200 = vrot.lane.b32.xlu0 %v4115, 16
      %v4201 = vpop.permute.xlu0 %4200
      %4202 = vrot.lane.b32.xlu0 %v4116, 16
      %v4203 = vpop.permute.xlu0 %4202
      %vm4233 = vcmask 195718
      %4234 = vst.msk [vmem:[#allocation2 + $0x18] sm:$0xc0] %vm4233, %v4147
      %4235 = vst.msk [vmem:[#allocation2 + $0x20] sm:$0xff] %vm1230, %v4149
      %4236 = vst.msk [vmem:[#allocation2 + $0x28] sm:$0xff] %vm1230, %v4151
      %4237 = vst.msk [vmem:[#allocation2 + $0x30] sm:$0xff] %vm1230, %v4153
      %4238 = vst.msk [vmem:[#allocation2 + $0x38] sm:$0xff] %vm1230, %v4155
      %4239 = vst.msk [vmem:[#allocation2 + $0x40] sm:$0xff] %vm1230, %v4157
      %4240 = vst.msk [vmem:[#allocation2 + $0x48] sm:$0xff] %vm1230, %v4159
      %4241 = vst.msk [vmem:[#allocation2 + $0x50] sm:$0xff] %vm1230, %v4161
      %4242 = vst.msk [vmem:[#allocation2 + $0x58] sm:$0xff] %vm1230, %v4163
      %4243 = vst.msk [vmem:[#allocation2 + $0x60] sm:$0xff] %vm1230, %v4165
      %4244 = vst.msk [vmem:[#allocation2 + $0x68] sm:$0xff] %vm1230, %v4167
      %4245 = vst.msk [vmem:[#allocation2 + $0x70] sm:$0xff] %vm1230, %v4169
      %4246 = vst.msk [vmem:[#allocation2 + $0x78] sm:$0xff] %vm1230, %v4171
      %4247 = vst.msk [vmem:[#allocation2 + $0x80] sm:$0xff] %vm1230, %v4173
      %4248 = vst.msk [vmem:[#allocation2 + $0x88] sm:$0xff] %vm1230, %v4175
      %4249 = vst.msk [vmem:[#allocation2 + $0x90] sm:$0xff] %vm1230, %v4177
      %4250 = vst.msk [vmem:[#allocation2 + $0x98] sm:$0xff] %vm1230, %v4179
      %4251 = vst.msk [vmem:[#allocation2 + $0xa0] sm:$0xff] %vm1230, %v4181
      %4252 = vst.msk [vmem:[#allocation2 + $0xa8] sm:$0xff] %vm1230, %v4183
      %4253 = vst.msk [vmem:[#allocation2 + $0xb0] sm:$0xff] %vm1230, %v4185
      %4254 = vst.msk [vmem:[#allocation2 + $0xb8] sm:$0xff] %vm1230, %v4187
      %4255 = vst.msk [vmem:[#allocation2 + $0xc0] sm:$0xff] %vm1230, %v4189
      %4256 = vst.msk [vmem:[#allocation2 + $0xc8] sm:$0xff] %vm1230, %v4191
      %4257 = vst.msk [vmem:[#allocation2 + $0xd0] sm:$0xff] %vm1230, %v4193
      %4258 = vst.msk [vmem:[#allocation2 + $0xd8] sm:$0xff] %vm1230, %v4195
      %4259 = vst.msk [vmem:[#allocation2 + $0xe0] sm:$0xff] %vm1230, %v4197
      %4260 = vst.msk [vmem:[#allocation2 + $0xe8] sm:$0xff] %vm1230, %v4199
      %4261 = vst.msk [vmem:[#allocation2 + $0xf0] sm:$0xff] %vm1230, %v4201
      %4262 = vst.msk [vmem:[#allocation2 + $0xf8] sm:$0xff] %vm1230, %v4203
      %vm4263 = vcmask 255168
      %4264 = vst.msk [vmem:[#allocation2] sm:$0x3] %vm4263, 0.0
      %v4265 = vadd.s32 %v421, 4294967294
      %v4266 = vadd.s32 %v422, 4294967294
      %v4267 = vadd.s32 %v423, 4294967294
      %v4268 = vadd.s32 %v424, 4294967294
      %vm4269 = vcmp.ge.s32.totalorder %v4265, 0
      %vm4270 = vcmp.ge.s32.totalorder %v4266, 0
      %vm4271 = vcmp.ge.s32.totalorder %v4267, 0
      %vm4272 = vcmp.ge.s32.totalorder %v4268, 0
      %vm4273 = vcmp.lt.s32.totalorder %v4265, 16
      %vm4274 = vcmp.lt.s32.totalorder %v4266, 16
      %vm4275 = vcmp.lt.s32.totalorder %v4267, 16
      %vm4276 = vcmp.lt.s32.totalorder %v4268, 16
      %vm4277 = vmand %vm4269, %vm4273
      %vm4278 = vmand %vm4270, %vm4274
      %vm4279 = vmand %vm4271, %vm4275
      %vm4280 = vmand %vm4272, %vm4276
      %v4281 = vsel %vm4277, 1, 0
      %v4282 = vsel %vm4278, 1, 0
      %v4283 = vsel %vm4279, 1, 0
      %v4284 = vsel %vm4280, 1, 0
      %4285 = vset.pattern.permute.xlu0 0
      %4286 = vperm.xlu0 %4285, %v4281
      %v4287 = vpop.permute.xlu0 %4286
      %4288 = vset.pattern.permute.xlu0 0
      %4289 = vperm.xlu0 %4288, %v4282
      %v4290 = vpop.permute.xlu0 %4289
      %4291 = vset.pattern.permute.xlu0 0
      %4292 = vperm.xlu0 %4291, %v4283
      %v4293 = vpop.permute.xlu0 %4292
      %4294 = vset.pattern.permute.xlu0 0
      %4295 = vperm.xlu0 %4294, %v4284
      %v4296 = vpop.permute.xlu0 %4295
      %vm4297 = vcmp.eq.s32.totalorder %v4287, 1
      %vm4298 = vcmp.eq.s32.totalorder %v4290, 1
      %vm4299 = vcmp.eq.s32.totalorder %v4293, 1
      %vm4300 = vcmp.eq.s32.totalorder %v4296, 1
      %v4304 = vrot.slane %v3177, 6
      %v4305 = vsel %vm3477, %v3531, %v4304
      %v4306 = vrot.slane %v3178, 6
      %v4307 = vsel %vm3477, %v4304, %v4306
      %v4308 = vrot.slane %v3179, 6
      %v4309 = vsel %vm3477, %v4306, %v4308
      %v4310 = vrot.slane %v3180, 6
      %v4311 = vsel %vm3477, %v4308, %v4310
      %v4316 = vsel %vm4297, %v3478, 0.0
      %v4317 = vsel %vm4298, %v3480, 0.0
      %v4318 = vsel %vm4299, %v3482, 0.0
      %v4319 = vsel %vm4300, %v3484, 0.0
      %v4320 = vsel %vm3421, %v3486, 0.0
      %v4321 = vsel %vm3422, %v3488, 0.0
      %v4322 = vsel %vm3423, %v3490, 0.0
      %v4323 = vsel %vm3424, %v3492, 0.0
      %v4324 = vsel %vm3425, %v3494, 0.0
      %v4325 = vsel %vm3426, %v3496, 0.0
      %v4326 = vsel %vm3427, %v3498, 0.0
      %v4327 = vsel %vm3428, %v3500, 0.0
      %v4328 = vsel %vm3429, %v3502, 0.0
      %v4329 = vsel %vm3430, %v3504, 0.0
      %v4330 = vsel %vm3431, %v3506, 0.0
      %v4331 = vsel %vm3432, %v3508, 0.0
      %v4332 = vsel %vm3433, %v3510, 0.0
      %v4333 = vsel %vm3434, %v3512, 0.0
      %v4334 = vsel %vm3435, %v3514, 0.0
      %v4335 = vsel %vm3436, %v3516, 0.0
      %v4336 = vsel %vm3437, %v3518, 0.0
      %v4337 = vsel %vm3438, %v3520, 0.0
      %v4338 = vsel %vm3439, %v3522, 0.0
      %v4339 = vsel %vm3440, %v3524, 0.0
      %v4340 = vsel %vm3441, %v3526, 0.0
      %v4341 = vsel %vm3442, %v3528, 0.0
      %v4342 = vsel %vm3443, %v3530, 0.0
      %v4343 = vsel %vm3444, %v3532, 0.0
      %v4344 = vsel %vm3445, %v4305, 0.0
      %v4345 = vsel %vm3446, %v4307, 0.0
      %v4346 = vsel %vm3447, %v4309, 0.0
      %v4347 = vsel %vm3448, %v4311, 0.0
      %4380 = vrot.lane.b32.xlu0 %v4316, 24
      %v4381 = vpop.permute.xlu0 %4380
      %4382 = vrot.lane.b32.xlu0 %v4317, 24
      %v4383 = vpop.permute.xlu0 %4382
      %4384 = vrot.lane.b32.xlu0 %v4318, 24
      %v4385 = vpop.permute.xlu0 %4384
      %4386 = vrot.lane.b32.xlu0 %v4319, 24
      %v4387 = vpop.permute.xlu0 %4386
      %4388 = vrot.lane.b32.xlu0 %v4320, 24
      %v4389 = vpop.permute.xlu0 %4388
      %4390 = vrot.lane.b32.xlu0 %v4321, 24
      %v4391 = vpop.permute.xlu0 %4390
      %4392 = vrot.lane.b32.xlu0 %v4322, 24
      %v4393 = vpop.permute.xlu0 %4392
      %4394 = vrot.lane.b32.xlu0 %v4323, 24
      %v4395 = vpop.permute.xlu0 %4394
      %4396 = vrot.lane.b32.xlu0 %v4324, 24
      %v4397 = vpop.permute.xlu0 %4396
      %4398 = vrot.lane.b32.xlu0 %v4325, 24
      %v4399 = vpop.permute.xlu0 %4398
      %4400 = vrot.lane.b32.xlu0 %v4326, 24
      %v4401 = vpop.permute.xlu0 %4400
      %4402 = vrot.lane.b32.xlu0 %v4327, 24
      %v4403 = vpop.permute.xlu0 %4402
      %4404 = vrot.lane.b32.xlu0 %v4328, 24
      %v4405 = vpop.permute.xlu0 %4404
      %4406 = vrot.lane.b32.xlu0 %v4329, 24
      %v4407 = vpop.permute.xlu0 %4406
      %4408 = vrot.lane.b32.xlu0 %v4330, 24
      %v4409 = vpop.permute.xlu0 %4408
      %4410 = vrot.lane.b32.xlu0 %v4331, 24
      %v4411 = vpop.permute.xlu0 %4410
      %4412 = vrot.lane.b32.xlu0 %v4332, 24
      %v4413 = vpop.permute.xlu0 %4412
      %4414 = vrot.lane.b32.xlu0 %v4333, 24
      %v4415 = vpop.permute.xlu0 %4414
      %4416 = vrot.lane.b32.xlu0 %v4334, 24
      %v4417 = vpop.permute.xlu0 %4416
      %4418 = vrot.lane.b32.xlu0 %v4335, 24
      %v4419 = vpop.permute.xlu0 %4418
      %4420 = vrot.lane.b32.xlu0 %v4336, 24
      %v4421 = vpop.permute.xlu0 %4420
      %4422 = vrot.lane.b32.xlu0 %v4337, 24
      %v4423 = vpop.permute.xlu0 %4422
      %4424 = vrot.lane.b32.xlu0 %v4338, 24
      %v4425 = vpop.permute.xlu0 %4424
      %4426 = vrot.lane.b32.xlu0 %v4339, 24
      %v4427 = vpop.permute.xlu0 %4426
      %4428 = vrot.lane.b32.xlu0 %v4340, 24
      %v4429 = vpop.permute.xlu0 %4428
      %4430 = vrot.lane.b32.xlu0 %v4341, 24
      %v4431 = vpop.permute.xlu0 %4430
      %4432 = vrot.lane.b32.xlu0 %v4342, 24
      %v4433 = vpop.permute.xlu0 %4432
      %4434 = vrot.lane.b32.xlu0 %v4343, 24
      %v4435 = vpop.permute.xlu0 %4434
      %4436 = vrot.lane.b32.xlu0 %v4344, 24
      %v4437 = vpop.permute.xlu0 %4436
      %4438 = vrot.lane.b32.xlu0 %v4345, 24
      %v4439 = vpop.permute.xlu0 %4438
      %4440 = vrot.lane.b32.xlu0 %v4346, 24
      %v4441 = vpop.permute.xlu0 %4440
      %4442 = vrot.lane.b32.xlu0 %v4347, 24
      %v4443 = vpop.permute.xlu0 %4442
      %vm4476 = vcmask 261314
      %4477 = vst.msk [vmem:[#allocation2] sm:$0xfc] %vm4476, %v4381
      %4478 = vst.msk [vmem:[#allocation2 + $0x8] sm:$0xff] %vm1983, %v4383
      %4479 = vst.msk [vmem:[#allocation2 + $0x10] sm:$0xff] %vm1983, %v4385
      %4480 = vst.msk [vmem:[#allocation2 + $0x18] sm:$0xff] %vm1983, %v4387
      %4481 = vst.msk [vmem:[#allocation2 + $0x20] sm:$0xff] %vm1983, %v4389
      %4482 = vst.msk [vmem:[#allocation2 + $0x28] sm:$0xff] %vm1983, %v4391
      %4483 = vst.msk [vmem:[#allocation2 + $0x30] sm:$0xff] %vm1983, %v4393
      %4484 = vst.msk [vmem:[#allocation2 + $0x38] sm:$0xff] %vm1983, %v4395
      %4485 = vst.msk [vmem:[#allocation2 + $0x40] sm:$0xff] %vm1983, %v4397
      %4486 = vst.msk [vmem:[#allocation2 + $0x48] sm:$0xff] %vm1983, %v4399
      %4487 = vst.msk [vmem:[#allocation2 + $0x50] sm:$0xff] %vm1983, %v4401
      %4488 = vst.msk [vmem:[#allocation2 + $0x58] sm:$0xff] %vm1983, %v4403
      %4489 = vst.msk [vmem:[#allocation2 + $0x60] sm:$0xff] %vm1983, %v4405
      %4490 = vst.msk [vmem:[#allocation2 + $0x68] sm:$0xff] %vm1983, %v4407
      %4491 = vst.msk [vmem:[#allocation2 + $0x70] sm:$0xff] %vm1983, %v4409
      %4492 = vst.msk [vmem:[#allocation2 + $0x78] sm:$0xff] %vm1983, %v4411
      %4493 = vst.msk [vmem:[#allocation2 + $0x80] sm:$0xff] %vm1983, %v4413
      %4494 = vst.msk [vmem:[#allocation2 + $0x88] sm:$0xff] %vm1983, %v4415
      %4495 = vst.msk [vmem:[#allocation2 + $0x90] sm:$0xff] %vm1983, %v4417
      %4496 = vst.msk [vmem:[#allocation2 + $0x98] sm:$0xff] %vm1983, %v4419
      %4497 = vst.msk [vmem:[#allocation2 + $0xa0] sm:$0xff] %vm1983, %v4421
      %4498 = vst.msk [vmem:[#allocation2 + $0xa8] sm:$0xff] %vm1983, %v4423
      %4499 = vst.msk [vmem:[#allocation2 + $0xb0] sm:$0xff] %vm1983, %v4425
      %4500 = vst.msk [vmem:[#allocation2 + $0xb8] sm:$0xff] %vm1983, %v4427
      %4501 = vst.msk [vmem:[#allocation2 + $0xc0] sm:$0xff] %vm1983, %v4429
      %4502 = vst.msk [vmem:[#allocation2 + $0xc8] sm:$0xff] %vm1983, %v4431
      %4503 = vst.msk [vmem:[#allocation2 + $0xd0] sm:$0xff] %vm1983, %v4433
      %4504 = vst.msk [vmem:[#allocation2 + $0xd8] sm:$0xff] %vm1983, %v4435
      %4505 = vst.msk [vmem:[#allocation2 + $0xe0] sm:$0xff] %vm1983, %v4437
      %4506 = vst.msk [vmem:[#allocation2 + $0xe8] sm:$0xff] %vm1983, %v4439
      %4507 = vst.msk [vmem:[#allocation2 + $0xf0] sm:$0xff] %vm1983, %v4441
      %4508 = vst.msk [vmem:[#allocation2 + $0xf8] sm:$0xff] %vm1983, %v4443
      %4509 = vrot.lane.b32.xlu0 %v3149, 32
      %v4510 = vpop.permute.xlu0 %4509
      %4511 = vrot.lane.b32.xlu0 %v3150, 32
      %v4512 = vpop.permute.xlu0 %4511
      %4513 = vrot.lane.b32.xlu0 %v3151, 32
      %v4514 = vpop.permute.xlu0 %4513
      %4515 = vrot.lane.b32.xlu0 %v3152, 32
      %v4516 = vpop.permute.xlu0 %4515
      %4517 = vrot.lane.b32.xlu0 %v3153, 32
      %v4518 = vpop.permute.xlu0 %4517
      %4519 = vrot.lane.b32.xlu0 %v3154, 32
      %v4520 = vpop.permute.xlu0 %4519
      %4521 = vrot.lane.b32.xlu0 %v3155, 32
      %v4522 = vpop.permute.xlu0 %4521
      %4523 = vrot.lane.b32.xlu0 %v3156, 32
      %v4524 = vpop.permute.xlu0 %4523
      %4525 = vrot.lane.b32.xlu0 %v3157, 32
      %v4526 = vpop.permute.xlu0 %4525
      %4527 = vrot.lane.b32.xlu0 %v3158, 32
      %v4528 = vpop.permute.xlu0 %4527
      %4529 = vrot.lane.b32.xlu0 %v3159, 32
      %v4530 = vpop.permute.xlu0 %4529
      %4531 = vrot.lane.b32.xlu0 %v3160, 32
      %v4532 = vpop.permute.xlu0 %4531
      %4533 = vrot.lane.b32.xlu0 %v3161, 32
      %v4534 = vpop.permute.xlu0 %4533
      %4535 = vrot.lane.b32.xlu0 %v3162, 32
      %v4536 = vpop.permute.xlu0 %4535
      %4537 = vrot.lane.b32.xlu0 %v3163, 32
      %v4538 = vpop.permute.xlu0 %4537
      %4539 = vrot.lane.b32.xlu0 %v3164, 32
      %v4540 = vpop.permute.xlu0 %4539
      %4541 = vrot.lane.b32.xlu0 %v3165, 32
      %v4542 = vpop.permute.xlu0 %4541
      %4543 = vrot.lane.b32.xlu0 %v3166, 32
      %v4544 = vpop.permute.xlu0 %4543
      %4545 = vrot.lane.b32.xlu0 %v3167, 32
      %v4546 = vpop.permute.xlu0 %4545
      %4547 = vrot.lane.b32.xlu0 %v3168, 32
      %v4548 = vpop.permute.xlu0 %4547
      %4549 = vrot.lane.b32.xlu0 %v3169, 32
      %v4550 = vpop.permute.xlu0 %4549
      %4551 = vrot.lane.b32.xlu0 %v3170, 32
      %v4552 = vpop.permute.xlu0 %4551
      %4553 = vrot.lane.b32.xlu0 %v3171, 32
      %v4554 = vpop.permute.xlu0 %4553
      %4555 = vrot.lane.b32.xlu0 %v3172, 32
      %v4556 = vpop.permute.xlu0 %4555
      %4557 = vrot.lane.b32.xlu0 %v3173, 32
      %v4558 = vpop.permute.xlu0 %4557
      %4559 = vrot.lane.b32.xlu0 %v3174, 32
      %v4560 = vpop.permute.xlu0 %4559
      %4561 = vrot.lane.b32.xlu0 %v3175, 32
      %v4562 = vpop.permute.xlu0 %4561
      %4563 = vrot.lane.b32.xlu0 %v3176, 32
      %v4564 = vpop.permute.xlu0 %4563
      %4565 = vrot.lane.b32.xlu0 %v3177, 32
      %v4566 = vpop.permute.xlu0 %4565
      %4567 = vrot.lane.b32.xlu0 %v3178, 32
      %v4568 = vpop.permute.xlu0 %4567
      %4569 = vrot.lane.b32.xlu0 %v3179, 32
      %v4570 = vpop.permute.xlu0 %4569
      %4571 = vrot.lane.b32.xlu0 %v3180, 32
      %v4572 = vpop.permute.xlu0 %4571
      %4605 = vst.msk [vmem:[#allocation2] sm:$0xff] %vm2111, %v4510
      %4606 = vst.msk [vmem:[#allocation2 + $0x8] sm:$0xff] %vm2111, %v4512
      %4607 = vst.msk [vmem:[#allocation2 + $0x10] sm:$0xff] %vm2111, %v4514
      %4608 = vst.msk [vmem:[#allocation2 + $0x18] sm:$0xff] %vm2111, %v4516
      %4609 = vst.msk [vmem:[#allocation2 + $0x20] sm:$0xff] %vm2111, %v4518
      %4610 = vst.msk [vmem:[#allocation2 + $0x28] sm:$0xff] %vm2111, %v4520
      %4611 = vst.msk [vmem:[#allocation2 + $0x30] sm:$0xff] %vm2111, %v4522
      %4612 = vst.msk [vmem:[#allocation2 + $0x38] sm:$0xff] %vm2111, %v4524
      %4613 = vst.msk [vmem:[#allocation2 + $0x40] sm:$0xff] %vm2111, %v4526
      %4614 = vst.msk [vmem:[#allocation2 + $0x48] sm:$0xff] %vm2111, %v4528
      %4615 = vst.msk [vmem:[#allocation2 + $0x50] sm:$0xff] %vm2111, %v4530
      %4616 = vst.msk [vmem:[#allocation2 + $0x58] sm:$0xff] %vm2111, %v4532
      %4617 = vst.msk [vmem:[#allocation2 + $0x60] sm:$0xff] %vm2111, %v4534
      %4618 = vst.msk [vmem:[#allocation2 + $0x68] sm:$0xff] %vm2111, %v4536
      %4619 = vst.msk [vmem:[#allocation2 + $0x70] sm:$0xff] %vm2111, %v4538
      %4620 = vst.msk [vmem:[#allocation2 + $0x78] sm:$0xff] %vm2111, %v4540
      %4621 = vst.msk [vmem:[#allocation2 + $0x80] sm:$0xff] %vm2111, %v4542
      %4622 = vst.msk [vmem:[#allocation2 + $0x88] sm:$0xff] %vm2111, %v4544
      %4623 = vst.msk [vmem:[#allocation2 + $0x90] sm:$0xff] %vm2111, %v4546
      %4624 = vst.msk [vmem:[#allocation2 + $0x98] sm:$0xff] %vm2111, %v4548
      %4625 = vst.msk [vmem:[#allocation2 + $0xa0] sm:$0xff] %vm2111, %v4550
      %4626 = vst.msk [vmem:[#allocation2 + $0xa8] sm:$0xff] %vm2111, %v4552
      %4627 = vst.msk [vmem:[#allocation2 + $0xb0] sm:$0xff] %vm2111, %v4554
      %4628 = vst.msk [vmem:[#allocation2 + $0xb8] sm:$0xff] %vm2111, %v4556
      %4629 = vst.msk [vmem:[#allocation2 + $0xc0] sm:$0xff] %vm2111, %v4558
      %4630 = vst.msk [vmem:[#allocation2 + $0xc8] sm:$0xff] %vm2111, %v4560
      %4631 = vst.msk [vmem:[#allocation2 + $0xd0] sm:$0xff] %vm2111, %v4562
      %4632 = vst.msk [vmem:[#allocation2 + $0xd8] sm:$0xff] %vm2111, %v4564
      %4633 = vst.msk [vmem:[#allocation2 + $0xe0] sm:$0xff] %vm2111, %v4566
      %4634 = vst.msk [vmem:[#allocation2 + $0xe8] sm:$0xff] %vm2111, %v4568
      %4635 = vst.msk [vmem:[#allocation2 + $0xf0] sm:$0xff] %vm2111, %v4570
      %4636 = vst.msk [vmem:[#allocation2 + $0xf8] sm:$0xff] %vm2111, %v4572
      %vm4637 = vcmask 386368
      %4638 = vst.msk [vmem:[#allocation2 + $0xfe] sm:$0x3] %vm4637, 0.0
      %v4639 = vadd.s32 %v421, 2
      %v4640 = vadd.s32 %v422, 2
      %v4641 = vadd.s32 %v423, 2
      %vm4642 = vcmp.ge.s32.totalorder %v4639, 0
      %vm4643 = vcmp.ge.s32.totalorder %v4640, 0
      %vm4644 = vcmp.ge.s32.totalorder %v4641, 0
      %vm4645 = vcmp.lt.s32.totalorder %v4639, 16
      %vm4646 = vcmp.lt.s32.totalorder %v4640, 16
      %vm4647 = vcmp.lt.s32.totalorder %v4641, 16
      %vm4648 = vmand %vm4642, %vm4645
      %vm4649 = vmand %vm4643, %vm4646
      %vm4650 = vmand %vm4644, %vm4647
      %v4651 = vsel %vm4648, 1, 0
      %v4652 = vsel %vm4649, 1, 0
      %v4653 = vsel %vm4650, 1, 0
      %4654 = vset.pattern.permute.xlu0 0
      %4655 = vperm.xlu0 %4654, %v4651
      %v4656 = vpop.permute.xlu0 %4655
      %4657 = vset.pattern.permute.xlu0 0
      %4658 = vperm.xlu0 %4657, %v4652
      %v4659 = vpop.permute.xlu0 %4658
      %4660 = vset.pattern.permute.xlu0 0
      %4661 = vperm.xlu0 %4660, %v4653
      %v4662 = vpop.permute.xlu0 %4661
      %vm4663 = vcmp.eq.s32.totalorder %v4656, 1
      %vm4664 = vcmp.eq.s32.totalorder %v4659, 1
      %vm4665 = vcmp.eq.s32.totalorder %v4662, 1
      %v4666 = vrot.slane %v3178, 2
      %v4667 = vsel %vm4001, %v4057, %v4666
      %v4668 = vrot.slane %v3179, 2
      %v4669 = vsel %vm4001, %v4666, %v4668
      %v4670 = vrot.slane %v3180, 2
      %v4671 = vsel %vm4001, %v4668, %v4670
      %v4676 = vsel %vm4663, %v4004, 0.0
      %v4677 = vsel %vm4664, %v4006, 0.0
      %v4678 = vsel %vm4665, %v4008, 0.0
      %v4679 = vsel %vm3971, %v4010, 0.0
      %v4680 = vsel %vm3972, %v4012, 0.0
      %v4681 = vsel %vm3973, %v4014, 0.0
      %v4682 = vsel %vm3974, %v4016, 0.0
      %v4683 = vsel %vm3975, %v4018, 0.0
      %v4684 = vsel %vm3976, %v4020, 0.0
      %v4685 = vsel %vm3977, %v4022, 0.0
      %v4686 = vsel %vm3978, %v4024, 0.0
      %v4687 = vsel %vm3979, %v4026, 0.0
      %v4688 = vsel %vm3980, %v4028, 0.0
      %v4689 = vsel %vm3981, %v4030, 0.0
      %v4690 = vsel %vm3982, %v4032, 0.0
      %v4691 = vsel %vm3983, %v4034, 0.0
      %v4692 = vsel %vm3984, %v4036, 0.0
      %v4693 = vsel %vm3985, %v4038, 0.0
      %v4694 = vsel %vm3986, %v4040, 0.0
      %v4695 = vsel %vm3987, %v4042, 0.0
      %v4696 = vsel %vm3988, %v4044, 0.0
      %v4697 = vsel %vm3989, %v4046, 0.0
      %v4698 = vsel %vm3990, %v4048, 0.0
      %v4699 = vsel %vm3991, %v4050, 0.0
      %v4700 = vsel %vm3992, %v4052, 0.0
      %v4701 = vsel %vm3993, %v4054, 0.0
      %v4702 = vsel %vm3994, %v4056, 0.0
      %v4703 = vsel %vm3995, %v4058, 0.0
      %v4704 = vsel %vm3996, %v4667, 0.0
      %v4705 = vsel %vm3997, %v4669, 0.0
      %v4706 = vsel %vm3998, %v4671, 0.0
      %v4707 = vsel %vm3999, %v4670, 0.0
      %4740 = vrot.lane.b32.xlu0 %v4676, 40
      %v4741 = vpop.permute.xlu0 %4740
      %4742 = vrot.lane.b32.xlu0 %v4677, 40
      %v4743 = vpop.permute.xlu0 %4742
      %4744 = vrot.lane.b32.xlu0 %v4678, 40
      %v4745 = vpop.permute.xlu0 %4744
      %4746 = vrot.lane.b32.xlu0 %v4679, 40
      %v4747 = vpop.permute.xlu0 %4746
      %4748 = vrot.lane.b32.xlu0 %v4680, 40
      %v4749 = vpop.permute.xlu0 %4748
      %4750 = vrot.lane.b32.xlu0 %v4681, 40
      %v4751 = vpop.permute.xlu0 %4750
      %4752 = vrot.lane.b32.xlu0 %v4682, 40
      %v4753 = vpop.permute.xlu0 %4752
      %4754 = vrot.lane.b32.xlu0 %v4683, 40
      %v4755 = vpop.permute.xlu0 %4754
      %4756 = vrot.lane.b32.xlu0 %v4684, 40
      %v4757 = vpop.permute.xlu0 %4756
      %4758 = vrot.lane.b32.xlu0 %v4685, 40
      %v4759 = vpop.permute.xlu0 %4758
      %4760 = vrot.lane.b32.xlu0 %v4686, 40
      %v4761 = vpop.permute.xlu0 %4760
      %4762 = vrot.lane.b32.xlu0 %v4687, 40
      %v4763 = vpop.permute.xlu0 %4762
      %4764 = vrot.lane.b32.xlu0 %v4688, 40
      %v4765 = vpop.permute.xlu0 %4764
      %4766 = vrot.lane.b32.xlu0 %v4689, 40
      %v4767 = vpop.permute.xlu0 %4766
      %4768 = vrot.lane.b32.xlu0 %v4690, 40
      %v4769 = vpop.permute.xlu0 %4768
      %4770 = vrot.lane.b32.xlu0 %v4691, 40
      %v4771 = vpop.permute.xlu0 %4770
      %4772 = vrot.lane.b32.xlu0 %v4692, 40
      %v4773 = vpop.permute.xlu0 %4772
      %4774 = vrot.lane.b32.xlu0 %v4693, 40
      %v4775 = vpop.permute.xlu0 %4774
      %4776 = vrot.lane.b32.xlu0 %v4694, 40
      %v4777 = vpop.permute.xlu0 %4776
      %4778 = vrot.lane.b32.xlu0 %v4695, 40
      %v4779 = vpop.permute.xlu0 %4778
      %4780 = vrot.lane.b32.xlu0 %v4696, 40
      %v4781 = vpop.permute.xlu0 %4780
      %4782 = vrot.lane.b32.xlu0 %v4697, 40
      %v4783 = vpop.permute.xlu0 %4782
      %4784 = vrot.lane.b32.xlu0 %v4698, 40
      %v4785 = vpop.permute.xlu0 %4784
      %4786 = vrot.lane.b32.xlu0 %v4699, 40
      %v4787 = vpop.permute.xlu0 %4786
      %4788 = vrot.lane.b32.xlu0 %v4700, 40
      %v4789 = vpop.permute.xlu0 %4788
      %4790 = vrot.lane.b32.xlu0 %v4701, 40
      %v4791 = vpop.permute.xlu0 %4790
      %4792 = vrot.lane.b32.xlu0 %v4702, 40
      %v4793 = vpop.permute.xlu0 %4792
      %4794 = vrot.lane.b32.xlu0 %v4703, 40
      %v4795 = vpop.permute.xlu0 %4794
      %4796 = vrot.lane.b32.xlu0 %v4704, 40
      %v4797 = vpop.permute.xlu0 %4796
      %4798 = vrot.lane.b32.xlu0 %v4705, 40
      %v4799 = vpop.permute.xlu0 %4798
      %4800 = vrot.lane.b32.xlu0 %v4706, 40
      %v4801 = vpop.permute.xlu0 %4800
      %4802 = vrot.lane.b32.xlu0 %v4707, 40
      %v4803 = vpop.permute.xlu0 %4802
      %4836 = vst.msk [vmem:[#allocation2] sm:$0xff] %vm2319, %v4741
      %4837 = vst.msk [vmem:[#allocation2 + $0x8] sm:$0xff] %vm2319, %v4743
      %4838 = vst.msk [vmem:[#allocation2 + $0x10] sm:$0xff] %vm2319, %v4745
      %4839 = vst.msk [vmem:[#allocation2 + $0x18] sm:$0xff] %vm2319, %v4747
      %4840 = vst.msk [vmem:[#allocation2 + $0x20] sm:$0xff] %vm2319, %v4749
      %4841 = vst.msk [vmem:[#allocation2 + $0x28] sm:$0xff] %vm2319, %v4751
      %4842 = vst.msk [vmem:[#allocation2 + $0x30] sm:$0xff] %vm2319, %v4753
      %4843 = vst.msk [vmem:[#allocation2 + $0x38] sm:$0xff] %vm2319, %v4755
      %4844 = vst.msk [vmem:[#allocation2 + $0x40] sm:$0xff] %vm2319, %v4757
      %4845 = vst.msk [vmem:[#allocation2 + $0x48] sm:$0xff] %vm2319, %v4759
      %4846 = vst.msk [vmem:[#allocation2 + $0x50] sm:$0xff] %vm2319, %v4761
      %4847 = vst.msk [vmem:[#allocation2 + $0x58] sm:$0xff] %vm2319, %v4763
      %4848 = vst.msk [vmem:[#allocation2 + $0x60] sm:$0xff] %vm2319, %v4765
      %4849 = vst.msk [vmem:[#allocation2 + $0x68] sm:$0xff] %vm2319, %v4767
      %4850 = vst.msk [vmem:[#allocation2 + $0x70] sm:$0xff] %vm2319, %v4769
      %4851 = vst.msk [vmem:[#allocation2 + $0x78] sm:$0xff] %vm2319, %v4771
      %4852 = vst.msk [vmem:[#allocation2 + $0x80] sm:$0xff] %vm2319, %v4773
      %4853 = vst.msk [vmem:[#allocation2 + $0x88] sm:$0xff] %vm2319, %v4775
      %4854 = vst.msk [vmem:[#allocation2 + $0x90] sm:$0xff] %vm2319, %v4777
      %4855 = vst.msk [vmem:[#allocation2 + $0x98] sm:$0xff] %vm2319, %v4779
      %4856 = vst.msk [vmem:[#allocation2 + $0xa0] sm:$0xff] %vm2319, %v4781
      %4857 = vst.msk [vmem:[#allocation2 + $0xa8] sm:$0xff] %vm2319, %v4783
      %4858 = vst.msk [vmem:[#allocation2 + $0xb0] sm:$0xff] %vm2319, %v4785
      %4859 = vst.msk [vmem:[#allocation2 + $0xb8] sm:$0xff] %vm2319, %v4787
      %4860 = vst.msk [vmem:[#allocation2 + $0xc0] sm:$0xff] %vm2319, %v4789
      %4861 = vst.msk [vmem:[#allocation2 + $0xc8] sm:$0xff] %vm2319, %v4791
      %4862 = vst.msk [vmem:[#allocation2 + $0xd0] sm:$0xff] %vm2319, %v4793
      %4863 = vst.msk [vmem:[#allocation2 + $0xd8] sm:$0xff] %vm2319, %v4795
      %4864 = vst.msk [vmem:[#allocation2 + $0xe0] sm:$0xff] %vm2319, %v4797
      %4865 = vst.msk [vmem:[#allocation2 + $0xe8] sm:$0xff] %vm2319, %v4799
      %4866 = vst.msk [vmem:[#allocation2 + $0xf0] sm:$0xff] %vm2319, %v4801
      %vm4867 = vcmask 390464
      %4868 = vst.msk [vmem:[#allocation2 + $0xf8] sm:$0x3f] %vm4867, %v4803
      %4869 = vst.msk [vmem:[#allocation2 + $0xe2] sm:$0xff] %vm2353, 0.0
      %4870 = vst.msk [vmem:[#allocation2 + $0xea] sm:$0xff] %vm2353, 0.0
      %4871 = vst.msk [vmem:[#allocation2 + $0xf2] sm:$0xff] %vm2353, 0.0
      %vm4872 = vcmask 456064
      %4873 = vst.msk [vmem:[#allocation2 + $0xfa] sm:$0x3f] %vm4872, 0.0
      %v4875 = vsel %vm4297, %v3486, 0.0
      %v4876 = vsel %vm4298, %v3488, 0.0
      %v4877 = vsel %vm4299, %v3490, 0.0
      %v4878 = vsel %vm4300, %v3492, 0.0
      %v4879 = vsel %vm3421, %v3494, 0.0
      %v4880 = vsel %vm3422, %v3496, 0.0
      %v4881 = vsel %vm3423, %v3498, 0.0
      %v4882 = vsel %vm3424, %v3500, 0.0
      %v4883 = vsel %vm3425, %v3502, 0.0
      %v4884 = vsel %vm3426, %v3504, 0.0
      %v4885 = vsel %vm3427, %v3506, 0.0
      %v4886 = vsel %vm3428, %v3508, 0.0
      %v4887 = vsel %vm3429, %v3510, 0.0
      %v4888 = vsel %vm3430, %v3512, 0.0
      %v4889 = vsel %vm3431, %v3514, 0.0
      %v4890 = vsel %vm3432, %v3516, 0.0
      %v4891 = vsel %vm3433, %v3518, 0.0
      %v4892 = vsel %vm3434, %v3520, 0.0
      %v4893 = vsel %vm3435, %v3522, 0.0
      %v4894 = vsel %vm3436, %v3524, 0.0
      %v4895 = vsel %vm3437, %v3526, 0.0
      %v4896 = vsel %vm3438, %v3528, 0.0
      %v4897 = vsel %vm3439, %v3530, 0.0
      %v4898 = vsel %vm3440, %v3532, 0.0
      %v4899 = vsel %vm3441, %v4305, 0.0
      %v4900 = vsel %vm3442, %v4307, 0.0
      %v4901 = vsel %vm3443, %v4309, 0.0
      %v4902 = vsel %vm3444, %v4311, 0.0
      %v4903 = vsel %vm3445, %v4310, 0.0
      %4933 = vrot.lane.b32.xlu0 %v4875, 48
      %v4934 = vpop.permute.xlu0 %4933
      %4935 = vrot.lane.b32.xlu0 %v4876, 48
      %v4936 = vpop.permute.xlu0 %4935
      %4937 = vrot.lane.b32.xlu0 %v4877, 48
      %v4938 = vpop.permute.xlu0 %4937
      %4939 = vrot.lane.b32.xlu0 %v4878, 48
      %v4940 = vpop.permute.xlu0 %4939
      %4941 = vrot.lane.b32.xlu0 %v4879, 48
      %v4942 = vpop.permute.xlu0 %4941
      %4943 = vrot.lane.b32.xlu0 %v4880, 48
      %v4944 = vpop.permute.xlu0 %4943
      %4945 = vrot.lane.b32.xlu0 %v4881, 48
      %v4946 = vpop.permute.xlu0 %4945
      %4947 = vrot.lane.b32.xlu0 %v4882, 48
      %v4948 = vpop.permute.xlu0 %4947
      %4949 = vrot.lane.b32.xlu0 %v4883, 48
      %v4950 = vpop.permute.xlu0 %4949
      %4951 = vrot.lane.b32.xlu0 %v4884, 48
      %v4952 = vpop.permute.xlu0 %4951
      %4953 = vrot.lane.b32.xlu0 %v4885, 48
      %v4954 = vpop.permute.xlu0 %4953
      %4955 = vrot.lane.b32.xlu0 %v4886, 48
      %v4956 = vpop.permute.xlu0 %4955
      %4957 = vrot.lane.b32.xlu0 %v4887, 48
      %v4958 = vpop.permute.xlu0 %4957
      %4959 = vrot.lane.b32.xlu0 %v4888, 48
      %v4960 = vpop.permute.xlu0 %4959
      %4961 = vrot.lane.b32.xlu0 %v4889, 48
      %v4962 = vpop.permute.xlu0 %4961
      %4963 = vrot.lane.b32.xlu0 %v4890, 48
      %v4964 = vpop.permute.xlu0 %4963
      %4965 = vrot.lane.b32.xlu0 %v4891, 48
      %v4966 = vpop.permute.xlu0 %4965
      %4967 = vrot.lane.b32.xlu0 %v4892, 48
      %v4968 = vpop.permute.xlu0 %4967
      %4969 = vrot.lane.b32.xlu0 %v4893, 48
      %v4970 = vpop.permute.xlu0 %4969
      %4971 = vrot.lane.b32.xlu0 %v4894, 48
      %v4972 = vpop.permute.xlu0 %4971
      %4973 = vrot.lane.b32.xlu0 %v4895, 48
      %v4974 = vpop.permute.xlu0 %4973
      %4975 = vrot.lane.b32.xlu0 %v4896, 48
      %v4976 = vpop.permute.xlu0 %4975
      %4977 = vrot.lane.b32.xlu0 %v4897, 48
      %v4978 = vpop.permute.xlu0 %4977
      %4979 = vrot.lane.b32.xlu0 %v4898, 48
      %v4980 = vpop.permute.xlu0 %4979
      %4981 = vrot.lane.b32.xlu0 %v4899, 48
      %v4982 = vpop.permute.xlu0 %4981
      %4983 = vrot.lane.b32.xlu0 %v4900, 48
      %v4984 = vpop.permute.xlu0 %4983
      %4985 = vrot.lane.b32.xlu0 %v4901, 48
      %v4986 = vpop.permute.xlu0 %4985
      %4987 = vrot.lane.b32.xlu0 %v4902, 48
      %v4988 = vpop.permute.xlu0 %4987
      %4989 = vrot.lane.b32.xlu0 %v4903, 48
      %v4990 = vpop.permute.xlu0 %4989
      %5020 = vst.msk [vmem:[#allocation2] sm:$0xff] %vm2353, %v4934
      %5021 = vst.msk [vmem:[#allocation2 + $0x8] sm:$0xff] %vm2353, %v4936
      %5022 = vst.msk [vmem:[#allocation2 + $0x10] sm:$0xff] %vm2353, %v4938
      %5023 = vst.msk [vmem:[#allocation2 + $0x18] sm:$0xff] %vm2353, %v4940
      %5024 = vst.msk [vmem:[#allocation2 + $0x20] sm:$0xff] %vm2353, %v4942
      %5025 = vst.msk [vmem:[#allocation2 + $0x28] sm:$0xff] %vm2353, %v4944
      %5026 = vst.msk [vmem:[#allocation2 + $0x30] sm:$0xff] %vm2353, %v4946
      %5027 = vst.msk [vmem:[#allocation2 + $0x38] sm:$0xff] %vm2353, %v4948
      %5028 = vst.msk [vmem:[#allocation2 + $0x40] sm:$0xff] %vm2353, %v4950
      %5029 = vst.msk [vmem:[#allocation2 + $0x48] sm:$0xff] %vm2353, %v4952
      %5030 = vst.msk [vmem:[#allocation2 + $0x50] sm:$0xff] %vm2353, %v4954
      %5031 = vst.msk [vmem:[#allocation2 + $0x58] sm:$0xff] %vm2353, %v4956
      %5032 = vst.msk [vmem:[#allocation2 + $0x60] sm:$0xff] %vm2353, %v4958
      %5033 = vst.msk [vmem:[#allocation2 + $0x68] sm:$0xff] %vm2353, %v4960
      %5034 = vst.msk [vmem:[#allocation2 + $0x70] sm:$0xff] %vm2353, %v4962
      %5035 = vst.msk [vmem:[#allocation2 + $0x78] sm:$0xff] %vm2353, %v4964
      %5036 = vst.msk [vmem:[#allocation2 + $0x80] sm:$0xff] %vm2353, %v4966
      %5037 = vst.msk [vmem:[#allocation2 + $0x88] sm:$0xff] %vm2353, %v4968
      %5038 = vst.msk [vmem:[#allocation2 + $0x90] sm:$0xff] %vm2353, %v4970
      %5039 = vst.msk [vmem:[#allocation2 + $0x98] sm:$0xff] %vm2353, %v4972
      %5040 = vst.msk [vmem:[#allocation2 + $0xa0] sm:$0xff] %vm2353, %v4974
      %5041 = vst.msk [vmem:[#allocation2 + $0xa8] sm:$0xff] %vm2353, %v4976
      %5042 = vst.msk [vmem:[#allocation2 + $0xb0] sm:$0xff] %vm2353, %v4978
      %5043 = vst.msk [vmem:[#allocation2 + $0xb8] sm:$0xff] %vm2353, %v4980
      %5044 = vst.msk [vmem:[#allocation2 + $0xc0] sm:$0xff] %vm2353, %v4982
      %5045 = vst.msk [vmem:[#allocation2 + $0xc8] sm:$0xff] %vm2353, %v4984
      %5046 = vst.msk [vmem:[#allocation2 + $0xd0] sm:$0xff] %vm2353, %v4986
      %5047 = vst.msk [vmem:[#allocation2 + $0xd8] sm:$0xff] %vm2353, %v4988
      %vm5048 = vcmask 451968
      %5049 = vst.msk [vmem:[#allocation2 + $0xe0] sm:$0x3] %vm5048, %v4990
      %5050 = vst.msk [vmem:[#allocation2 + $0xe0] sm:$0xff] %vm2545, 0.0
      %5051 = vst.msk [vmem:[#allocation2 + $0xe8] sm:$0xff] %vm2545, 0.0
      %5052 = vst.msk [vmem:[#allocation2 + $0xf0] sm:$0xff] %vm2545, 0.0
      %5053 = vst.msk [vmem:[#allocation2 + $0xf8] sm:$0xff] %vm2545, 0.0
      %5054 = vrot.lane.b32.xlu0 %v3153, 56
      %v5055 = vpop.permute.xlu0 %5054
      %5056 = vrot.lane.b32.xlu0 %v3154, 56
      %v5057 = vpop.permute.xlu0 %5056
      %5058 = vrot.lane.b32.xlu0 %v3155, 56
      %v5059 = vpop.permute.xlu0 %5058
      %5060 = vrot.lane.b32.xlu0 %v3156, 56
      %v5061 = vpop.permute.xlu0 %5060
      %5062 = vrot.lane.b32.xlu0 %v3157, 56
      %v5063 = vpop.permute.xlu0 %5062
      %5064 = vrot.lane.b32.xlu0 %v3158, 56
      %v5065 = vpop.permute.xlu0 %5064
      %5066 = vrot.lane.b32.xlu0 %v3159, 56
      %v5067 = vpop.permute.xlu0 %5066
      %5068 = vrot.lane.b32.xlu0 %v3160, 56
      %v5069 = vpop.permute.xlu0 %5068
      %5070 = vrot.lane.b32.xlu0 %v3161, 56
      %v5071 = vpop.permute.xlu0 %5070
      %5072 = vrot.lane.b32.xlu0 %v3162, 56
      %v5073 = vpop.permute.xlu0 %5072
      %5074 = vrot.lane.b32.xlu0 %v3163, 56
      %v5075 = vpop.permute.xlu0 %5074
      %5076 = vrot.lane.b32.xlu0 %v3164, 56
      %v5077 = vpop.permute.xlu0 %5076
      %5078 = vrot.lane.b32.xlu0 %v3165, 56
      %v5079 = vpop.permute.xlu0 %5078
      %5080 = vrot.lane.b32.xlu0 %v3166, 56
      %v5081 = vpop.permute.xlu0 %5080
      %5082 = vrot.lane.b32.xlu0 %v3167, 56
      %v5083 = vpop.permute.xlu0 %5082
      %5084 = vrot.lane.b32.xlu0 %v3168, 56
      %v5085 = vpop.permute.xlu0 %5084
      %5086 = vrot.lane.b32.xlu0 %v3169, 56
      %v5087 = vpop.permute.xlu0 %5086
      %5088 = vrot.lane.b32.xlu0 %v3170, 56
      %v5089 = vpop.permute.xlu0 %5088
      %5090 = vrot.lane.b32.xlu0 %v3171, 56
      %v5091 = vpop.permute.xlu0 %5090
      %5092 = vrot.lane.b32.xlu0 %v3172, 56
      %v5093 = vpop.permute.xlu0 %5092
      %5094 = vrot.lane.b32.xlu0 %v3173, 56
      %v5095 = vpop.permute.xlu0 %5094
      %5096 = vrot.lane.b32.xlu0 %v3174, 56
      %v5097 = vpop.permute.xlu0 %5096
      %5098 = vrot.lane.b32.xlu0 %v3175, 56
      %v5099 = vpop.permute.xlu0 %5098
      %5100 = vrot.lane.b32.xlu0 %v3176, 56
      %v5101 = vpop.permute.xlu0 %5100
      %5102 = vrot.lane.b32.xlu0 %v3177, 56
      %v5103 = vpop.permute.xlu0 %5102
      %5104 = vrot.lane.b32.xlu0 %v3178, 56
      %v5105 = vpop.permute.xlu0 %5104
      %5106 = vrot.lane.b32.xlu0 %v3179, 56
      %v5107 = vpop.permute.xlu0 %5106
      %5108 = vrot.lane.b32.xlu0 %v3180, 56
      %v5109 = vpop.permute.xlu0 %5108
      %5138 = vst.msk [vmem:[#allocation2] sm:$0xff] %vm2545, %v5055
      %5139 = vst.msk [vmem:[#allocation2 + $0x8] sm:$0xff] %vm2545, %v5057
      %5140 = vst.msk [vmem:[#allocation2 + $0x10] sm:$0xff] %vm2545, %v5059
      %5141 = vst.msk [vmem:[#allocation2 + $0x18] sm:$0xff] %vm2545, %v5061
      %5142 = vst.msk [vmem:[#allocation2 + $0x20] sm:$0xff] %vm2545, %v5063
      %5143 = vst.msk [vmem:[#allocation2 + $0x28] sm:$0xff] %vm2545, %v5065
      %5144 = vst.msk [vmem:[#allocation2 + $0x30] sm:$0xff] %vm2545, %v5067
      %5145 = vst.msk [vmem:[#allocation2 + $0x38] sm:$0xff] %vm2545, %v5069
      %5146 = vst.msk [vmem:[#allocation2 + $0x40] sm:$0xff] %vm2545, %v5071
      %5147 = vst.msk [vmem:[#allocation2 + $0x48] sm:$0xff] %vm2545, %v5073
      %5148 = vst.msk [vmem:[#allocation2 + $0x50] sm:$0xff] %vm2545, %v5075
      %5149 = vst.msk [vmem:[#allocation2 + $0x58] sm:$0xff] %vm2545, %v5077
      %5150 = vst.msk [vmem:[#allocation2 + $0x60] sm:$0xff] %vm2545, %v5079
      %5151 = vst.msk [vmem:[#allocation2 + $0x68] sm:$0xff] %vm2545, %v5081
      %5152 = vst.msk [vmem:[#allocation2 + $0x70] sm:$0xff] %vm2545, %v5083
      %5153 = vst.msk [vmem:[#allocation2 + $0x78] sm:$0xff] %vm2545, %v5085
      %5154 = vst.msk [vmem:[#allocation2 + $0x80] sm:$0xff] %vm2545, %v5087
      %5155 = vst.msk [vmem:[#allocation2 + $0x88] sm:$0xff] %vm2545, %v5089
      %5156 = vst.msk [vmem:[#allocation2 + $0x90] sm:$0xff] %vm2545, %v5091
      %5157 = vst.msk [vmem:[#allocation2 + $0x98] sm:$0xff] %vm2545, %v5093
      %5158 = vst.msk [vmem:[#allocation2 + $0xa0] sm:$0xff] %vm2545, %v5095
      %5159 = vst.msk [vmem:[#allocation2 + $0xa8] sm:$0xff] %vm2545, %v5097
      %5160 = vst.msk [vmem:[#allocation2 + $0xb0] sm:$0xff] %vm2545, %v5099
      %5161 = vst.msk [vmem:[#allocation2 + $0xb8] sm:$0xff] %vm2545, %v5101
      %5162 = vst.msk [vmem:[#allocation2 + $0xc0] sm:$0xff] %vm2545, %v5103
      %5163 = vst.msk [vmem:[#allocation2 + $0xc8] sm:$0xff] %vm2545, %v5105
      %5164 = vst.msk [vmem:[#allocation2 + $0xd0] sm:$0xff] %vm2545, %v5107
      %5165 = vst.msk [vmem:[#allocation2 + $0xd8] sm:$0xff] %vm2545, %v5109
      %5166 = vst.msk [vmem:[#allocation2 + $0xde] sm:$0xff] %vm2668, 0.0
      %5167 = vst.msk [vmem:[#allocation2 + $0xe6] sm:$0xff] %vm2668, 0.0
      %5168 = vst.msk [vmem:[#allocation2 + $0xee] sm:$0xff] %vm2668, 0.0
      %5169 = vst.msk [vmem:[#allocation2 + $0xf6] sm:$0xff] %vm2668, 0.0
      %vm5170 = vcmask 583168
      %5171 = vst.msk [vmem:[#allocation2 + $0xfe] sm:$0x3] %vm5170, 0.0
      %v5172 = vsel %vm4663, %v4012, 0.0
      %v5173 = vsel %vm4664, %v4014, 0.0
      %v5174 = vsel %vm4665, %v4016, 0.0
      %v5175 = vsel %vm3971, %v4018, 0.0
      %v5176 = vsel %vm3972, %v4020, 0.0
      %v5177 = vsel %vm3973, %v4022, 0.0
      %v5178 = vsel %vm3974, %v4024, 0.0
      %v5179 = vsel %vm3975, %v4026, 0.0
      %v5180 = vsel %vm3976, %v4028, 0.0
      %v5181 = vsel %vm3977, %v4030, 0.0
      %v5182 = vsel %vm3978, %v4032, 0.0
      %v5183 = vsel %vm3979, %v4034, 0.0
      %v5184 = vsel %vm3980, %v4036, 0.0
      %v5185 = vsel %vm3981, %v4038, 0.0
      %v5186 = vsel %vm3982, %v4040, 0.0
      %v5187 = vsel %vm3983, %v4042, 0.0
      %v5188 = vsel %vm3984, %v4044, 0.0
      %v5189 = vsel %vm3985, %v4046, 0.0
      %v5190 = vsel %vm3986, %v4048, 0.0
      %v5191 = vsel %vm3987, %v4050, 0.0
      %v5192 = vsel %vm3988, %v4052, 0.0
      %v5193 = vsel %vm3989, %v4054, 0.0
      %v5194 = vsel %vm3990, %v4056, 0.0
      %v5195 = vsel %vm3991, %v4058, 0.0
      %v5196 = vsel %vm3992, %v4667, 0.0
      %v5197 = vsel %vm3993, %v4669, 0.0
      %v5198 = vsel %vm3994, %v4671, 0.0
      %v5199 = vsel %vm3995, %v4670, 0.0
      %5228 = vrot.lane.b32.xlu0 %v5172, 64
      %v5229 = vpop.permute.xlu0 %5228
      %5230 = vrot.lane.b32.xlu0 %v5173, 64
      %v5231 = vpop.permute.xlu0 %5230
      %5232 = vrot.lane.b32.xlu0 %v5174, 64
      %v5233 = vpop.permute.xlu0 %5232
      %5234 = vrot.lane.b32.xlu0 %v5175, 64
      %v5235 = vpop.permute.xlu0 %5234
      %5236 = vrot.lane.b32.xlu0 %v5176, 64
      %v5237 = vpop.permute.xlu0 %5236
      %5238 = vrot.lane.b32.xlu0 %v5177, 64
      %v5239 = vpop.permute.xlu0 %5238
      %5240 = vrot.lane.b32.xlu0 %v5178, 64
      %v5241 = vpop.permute.xlu0 %5240
      %5242 = vrot.lane.b32.xlu0 %v5179, 64
      %v5243 = vpop.permute.xlu0 %5242
      %5244 = vrot.lane.b32.xlu0 %v5180, 64
      %v5245 = vpop.permute.xlu0 %5244
      %5246 = vrot.lane.b32.xlu0 %v5181, 64
      %v5247 = vpop.permute.xlu0 %5246
      %5248 = vrot.lane.b32.xlu0 %v5182, 64
      %v5249 = vpop.permute.xlu0 %5248
      %5250 = vrot.lane.b32.xlu0 %v5183, 64
      %v5251 = vpop.permute.xlu0 %5250
      %5252 = vrot.lane.b32.xlu0 %v5184, 64
      %v5253 = vpop.permute.xlu0 %5252
      %5254 = vrot.lane.b32.xlu0 %v5185, 64
      %v5255 = vpop.permute.xlu0 %5254
      %5256 = vrot.lane.b32.xlu0 %v5186, 64
      %v5257 = vpop.permute.xlu0 %5256
      %5258 = vrot.lane.b32.xlu0 %v5187, 64
      %v5259 = vpop.permute.xlu0 %5258
      %5260 = vrot.lane.b32.xlu0 %v5188, 64
      %v5261 = vpop.permute.xlu0 %5260
      %5262 = vrot.lane.b32.xlu0 %v5189, 64
      %v5263 = vpop.permute.xlu0 %5262
      %5264 = vrot.lane.b32.xlu0 %v5190, 64
      %v5265 = vpop.permute.xlu0 %5264
      %5266 = vrot.lane.b32.xlu0 %v5191, 64
      %v5267 = vpop.permute.xlu0 %5266
      %5268 = vrot.lane.b32.xlu0 %v5192, 64
      %v5269 = vpop.permute.xlu0 %5268
      %5270 = vrot.lane.b32.xlu0 %v5193, 64
      %v5271 = vpop.permute.xlu0 %5270
      %5272 = vrot.lane.b32.xlu0 %v5194, 64
      %v5273 = vpop.permute.xlu0 %5272
      %5274 = vrot.lane.b32.xlu0 %v5195, 64
      %v5275 = vpop.permute.xlu0 %5274
      %5276 = vrot.lane.b32.xlu0 %v5196, 64
      %v5277 = vpop.permute.xlu0 %5276
      %5278 = vrot.lane.b32.xlu0 %v5197, 64
      %v5279 = vpop.permute.xlu0 %5278
      %5280 = vrot.lane.b32.xlu0 %v5198, 64
      %v5281 = vpop.permute.xlu0 %5280
      %5282 = vrot.lane.b32.xlu0 %v5199, 64
      %v5283 = vpop.permute.xlu0 %5282
      %5312 = vst.msk [vmem:[#allocation2] sm:$0xff] %vm2668, %v5229
      %5313 = vst.msk [vmem:[#allocation2 + $0x8] sm:$0xff] %vm2668, %v5231
      %5314 = vst.msk [vmem:[#allocation2 + $0x10] sm:$0xff] %vm2668, %v5233
      %5315 = vst.msk [vmem:[#allocation2 + $0x18] sm:$0xff] %vm2668, %v5235
      %5316 = vst.msk [vmem:[#allocation2 + $0x20] sm:$0xff] %vm2668, %v5237
      %5317 = vst.msk [vmem:[#allocation2 + $0x28] sm:$0xff] %vm2668, %v5239
      %5318 = vst.msk [vmem:[#allocation2 + $0x30] sm:$0xff] %vm2668, %v5241
      %5319 = vst.msk [vmem:[#allocation2 + $0x38] sm:$0xff] %vm2668, %v5243
      %5320 = vst.msk [vmem:[#allocation2 + $0x40] sm:$0xff] %vm2668, %v5245
      %5321 = vst.msk [vmem:[#allocation2 + $0x48] sm:$0xff] %vm2668, %v5247
      %5322 = vst.msk [vmem:[#allocation2 + $0x50] sm:$0xff] %vm2668, %v5249
      %5323 = vst.msk [vmem:[#allocation2 + $0x58] sm:$0xff] %vm2668, %v5251
      %5324 = vst.msk [vmem:[#allocation2 + $0x60] sm:$0xff] %vm2668, %v5253
      %5325 = vst.msk [vmem:[#allocation2 + $0x68] sm:$0xff] %vm2668, %v5255
      %5326 = vst.msk [vmem:[#allocation2 + $0x70] sm:$0xff] %vm2668, %v5257
      %5327 = vst.msk [vmem:[#allocation2 + $0x78] sm:$0xff] %vm2668, %v5259
      %5328 = vst.msk [vmem:[#allocation2 + $0x80] sm:$0xff] %vm2668, %v5261
      %5329 = vst.msk [vmem:[#allocation2 + $0x88] sm:$0xff] %vm2668, %v5263
      %5330 = vst.msk [vmem:[#allocation2 + $0x90] sm:$0xff] %vm2668, %v5265
      %5331 = vst.msk [vmem:[#allocation2 + $0x98] sm:$0xff] %vm2668, %v5267
      %5332 = vst.msk [vmem:[#allocation2 + $0xa0] sm:$0xff] %vm2668, %v5269
      %5333 = vst.msk [vmem:[#allocation2 + $0xa8] sm:$0xff] %vm2668, %v5271
      %5334 = vst.msk [vmem:[#allocation2 + $0xb0] sm:$0xff] %vm2668, %v5273
      %5335 = vst.msk [vmem:[#allocation2 + $0xb8] sm:$0xff] %vm2668, %v5275
      %5336 = vst.msk [vmem:[#allocation2 + $0xc0] sm:$0xff] %vm2668, %v5277
      %5337 = vst.msk [vmem:[#allocation2 + $0xc8] sm:$0xff] %vm2668, %v5279
      %5338 = vst.msk [vmem:[#allocation2 + $0xd0] sm:$0xff] %vm2668, %v5281
      %vm5339 = vcmask 587264
      %5340 = vst.msk [vmem:[#allocation2 + $0xd8] sm:$0x3f] %vm5339, %v5283
      %v5341 = vld [vmem:[#allocation2] sm:$0xff]
      %v5342 = vld [vmem:[#allocation2 + $0x8] sm:$0xff]
      %v5343 = vld [vmem:[#allocation2 + $0x10] sm:$0xff]
      %v5344 = vld [vmem:[#allocation2 + $0x18] sm:$0xff]
      %v5345 = vld [vmem:[#allocation2 + $0x20] sm:$0xff]
      %v5346 = vld [vmem:[#allocation2 + $0x28] sm:$0xff]
      %v5347 = vld [vmem:[#allocation2 + $0x30] sm:$0xff]
      %v5348 = vld [vmem:[#allocation2 + $0x38] sm:$0xff]
      %v5349 = vld [vmem:[#allocation2 + $0x40] sm:$0xff]
      %v5350 = vld [vmem:[#allocation2 + $0x48] sm:$0xff]
      %v5351 = vld [vmem:[#allocation2 + $0x50] sm:$0xff]
      %v5352 = vld [vmem:[#allocation2 + $0x58] sm:$0xff]
      %v5353 = vld [vmem:[#allocation2 + $0x60] sm:$0xff]
      %v5354 = vld [vmem:[#allocation2 + $0x68] sm:$0xff]
      %v5355 = vld [vmem:[#allocation2 + $0x70] sm:$0xff]
      %v5356 = vld [vmem:[#allocation2 + $0x78] sm:$0xff]
      %v5357 = vld [vmem:[#allocation2 + $0x80] sm:$0xff]
      %v5358 = vld [vmem:[#allocation2 + $0x88] sm:$0xff]
      %v5359 = vld [vmem:[#allocation2 + $0x90] sm:$0xff]
      %v5360 = vld [vmem:[#allocation2 + $0x98] sm:$0xff]
      %v5361 = vld [vmem:[#allocation2 + $0xa0] sm:$0xff]
      %v5362 = vld [vmem:[#allocation2 + $0xa8] sm:$0xff]
      %v5363 = vld [vmem:[#allocation2 + $0xb0] sm:$0xff]
      %v5364 = vld [vmem:[#allocation2 + $0xb8] sm:$0xff]
      %v5365 = vld [vmem:[#allocation2 + $0xc0] sm:$0xff]
      %v5366 = vld [vmem:[#allocation2 + $0xc8] sm:$0xff]
      %v5367 = vld [vmem:[#allocation2 + $0xd0] sm:$0xff]
      %v5368 = vld [vmem:[#allocation2 + $0xd8] sm:$0xff]
      %v5369 = vld [vmem:[#allocation2 + $0xe0] sm:$0xff]
      %v5370 = vld [vmem:[#allocation2 + $0xe8] sm:$0xff]
      %v5371 = vld [vmem:[#allocation2 + $0xf0] sm:$0xff]
      %v5372 = vld [vmem:[#allocation2 + $0xf8] sm:$0xff]
      %v5373 = vpack.c.bf16 %v5342, %v5341
      %v5374 = vpack.c.bf16 %v5344, %v5343
      %v5375 = vpack.c.bf16 %v5346, %v5345
      %v5376 = vpack.c.bf16 %v5348, %v5347
      %v5377 = vpack.c.bf16 %v5350, %v5349
      %v5378 = vpack.c.bf16 %v5352, %v5351
      %v5379 = vpack.c.bf16 %v5354, %v5353
      %v5380 = vpack.c.bf16 %v5356, %v5355
      %v5381 = vpack.c.bf16 %v5358, %v5357
      %v5382 = vpack.c.bf16 %v5360, %v5359
      %v5383 = vpack.c.bf16 %v5362, %v5361
      %v5384 = vpack.c.bf16 %v5364, %v5363
      %v5385 = vpack.c.bf16 %v5366, %v5365
      %v5386 = vpack.c.bf16 %v5368, %v5367
      %v5387 = vpack.c.bf16 %v5370, %v5369
      %v5388 = vpack.c.bf16 %v5372, %v5371
      %v5390 = vlaneseq
      %v5391 = vshrl.u32 %v5390, 7
      %v5392 = vsub.s32 0, %v5391
      %v5393 = vrot.slane %v3190, %v5392
      %v5404 = vunpack.c.l.b16 %v3181
      %v5405 = vunpack.c.l.b16 %v3182
      %v5406 = vunpack.c.l.b16 %v3183
      %v5407 = vunpack.c.l.b16 %v3184
      %v5408 = vunpack.c.l.b16 %v3185
      %v5409 = vunpack.c.l.b16 %v3186
      %v5410 = vunpack.c.l.b16 %v3187
      %v5411 = vunpack.c.l.b16 %v3188
      %v5412 = vunpack.c.l.b16 %v3189
      %v5413 = vpack.c.b16 %v5405, %v5404
      %v5414 = vpack.c.b16 %v5407, %v5406
      %v5415 = vpack.c.b16 %v5409, %v5408
      %v5416 = vpack.c.b16 %v5411, %v5410
      %v5417 = vpack.c.b16 %v5412, %v5412
      %v5423 = vsel %vm2935, %v5373, 0
      %v5426 = vsel %vm2935, %v5374, 0
      %v5429 = vsel %vm2935, %v5375, 0
      %v5432 = vsel %vm2935, %v5376, 0
      %v5435 = vsel %vm2935, %v5377, 0
      %v5438 = vsel %vm2935, %v5378, 0
      %v5441 = vsel %vm2935, %v5379, 0
      %v5444 = vsel %vm2935, %v5380, 0
      %v5447 = vsel %vm2935, %v5381, 0
      %v5450 = vsel %vm2935, %v5382, 0
      %v5453 = vsel %vm2935, %v5383, 0
      %v5456 = vsel %vm2935, %v5384, 0
      %v5459 = vsel %vm2935, %v5385, 0
      %v5462 = vsel %vm2935, %v5386, 0
      %v5465 = vsel %vm2935, %v5387, 0
      %v5468 = vsel %vm2935, %v5388, 0
      %v5471 = vsel %vm2984, %v5417, 0
      %5473 = vmatprep.subr.bf16.mxu0 0
      %5474 = vmatpush1.bf16.msra.mxu0 0
      %5475 = vmatprep.subr.bf16.mxu0 0
      %5476 = vmatpush1.bf16.msra.mxu0 0
      %5477 = vmatprep.subr.bf16.mxu0 0
      %5478 = vmatpush1.bf16.msra.mxu0 0
      %5479 = vmatprep.subr.bf16.mxu0 0
      %5480 = vmatpush1.bf16.msra.mxu0 %v5471
      %5481 = vmatprep.subr.bf16.mxu0 0
      %5482 = vmatpush1.bf16.msra.mxu0 %v5416
      %5483 = vmatprep.subr.bf16.mxu0 0
      %5484 = vmatpush1.bf16.msra.mxu0 %v5415
      %5485 = vmatprep.subr.bf16.mxu0 0
      %5486 = vmatpush1.bf16.msra.mxu0 %v5414
      %5487 = vmatprep.subr.bf16.mxu0 0
      %5488 = vmatpush1.bf16.msra.mxu0 %v5413
      %5489 = vmatprep.subr.bf16.mxu0 0
      %5490 = vmatpush2.bf16.msra.mxu0 0
      %5491 = vmatprep.subr.bf16.mxu0 0
      %5492 = vmatpush2.bf16.msra.mxu0 0
      %5493 = vmatprep.subr.bf16.mxu0 0
      %5494 = vmatpush2.bf16.msra.mxu0 0
      %5495 = vmatprep.subr.bf16.mxu0 0
      %5496 = vmatpush2.bf16.msra.mxu0 0
      %5497 = vmatprep.subr.bf16.mxu0 0
      %5498 = vmatpush2.bf16.msra.mxu0 0
      %5499 = vmatprep.subr.bf16.mxu0 0
      %5500 = vmatpush2.bf16.msra.mxu0 0
      %5501 = vmatprep.subr.bf16.mxu0 0
      %5502 = vmatpush2.bf16.msra.mxu0 0
      %5503 = vmatprep.subr.bf16.mxu0 0
      %5504 = vmatpush2.bf16.msra.mxu0 0
      %5505 = vmatprep.mubr.bf16.mxu0 0
      %5506 = vmatmul.mubr.bf16.gmra.mxu0 %v5423
      %v5507 = vpop.f32.mrf.mxu0
      %v5508 = vadd.f32 %v5393, %v5507
      %v5509 = vpop.f32.mrf.mxu0
      %v5510 = vpop.f32.mrf.mxu0
      %v5511 = vadd.f32 %v5393, %v5510
      %v5512 = vpop.f32.mrf.mxu0
      %5513 = vmatprep.mubr.bf16.mxu0 0
      %5514 = vmatmul.mubr.bf16.gmra.mxu0 %v5426
      %v5515 = vpop.f32.mrf.mxu0
      %v5516 = vadd.f32 %v5393, %v5515
      %v5517 = vpop.f32.mrf.mxu0
      %v5518 = vpop.f32.mrf.mxu0
      %v5519 = vadd.f32 %v5393, %v5518
      %v5520 = vpop.f32.mrf.mxu0
      %5521 = vmatprep.mubr.bf16.mxu0 0
      %5522 = vmatmul.mubr.bf16.gmra.mxu0 %v5429
      %v5523 = vpop.f32.mrf.mxu0
      %v5524 = vadd.f32 %v5393, %v5523
      %v5525 = vpop.f32.mrf.mxu0
      %v5526 = vpop.f32.mrf.mxu0
      %v5527 = vadd.f32 %v5393, %v5526
      %v5528 = vpop.f32.mrf.mxu0
      %5529 = vmatprep.mubr.bf16.mxu0 0
      %5530 = vmatmul.mubr.bf16.gmra.mxu0 %v5432
      %v5531 = vpop.f32.mrf.mxu0
      %v5532 = vadd.f32 %v5393, %v5531
      %v5533 = vpop.f32.mrf.mxu0
      %v5534 = vpop.f32.mrf.mxu0
      %v5535 = vadd.f32 %v5393, %v5534
      %v5536 = vpop.f32.mrf.mxu0
      %5537 = vmatprep.mubr.bf16.mxu0 0
      %5538 = vmatmul.mubr.bf16.gmra.mxu0 %v5435
      %v5539 = vpop.f32.mrf.mxu0
      %v5540 = vadd.f32 %v5393, %v5539
      %v5541 = vpop.f32.mrf.mxu0
      %v5542 = vpop.f32.mrf.mxu0
      %v5543 = vadd.f32 %v5393, %v5542
      %v5544 = vpop.f32.mrf.mxu0
      %5545 = vmatprep.mubr.bf16.mxu0 0
      %5546 = vmatmul.mubr.bf16.gmra.mxu0 %v5438
      %v5547 = vpop.f32.mrf.mxu0
      %v5548 = vadd.f32 %v5393, %v5547
      %v5549 = vpop.f32.mrf.mxu0
      %v5550 = vpop.f32.mrf.mxu0
      %v5551 = vadd.f32 %v5393, %v5550
      %v5552 = vpop.f32.mrf.mxu0
      %5553 = vmatprep.mubr.bf16.mxu0 0
      %5554 = vmatmul.mubr.bf16.gmra.mxu0 %v5441
      %v5555 = vpop.f32.mrf.mxu0
      %v5556 = vadd.f32 %v5393, %v5555
      %v5557 = vpop.f32.mrf.mxu0
      %v5558 = vpop.f32.mrf.mxu0
      %v5559 = vadd.f32 %v5393, %v5558
      %v5560 = vpop.f32.mrf.mxu0
      %5561 = vmatprep.mubr.bf16.mxu0 0
      %5562 = vmatmul.mubr.bf16.gmra.mxu0 %v5444
      %v5563 = vpop.f32.mrf.mxu0
      %v5564 = vadd.f32 %v5393, %v5563
      %v5565 = vpop.f32.mrf.mxu0
      %v5566 = vpop.f32.mrf.mxu0
      %v5567 = vadd.f32 %v5393, %v5566
      %v5568 = vpop.f32.mrf.mxu0
      %5569 = vmatprep.mubr.bf16.mxu0 0
      %5570 = vmatmul.mubr.bf16.gmra.mxu0 %v5447
      %v5571 = vpop.f32.mrf.mxu0
      %v5572 = vadd.f32 %v5393, %v5571
      %v5573 = vpop.f32.mrf.mxu0
      %v5574 = vpop.f32.mrf.mxu0
      %v5575 = vadd.f32 %v5393, %v5574
      %v5576 = vpop.f32.mrf.mxu0
      %5577 = vmatprep.mubr.bf16.mxu0 0
      %5578 = vmatmul.mubr.bf16.gmra.mxu0 %v5450
      %v5579 = vpop.f32.mrf.mxu0
      %v5580 = vadd.f32 %v5393, %v5579
      %v5581 = vpop.f32.mrf.mxu0
      %v5582 = vpop.f32.mrf.mxu0
      %v5583 = vadd.f32 %v5393, %v5582
      %v5584 = vpop.f32.mrf.mxu0
      %5585 = vmatprep.mubr.bf16.mxu0 0
      %5586 = vmatmul.mubr.bf16.gmra.mxu0 %v5453
      %v5587 = vpop.f32.mrf.mxu0
      %v5588 = vadd.f32 %v5393, %v5587
      %v5589 = vpop.f32.mrf.mxu0
      %v5590 = vpop.f32.mrf.mxu0
      %v5591 = vadd.f32 %v5393, %v5590
      %v5592 = vpop.f32.mrf.mxu0
      %5593 = vmatprep.mubr.bf16.mxu0 0
      %5594 = vmatmul.mubr.bf16.gmra.mxu0 %v5456
      %v5595 = vpop.f32.mrf.mxu0
      %v5596 = vadd.f32 %v5393, %v5595
      %v5597 = vpop.f32.mrf.mxu0
      %v5598 = vpop.f32.mrf.mxu0
      %v5599 = vadd.f32 %v5393, %v5598
      %v5600 = vpop.f32.mrf.mxu0
      %5601 = vmatprep.mubr.bf16.mxu0 0
      %5602 = vmatmul.mubr.bf16.gmra.mxu0 %v5459
      %v5603 = vpop.f32.mrf.mxu0
      %v5604 = vadd.f32 %v5393, %v5603
      %v5605 = vpop.f32.mrf.mxu0
      %v5606 = vpop.f32.mrf.mxu0
      %v5607 = vadd.f32 %v5393, %v5606
      %v5608 = vpop.f32.mrf.mxu0
      %5609 = vmatprep.mubr.bf16.mxu0 0
      %5610 = vmatmul.mubr.bf16.gmra.mxu0 %v5462
      %v5611 = vpop.f32.mrf.mxu0
      %v5612 = vadd.f32 %v5393, %v5611
      %v5613 = vpop.f32.mrf.mxu0
      %v5614 = vpop.f32.mrf.mxu0
      %v5615 = vadd.f32 %v5393, %v5614
      %v5616 = vpop.f32.mrf.mxu0
      %5617 = vmatprep.mubr.bf16.mxu0 0
      %5618 = vmatmul.mubr.bf16.gmra.mxu0 %v5465
      %v5619 = vpop.f32.mrf.mxu0
      %v5620 = vadd.f32 %v5393, %v5619
      %v5621 = vpop.f32.mrf.mxu0
      %v5622 = vpop.f32.mrf.mxu0
      %v5623 = vadd.f32 %v5393, %v5622
      %v5624 = vpop.f32.mrf.mxu0
      %5625 = vmatprep.mubr.bf16.mxu0 0
      %5626 = vmatmul.mubr.bf16.gmra.mxu0 %v5468
      %v5627 = vpop.f32.mrf.mxu0
      %v5628 = vadd.f32 %v5393, %v5627
      %v5629 = vpop.f32.mrf.mxu0
      %v5630 = vpop.f32.mrf.mxu0
      %v5631 = vadd.f32 %v5393, %v5630
      %v5632 = vpop.f32.mrf.mxu0
      %5633 = vdwg.mxu0
      %v5634 = vadd.f32 %v5508, %v389
      %v5635 = vadd.f32 %v5511, %v390
      %v5636 = vadd.f32 %v5516, %v391
      %v5637 = vadd.f32 %v5519, %v392
      %v5638 = vadd.f32 %v5524, %v393
      %v5639 = vadd.f32 %v5527, %v394
      %v5640 = vadd.f32 %v5532, %v395
      %v5641 = vadd.f32 %v5535, %v396
      %v5642 = vadd.f32 %v5540, %v397
      %v5643 = vadd.f32 %v5543, %v398
      %v5644 = vadd.f32 %v5548, %v399
      %v5645 = vadd.f32 %v5551, %v400
      %v5646 = vadd.f32 %v5556, %v401
      %v5647 = vadd.f32 %v5559, %v402
      %v5648 = vadd.f32 %v5564, %v403
      %v5649 = vadd.f32 %v5567, %v404
      %v5650 = vadd.f32 %v5572, %v405
      %v5651 = vadd.f32 %v5575, %v406
      %v5652 = vadd.f32 %v5580, %v407
      %v5653 = vadd.f32 %v5583, %v408
      %v5654 = vadd.f32 %v5588, %v409
      %v5655 = vadd.f32 %v5591, %v410
      %v5656 = vadd.f32 %v5596, %v411
      %v5657 = vadd.f32 %v5599, %v412
      %v5658 = vadd.f32 %v5604, %v413
      %v5659 = vadd.f32 %v5607, %v414
      %v5660 = vadd.f32 %v5612, %v415
      %v5661 = vadd.f32 %v5615, %v416
      %v5662 = vadd.f32 %v5620, %v417
      %v5663 = vadd.f32 %v5623, %v418
      %v5664 = vadd.f32 %v5628, %v419
      %v5665 = vadd.f32 %v5631, %v420
      %5666 = vst.msk [vmem:[%s387] sm:$0xff] %vm651, %v5634
      %5667 = vst.msk [vmem:[%s387 + $0x8] sm:$0xff] %vm651, %v5635
      %5668 = vst.msk [vmem:[%s387 + $0x10] sm:$0xff] %vm651, %v5636
      %5669 = vst.msk [vmem:[%s387 + $0x18] sm:$0xff] %vm651, %v5637
      %5670 = vst.msk [vmem:[%s387 + $0x20] sm:$0xff] %vm651, %v5638
      %5671 = vst.msk [vmem:[%s387 + $0x28] sm:$0xff] %vm651, %v5639
      %5672 = vst.msk [vmem:[%s387 + $0x30] sm:$0xff] %vm651, %v5640
      %5673 = vst.msk [vmem:[%s387 + $0x38] sm:$0xff] %vm651, %v5641
      %5674 = vst.msk [vmem:[%s387 + $0x40] sm:$0xff] %vm651, %v5642
      %5675 = vst.msk [vmem:[%s387 + $0x48] sm:$0xff] %vm651, %v5643
      %5676 = vst.msk [vmem:[%s387 + $0x50] sm:$0xff] %vm651, %v5644
      %5677 = vst.msk [vmem:[%s387 + $0x58] sm:$0xff] %vm651, %v5645
      %5678 = vst.msk [vmem:[%s387 + $0x60] sm:$0xff] %vm651, %v5646
      %5679 = vst.msk [vmem:[%s387 + $0x68] sm:$0xff] %vm651, %v5647
      %5680 = vst.msk [vmem:[%s387 + $0x70] sm:$0xff] %vm651, %v5648
      %5681 = vst.msk [vmem:[%s387 + $0x78] sm:$0xff] %vm651, %v5649
      %5682 = vst.msk [vmem:[%s387 + $0x80] sm:$0xff] %vm651, %v5650
      %5683 = vst.msk [vmem:[%s387 + $0x88] sm:$0xff] %vm651, %v5651
      %5684 = vst.msk [vmem:[%s387 + $0x90] sm:$0xff] %vm651, %v5652
      %5685 = vst.msk [vmem:[%s387 + $0x98] sm:$0xff] %vm651, %v5653
      %5686 = vst.msk [vmem:[%s387 + $0xa0] sm:$0xff] %vm651, %v5654
      %5687 = vst.msk [vmem:[%s387 + $0xa8] sm:$0xff] %vm651, %v5655
      %5688 = vst.msk [vmem:[%s387 + $0xb0] sm:$0xff] %vm651, %v5656
      %5689 = vst.msk [vmem:[%s387 + $0xb8] sm:$0xff] %vm651, %v5657
      %5690 = vst.msk [vmem:[%s387 + $0xc0] sm:$0xff] %vm651, %v5658
      %5691 = vst.msk [vmem:[%s387 + $0xc8] sm:$0xff] %vm651, %v5659
      %5692 = vst.msk [vmem:[%s387 + $0xd0] sm:$0xff] %vm651, %v5660
      %5693 = vst.msk [vmem:[%s387 + $0xd8] sm:$0xff] %vm651, %v5661
      %5694 = vst.msk [vmem:[%s387 + $0xe0] sm:$0xff] %vm651, %v5662
      %5695 = vst.msk [vmem:[%s387 + $0xe8] sm:$0xff] %vm651, %v5663
      %5696 = vst.msk [vmem:[%s387 + $0xf0] sm:$0xff] %vm651, %v5664
      %5697 = vst.msk [vmem:[%s387 + $0xf8] sm:$0xff] %vm651, %v5665
      %p5698 = scmp.lt.s32.totalorder %s21, 1
      %s5699 = scalar_select %p5698, %s21, 1
      %s5700 = smul.addr %s5699, 32
      %s5701 = smul.addr %s5700, 8
      %s5702 = scalar_lea.vmem %s10, %s5701
      // Predicated region
      $region61: #{resblock_forward.1} parent=59 // pred_check
        %p5703 = pneg %p264
      $region62: #{resblock_forward.1} parent=59 // pred_check_branch
        %5705 = sbr.rel (%p5703) target = $region64
      $region63: #{resblock_forward.1} parent=59 // pred_region
        _
      $region64: #{resblock_forward.1} parent=59 // pred_fallthru
        _
    $region60: #{resblock_forward.1} parent=5 // pred_fallthru
      _
    %p5706 = scmp.le.s32.totalorder 2, %s16
    // Predicated region
    $region65: #{resblock_forward.1} parent=5 // pred_check
      %p5707 = pneg %p5706
    $region66: #{resblock_forward.1} parent=5 // pred_check_branch
      %5709 = sbr.rel (%p5707) target = $region68
    $region67: #{resblock_forward.1} parent=5 // pred_region
      %s5710 = ssub.s32 %s16, 2
      // Predicated region
      $region69: #{resblock_forward.1} parent=67 // pred_check
        %p5711 = pneg %p270
      $region70: #{resblock_forward.1} parent=67 // pred_check_branch
        %5713 = sbr.rel (%p5711) target = $region72
      $region71: #{resblock_forward.1} parent=67 // pred_region
        %p5714 = scmp.lt.s32.totalorder %s22, 1
        %s5715 = scalar_select %p5714, %s22, 1
        %s5716 = smul.addr %s5715, 32
        %s5717 = smul.addr %s5716, 8
        %s5718 = scalar_lea.vmem %s10, %s5717
      $region72: #{resblock_forward.1} parent=67 // pred_fallthru
        _
    $region68: #{resblock_forward.1} parent=5 // pred_fallthru
      _
  $region6: #{resblock_forward.1} parent=0 // loop_footer
    %s20 = sadd.s32 1, %s16
  $region7: #{resblock_forward.1} parent=0 // loop_footer_branch
    %15 = sbr.rel target = $region3
  $region8: #{resblock_forward.1} parent=0 // loop_exit
    _

</llo_original>
